<compile_context>
chip_gen: v7x
topology: tpu7x:2x2x1
jax: 0.10.0
libtpu: 0.0.40
codegen_flags: <defaults>
</compile_context>

<pallas_src>
from functools import partial
from itertools import product

import numpy as np
import jax
import jax.numpy as jnp
from jax.experimental import pallas as pl
from jax.experimental.pallas import tpu as pltpu


# ----------------------------------------------------------------------------
# realign(): inverse permutation of the recursive even/odd split (matches
# SCI_Net.realign()).
# ----------------------------------------------------------------------------
def _realign_index(seq_size, L):
    def pre_realign(v, combination):
        for bit in combination:
            v = v[::2] if bit == 0 else v[1::2]
        return v

    ve = list(range(seq_size))
    order = []
    for comb in product((0, 1), repeat=L):
        order.extend(pre_realign(ve, comb))
    return np.argsort(np.array(order))     # inverse permutation


# ----------------------------------------------------------------------------
# Compile-time 0/1 operator matrices per level, built for the transposed
# (rows = batch*channels, lanes = time) layout:
#   sel_oddT / sel_evenT : (T, S*half)     even/odd time split (right-mult)
#   a1_odd / a1_even     : (T, K*S*mid)    FIRST conv window with the even/odd
#                                          selection folded in, K taps stacked
#                                          along columns
#   w1p                  : (S*half,K*S*mid) plain first-conv window (nu/ro path)
#   w2p                  : (S*mid, K*S*half) second-conv window, taps stacked
#   mergeT               : (T, T)          re-interleave [even_fin|odd_fin] into
#                                          the next level's layout; the last
#                                          level also folds the realign perm.
# All block-diagonal over the 2^lvl sub-sequences -> one matmul per use.
# ----------------------------------------------------------------------------
def build_level_operators(T, L, K, pad):
    levels = []
    for lvl in range(L):
        S = 2 ** lvl
        n = T // S
        half = n // 2
        mid = half + pad                    # length after first conv (pad == K-1)
        Sh, W = S * half, S * mid
        sel_oddT = np.zeros((T, Sh), np.float32)
        sel_evenT = np.zeros((T, Sh), np.float32)
        a1_odd = np.zeros((T, K * W), np.float32)
        a1_even = np.zeros((T, K * W), np.float32)
        w1p = np.zeros((Sh, K * W), np.float32)
        w2p = np.zeros((W, K * Sh), np.float32)
        merge_e = np.zeros((T, Sh), np.float32)
        merge_o = np.zeros((T, Sh), np.float32)
        for s in range(S):
            for j in range(half):
                sel_oddT[s * n + 2 * j, s * half + j] = 1.0       # idx_odd = 0,2,...
                sel_evenT[s * n + 2 * j + 1, s * half + j] = 1.0  # idx_even = 1,3,...
                merge_e[s * n + j, s * half + j] = 1.0
                merge_o[s * n + half + j, s * half + j] = 1.0
            for k in range(K):
                for j in range(mid):
                    src = min(max(j + k - pad, 0), half - 1)      # ReplicationPad1d
                    a1_odd[s * n + 2 * src, k * W + s * mid + j] = 1.0
                    a1_even[s * n + 2 * src + 1, k * W + s * mid + j] = 1.0
                    w1p[s * half + src, k * W + s * mid + j] = 1.0
                for j in range(half):
                    w2p[s * mid + j + k, k * Sh + s * half + j] = 1.0
        if lvl == L - 1:
            # Fold the realign permutation into the final merge.
            ridx = _realign_index(T, L)
            P = np.zeros((T, T), np.float32)
            P[np.arange(T), ridx] = 1.0
            merge_e = P @ merge_e
            merge_o = P @ merge_o
        mergeT = np.concatenate([merge_e.T, merge_o.T], axis=0)   # (T, T)
        levels.append(dict(sel_oddT=sel_oddT, sel_evenT=sel_evenT,
                           a1_odd=a1_odd, a1_even=a1_even,
                           w1p=w1p, w2p=w2p, mergeT=mergeT))
    return levels


# ----------------------------------------------------------------------------
# Fused kernel: one grid step = one batch block; the whole net in one body.
# ----------------------------------------------------------------------------
def make_sci_kernel(T, K, L, pad):
    N_LEVEL_ARGS = 15

    def kernel(*refs):
        x_ref = refs[0]
        out_ref = refs[-1]
        xv = x_ref[0].astype(jnp.float32)            # (R, T): rows = batch*chan, lanes = time
        state = xv
        pos = 1
        for lvl in range(L):
            (sel_o_ref, sel_e_ref, a1_odd_ref, a1_even_ref, w1p_ref, w2p_ref, merge_ref,
             psi_w1, psi_w2, phi_w1, phi_w2,
             nu_w1, nu_w2, ro_w1, ro_w2) = refs[pos:pos + N_LEVEL_ARGS]
            pos += N_LEVEL_ARGS

            S = 2 ** lvl
            n = T // S
            half = n // 2
            mid = half + pad
            Sh = S * half            # lanes of selected / conv-output tiles
            W = S * mid              # lanes of first-conv hidden tiles

            state_bf = state.astype(jnp.bfloat16)    # hoisted: shared by sel + psi/phi dots

            # Even/odd time split (lane gather as lane-dense dots); only feeds
            # the elementwise scale/update path (conv inputs use folded ops).
            f_odd = jnp.dot(state_bf, sel_o_ref[...], preferred_element_type=jnp.float32)
            f_even = jnp.dot(state_bf, sel_e_ref[...], preferred_element_type=jnp.float32)

            def conv(xin_bf, win1_ref, w1_ref, w2_ref, W=W, Sh=Sh, w2p_ref=w2p_ref):
                # ReplicationPad1d -> Conv1d(C, C*E) -> LeakyReLU -> Dropout(id)
                # -> Conv1d(C*E, C) -> Tanh; one stacked window dot per conv
                # stage + K small channel-mix dots (taps independent, depth 2).
                g = jnp.dot(xin_bf, win1_ref[...], preferred_element_type=jnp.float32)
                h = None
                for k in range(K):
                    gk = g[:, k * W:(k + 1) * W].astype(jnp.bfloat16)
                    t = jnp.dot(w1_ref[k], gk, preferred_element_type=jnp.float32)
                    h = t if h is None else h + t
                h = jnp.where(h >= 0.0, h, 0.01 * h)          # LeakyReLU(0.01), f32
                # TODO(synk): nn.Dropout(0.5) treated as identity (eval mode).
                g2 = jnp.dot(h.astype(jnp.bfloat16), w2p_ref[...],
                             preferred_element_type=jnp.float32)
                y = None
                for k in range(K):
                    g2k = g2[:, k * Sh:(k + 1) * Sh].astype(jnp.bfloat16)
                    t = jnp.dot(w2_ref[k], g2k, preferred_element_type=jnp.float32)
                    y = t if y is None else y + t
                return jnp.tanh(y)                            # f32

            # psi/phi read `state` directly through sel-folded window operators.
            f_even_s = f_even * jnp.exp(conv(state_bf, a1_odd_ref, psi_w1, psi_w2))
            f_odd_s = f_odd * jnp.exp(conv(state_bf, a1_even_ref, phi_w1, phi_w2))
            f_even_fin = f_odd_s - conv(f_odd_s.astype(jnp.bfloat16), w1p_ref, nu_w1, nu_w2)
            f_odd_fin = f_even_s + conv(f_even_s.astype(jnp.bfloat16), w1p_ref, ro_w1, ro_w2)

            # Re-interleave children into the next level's layout with ONE dot;
            # the last level's merge operator also contains the realign perm.
            cat = jnp.concatenate([f_even_fin, f_odd_fin], axis=1).astype(jnp.bfloat16)
            state = jnp.dot(cat, merge_ref[...], preferred_element_type=jnp.float32)

        state = state + xv                                    # residual add, f32

        fc1_w = refs[pos][...]        # (T, H1)   bf16
        fc1_b = refs[pos + 1][...]    # (1, H1)   f32 (broadcast over rows in-kernel)
        fc2_w = refs[pos + 2][...]    # (H1, Hz)  bf16
        fc2_b = refs[pos + 3][...]    # (1, Hz)   f32
        h1 = jnp.dot(state.astype(jnp.bfloat16), fc1_w,
                     preferred_element_type=jnp.float32) + fc1_b
        h1 = jnp.maximum(h1, 0.0)                             # ReLU
        y = jnp.dot(h1.astype(jnp.bfloat16), fc2_w,
                    preferred_element_type=jnp.float32) + fc2_b
        out_ref[0] = y.astype(out_ref.dtype)                  # (R, horizon)

    return kernel


# ----------------------------------------------------------------------------
# Public wrapper: x in PyTorch NCW layout (B, C, T) -> (B, C, horizon)
# ----------------------------------------------------------------------------
def sci_net_forward(x_ncw, params, *, L, kernel_size, padding, batch_blocks=None):
    B, C, T = x_ncw.shape
    K, pad = kernel_size, padding
    assert pad == K - 1, "conv_op preserves length only when padding == kernel - 1"
    assert T % (2 ** L) == 0, "seq_size must be divisible by 2^L"

    if batch_blocks is None:
        batch_blocks = 2 if (B % 2 == 0 and B >= 2) else 1    # >=2 parallel steps for v7x
    nb = batch_blocks
    assert B % nb == 0
    Bb = B // nb
    RC = Bb * C                                               # rows per grid step

    H1 = params["fc1_w"].shape[1]
    horizon = params["fc2_w"].shape[1]

    # (B, C, T) -> (nb, Bb*C, T): rows = (batch-major, channel-minor) per block.
    x_r = x_ncw.reshape(nb, RC, T).astype(jnp.float32)

    level_ops = build_level_operators(T, L, K, pad)

    inputs = [x_r]
    in_specs = [pl.BlockSpec((1, RC, T), lambda b: (b, 0, 0))]

    def add_const(arr, dtype=jnp.bfloat16):
        arr = jnp.asarray(arr, dtype)
        inputs.append(arr)
        zero = (0,) * arr.ndim
        in_specs.append(pl.BlockSpec(arr.shape, lambda b, _z=zero: _z))

    eye = jnp.eye(Bb, dtype=jnp.float32)

    def bd(w):                 # replicate a (a, b) weight block-diagonally over the batch block
        return jnp.kron(eye, w)

    for lvl in range(L):
        ops = level_ops[lvl]
        blk = params["blocks"][lvl]
        for name in ("sel_oddT", "sel_evenT", "a1_odd", "a1_even", "w1p", "w2p", "mergeT"):
            add_const(ops[name])                              # 0/1 operators, exact in bf16
        for name in ("psi", "phi", "nu", "ro"):
            w1 = blk[name + "_w1"]                            # (K, C, CE)
            w2 = blk[name + "_w2"]                            # (K, CE, C)
            add_const(jnp.stack([bd(w1[k].T) for k in range(K)]))   # (K, Bb*CE, Bb*C)
            add_const(jnp.stack([bd(w2[k].T) for k in range(K)]))   # (K, Bb*C, Bb*CE)

    # FC head: weights in bf16; biases un-broadcast in f32 (in-kernel broadcast).
    add_const(params["fc1_w"])                                # (T, H1)
    add_const(params["fc1_b"], jnp.float32)                   # (1, H1)
    add_const(params["fc2_w"])                                # (H1, horizon)
    add_const(params["fc2_b"], jnp.float32)                   # (1, horizon)

    # Explicit VMEM budget: constants + double-buffer allowance + slack,
    # clamped to stay within v7x's 64 MiB physical VMEM.
    const_bytes = sum(int(a.size) * int(a.dtype.itemsize) for a in inputs)
    vmem_limit = int(min(64 << 20, max(32 << 20, 2 * const_bytes + (8 << 20))))

    out = pl.pallas_call(
        make_sci_kernel(T, K, L, pad),
        out_shape=jax.ShapeDtypeStruct((nb, RC, horizon), jnp.float32),
        grid=(nb,),
        in_specs=in_specs,
        out_specs=pl.BlockSpec((1, RC, horizon), lambda b: (b, 0, 0)),
        compiler_params=pltpu.CompilerParams(
            dimension_semantics=("parallel",),                # shard batch blocks over TCs
            vmem_limit_bytes=vmem_limit),
    )(*inputs)
    return out.reshape(B, C, horizon).astype(x_ncw.dtype)


# ----------------------------------------------------------------------------
# Deterministic parameter initialization (shapes follow the module __init__)
# ----------------------------------------------------------------------------
def init_params(key, in_channels, expand, kernel_size, seq_size, L, horizon, hidden=50):
    C, CE, K = in_channels, in_channels * expand, kernel_size
    keys = jax.random.split(key, 8 * L + 4)
    ki = 0
    params = {"blocks": []}
    for _ in range(L):
        blk = {}
        for name in ("nu", "psi", "ro", "phi"):
            blk[name + "_w1"] = 0.2 * jax.random.normal(keys[ki], (K, C, CE), jnp.float32); ki += 1
            blk[name + "_w2"] = 0.2 * jax.random.normal(keys[ki], (K, CE, C), jnp.float32); ki += 1
        params["blocks"].append(blk)
    params["fc1_w"] = 0.2 * jax.random.normal(keys[ki], (seq_size, hidden), jnp.float32); ki += 1
    params["fc1_b"] = 0.1 * jax.random.normal(keys[ki], (1, hidden), jnp.float32); ki += 1
    params["fc2_w"] = 0.2 * jax.random.normal(keys[ki], (hidden, horizon), jnp.float32); ki += 1
    params["fc2_b"] = 0.1 * jax.random.normal(keys[ki], (1, horizon), jnp.float32); ki += 1
    return params


# ----------------------------------------------------------------------------
# Pure-JAX reference (direct port of the PyTorch forward).
#   quant=False : exact f32 module semantics.
#   quant=True  : emulates the kernel's bf16-operand / f32-accumulate discipline
#                 (operands rounded through bf16 at every matmul / gather site).
# ----------------------------------------------------------------------------
def _rq(x, quant):
    return x.astype(jnp.bfloat16).astype(jnp.float32) if quant else x


def _conv_op_ref(x, w1, w2, pad, quant=False):
    K = w1.shape[0]
    xq = _rq(x, quant)
    w1q, w2q = _rq(w1, quant), _rq(w2, quant)
    xp = jnp.pad(xq, ((0, 0), (pad, pad), (0, 0)), mode="edge")
    mid = xp.shape[1] - K + 1
    h = None
    for k in range(K):
        t = jnp.einsum("btc,ce->bte", xp[:, k:k + mid, :], w1q[k])
        h = t if h is None else h + t
    h = jnp.where(h >= 0.0, h, 0.01 * h)
    hq = _rq(h, quant)
    out_len = mid - K + 1
    y = None
    for k in range(K):
        t = jnp.einsum("bte,ec->btc", hq[:, k:k + out_len, :], w2q[k])
        y = t if y is None else y + t
    return jnp.tanh(y)


def sci_net_reference(x_ncw, params, *, L, padding, quant=False):
    B, C, T = x_ncw.shape
    xt = jnp.transpose(x_ncw, (0, 2, 1))
    residual = xt
    prev = [xt]
    for lvl in range(L):
        blk = params["blocks"][lvl]
        new = []
        for f in prev:
            fe = _rq(f[:, 1::2, :], quant)
            fo = _rq(f[:, 0::2, :], quant)
            fe_s = fe * jnp.exp(_conv_op_ref(fo, blk["psi_w1"], blk["psi_w2"], padding, quant))
            fo_s = fo * jnp.exp(_conv_op_ref(fe, blk["phi_w1"], blk["phi_w2"], padding, quant))
            fe_fin = fo_s - _conv_op_ref(fo_s, blk["nu_w1"], blk["nu_w2"], padding, quant)
            fo_fin = fe_s + _conv_op_ref(fe_s, blk["ro_w1"], blk["ro_w2"], padding, quant)
            new.extend([fe_fin, fo_fin])
        prev = new
    fc = jnp.concatenate(prev, axis=1)
    ridx = jnp.asarray(_realign_index(T, L))
    fc = _rq(jnp.take(fc, ridx, axis=1), quant) + residual
    z = jnp.transpose(fc, (0, 2, 1))                   # (B, C, T)
    h = jnp.maximum(_rq(z, quant) @ _rq(params["fc1_w"], quant) + params["fc1_b"], 0.0)
    return _rq(h, quant) @ _rq(params["fc2_w"], quant) + params["fc2_b"]


if __name__ == "__main__":
    # Small shapes consistent with the module (Conv1d input is (batch, channels, seq)).
    B, C, T = 2, 4, 16
    expand, kernel_size, stride, padding = 2, 3, 1, 2   # padding = kernel-1 keeps lengths
    L, horizon = 2, 8

    key = jax.random.PRNGKey(0)
    kx, kp = jax.random.split(key)
    x = jax.random.normal(kx, (B, C, T), jnp.float32)
    params = init_params(kp, C, expand, kernel_size, T, L, horizon)

    fwd = jax.jit(partial(sci_net_forward, L=L, kernel_size=kernel_size, padding=padding))
    out = fwd(x, params)
    jax.block_until_ready(out)

    assert out.shape == (B, C, horizon)
    assert bool(jnp.all(jnp.isfinite(out)))

    # (a) tight check vs. a reference using the same bf16-operand discipline
    ref_q = sci_net_reference(x, params, L=L, padding=padding, quant=True)
    jax.block_until_ready(ref_q)
    assert bool(jnp.allclose(out, ref_q, rtol=1e-2, atol=1e-2)), \
        float(jnp.max(jnp.abs(out - ref_q)))

    # (b) sanity check vs. the exact f32 module semantics (bf16 approximation bound)
    ref_f = sci_net_reference(x, params, L=L, padding=padding, quant=False)
    jax.block_until_ready(ref_f)
    assert bool(jnp.allclose(out, ref_f, rtol=1e-1, atol=1e-1)), \
        float(jnp.max(jnp.abs(out - ref_f)))

    print("KERNEL_OK")
</pallas_src>

<mosaic_0001>
module attributes {stable_mosaic.version = 11 : i64} {
  func.func @kernel(%arg0: i32, %arg1: memref<1x4x16xf32, #tpu.memory_space<vmem>>, %arg2: memref<16x8xbf16, #tpu.memory_space<vmem>>, %arg3: memref<16x8xbf16, #tpu.memory_space<vmem>>, %arg4: memref<16x30xbf16, #tpu.memory_space<vmem>>, %arg5: memref<16x30xbf16, #tpu.memory_space<vmem>>, %arg6: memref<8x30xbf16, #tpu.memory_space<vmem>>, %arg7: memref<10x24xbf16, #tpu.memory_space<vmem>>, %arg8: memref<16x16xbf16, #tpu.memory_space<vmem>>, %arg9: memref<3x8x4xbf16, #tpu.memory_space<vmem>>, %arg10: memref<3x4x8xbf16, #tpu.memory_space<vmem>>, %arg11: memref<3x8x4xbf16, #tpu.memory_space<vmem>>, %arg12: memref<3x4x8xbf16, #tpu.memory_space<vmem>>, %arg13: memref<3x8x4xbf16, #tpu.memory_space<vmem>>, %arg14: memref<3x4x8xbf16, #tpu.memory_space<vmem>>, %arg15: memref<3x8x4xbf16, #tpu.memory_space<vmem>>, %arg16: memref<3x4x8xbf16, #tpu.memory_space<vmem>>, %arg17: memref<16x8xbf16, #tpu.memory_space<vmem>>, %arg18: memref<16x8xbf16, #tpu.memory_space<vmem>>, %arg19: memref<16x36xbf16, #tpu.memory_space<vmem>>, %arg20: memref<16x36xbf16, #tpu.memory_space<vmem>>, %arg21: memref<8x36xbf16, #tpu.memory_space<vmem>>, %arg22: memref<12x24xbf16, #tpu.memory_space<vmem>>, %arg23: memref<16x16xbf16, #tpu.memory_space<vmem>>, %arg24: memref<3x8x4xbf16, #tpu.memory_space<vmem>>, %arg25: memref<3x4x8xbf16, #tpu.memory_space<vmem>>, %arg26: memref<3x8x4xbf16, #tpu.memory_space<vmem>>, %arg27: memref<3x4x8xbf16, #tpu.memory_space<vmem>>, %arg28: memref<3x8x4xbf16, #tpu.memory_space<vmem>>, %arg29: memref<3x4x8xbf16, #tpu.memory_space<vmem>>, %arg30: memref<3x8x4xbf16, #tpu.memory_space<vmem>>, %arg31: memref<3x4x8xbf16, #tpu.memory_space<vmem>>, %arg32: memref<16x50xbf16, #tpu.memory_space<vmem>>, %arg33: memref<1x50xf32, #tpu.memory_space<vmem>>, %arg34: memref<50x8xbf16, #tpu.memory_space<vmem>>, %arg35: memref<1x8xf32, #tpu.memory_space<vmem>>, %arg36: memref<1x4x8xf32, #tpu.memory_space<vmem>>) attributes {dimension_semantics = [#tpu.dimension_semantics<parallel>], iteration_bounds = array<i64: 2>, scalar_prefetch = 0 : i64, scratch_operands = 0 : i64, tpu.core_type = #tpu.core_type<tc>, window_params = [{transform_indices = @transform_0, window_bounds = array<i64: 1, 4, 16>}, {pipeline_mode = #tpu.pipeline_mode<synchronous>, transform_indices = @transform_1, window_bounds = array<i64: 16, 8>}, {pipeline_mode = #tpu.pipeline_mode<synchronous>, transform_indices = @transform_2, window_bounds = array<i64: 16, 8>}, {pipeline_mode = #tpu.pipeline_mode<synchronous>, transform_indices = @transform_3, window_bounds = array<i64: 16, 30>}, {pipeline_mode = #tpu.pipeline_mode<synchronous>, transform_indices = @transform_4, window_bounds = array<i64: 16, 30>}, {pipeline_mode = #tpu.pipeline_mode<synchronous>, transform_indices = @transform_5, window_bounds = array<i64: 8, 30>}, {pipeline_mode = #tpu.pipeline_mode<synchronous>, transform_indices = @transform_6, window_bounds = array<i64: 10, 24>}, {pipeline_mode = #tpu.pipeline_mode<synchronous>, transform_indices = @transform_7, window_bounds = array<i64: 16, 16>}, {pipeline_mode = #tpu.pipeline_mode<synchronous>, transform_indices = @transform_8, window_bounds = array<i64: 3, 8, 4>}, {pipeline_mode = #tpu.pipeline_mode<synchronous>, transform_indices = @transform_9, window_bounds = array<i64: 3, 4, 8>}, {pipeline_mode = #tpu.pipeline_mode<synchronous>, transform_indices = @transform_10, window_bounds = array<i64: 3, 8, 4>}, {pipeline_mode = #tpu.pipeline_mode<synchronous>, transform_indices = @transform_11, window_bounds = array<i64: 3, 4, 8>}, {pipeline_mode = #tpu.pipeline_mode<synchronous>, transform_indices = @transform_12, window_bounds = array<i64: 3, 8, 4>}, {pipeline_mode = #tpu.pipeline_mode<synchronous>, transform_indices = @transform_13, window_bounds = array<i64: 3, 4, 8>}, {pipeline_mode = #tpu.pipeline_mode<synchronous>, transform_indices = @transform_14, window_bounds = array<i64: 3, 8, 4>}, {pipeline_mode = #tpu.pipeline_mode<synchronous>, transform_indices = @transform_15, window_bounds = array<i64: 3, 4, 8>}, {pipeline_mode = #tpu.pipeline_mode<synchronous>, transform_indices = @transform_16, window_bounds = array<i64: 16, 8>}, {pipeline_mode = #tpu.pipeline_mode<synchronous>, transform_indices = @transform_17, window_bounds = array<i64: 16, 8>}, {pipeline_mode = #tpu.pipeline_mode<synchronous>, transform_indices = @transform_18, window_bounds = array<i64: 16, 36>}, {pipeline_mode = #tpu.pipeline_mode<synchronous>, transform_indices = @transform_19, window_bounds = array<i64: 16, 36>}, {pipeline_mode = #tpu.pipeline_mode<synchronous>, transform_indices = @transform_20, window_bounds = array<i64: 8, 36>}, {pipeline_mode = #tpu.pipeline_mode<synchronous>, transform_indices = @transform_21, window_bounds = array<i64: 12, 24>}, {pipeline_mode = #tpu.pipeline_mode<synchronous>, transform_indices = @transform_22, window_bounds = array<i64: 16, 16>}, {pipeline_mode = #tpu.pipeline_mode<synchronous>, transform_indices = @transform_23, window_bounds = array<i64: 3, 8, 4>}, {pipeline_mode = #tpu.pipeline_mode<synchronous>, transform_indices = @transform_24, window_bounds = array<i64: 3, 4, 8>}, {pipeline_mode = #tpu.pipeline_mode<synchronous>, transform_indices = @transform_25, window_bounds = array<i64: 3, 8, 4>}, {pipeline_mode = #tpu.pipeline_mode<synchronous>, transform_indices = @transform_26, window_bounds = array<i64: 3, 4, 8>}, {pipeline_mode = #tpu.pipeline_mode<synchronous>, transform_indices = @transform_27, window_bounds = array<i64: 3, 8, 4>}, {pipeline_mode = #tpu.pipeline_mode<synchronous>, transform_indices = @transform_28, window_bounds = array<i64: 3, 4, 8>}, {pipeline_mode = #tpu.pipeline_mode<synchronous>, transform_indices = @transform_29, window_bounds = array<i64: 3, 8, 4>}, {pipeline_mode = #tpu.pipeline_mode<synchronous>, transform_indices = @transform_30, window_bounds = array<i64: 3, 4, 8>}, {pipeline_mode = #tpu.pipeline_mode<synchronous>, transform_indices = @transform_31, window_bounds = array<i64: 16, 50>}, {pipeline_mode = #tpu.pipeline_mode<synchronous>, transform_indices = @transform_32, window_bounds = array<i64: 1, 50>}, {pipeline_mode = #tpu.pipeline_mode<synchronous>, transform_indices = @transform_33, window_bounds = array<i64: 50, 8>}, {pipeline_mode = #tpu.pipeline_mode<synchronous>, transform_indices = @transform_34, window_bounds = array<i64: 1, 8>}, {transform_indices = @transform_35, window_bounds = array<i64: 1, 4, 8>}]} {
    %c0 = arith.constant 0 : index
    %c0_0 = arith.constant 0 : index
    %c0_1 = arith.constant 0 : index
    %0 = vector.load %arg1[%c0, %c0_0, %c0_1] : memref<1x4x16xf32, #tpu.memory_space<vmem>>, vector<1x4x16xf32>
    %1 = vector.shape_cast %0 : vector<1x4x16xf32> to vector<4x16xf32>
    %2 = arith.truncf %1 : vector<4x16xf32> to vector<4x16xbf16>
    %c0_2 = arith.constant 0 : index
    %c0_3 = arith.constant 0 : index
    %3 = vector.load %arg2[%c0_2, %c0_3] : memref<16x8xbf16, #tpu.memory_space<vmem>>, vector<16x8xbf16>
    %cst = arith.constant dense<0.000000e+00> : vector<4x8xf32>
    %4 = tpu.matmul %2, %3, %cst {dimension_numbers = #tpu.dot_dimension_numbers<[1], [0], [0], [1], [0, 0, 1, 1], [], []>} : vector<4x16xbf16>, vector<16x8xbf16>, vector<4x8xf32> -> vector<4x8xf32>
    %c0_4 = arith.constant 0 : index
    %c0_5 = arith.constant 0 : index
    %5 = vector.load %arg3[%c0_4, %c0_5] : memref<16x8xbf16, #tpu.memory_space<vmem>>, vector<16x8xbf16>
    %cst_6 = arith.constant dense<0.000000e+00> : vector<4x8xf32>
    %6 = tpu.matmul %2, %5, %cst_6 {dimension_numbers = #tpu.dot_dimension_numbers<[1], [0], [0], [1], [0, 0, 1, 1], [], []>} : vector<4x16xbf16>, vector<16x8xbf16>, vector<4x8xf32> -> vector<4x8xf32>
    %c0_7 = arith.constant 0 : index
    %c0_8 = arith.constant 0 : index
    %7 = vector.load %arg4[%c0_7, %c0_8] : memref<16x30xbf16, #tpu.memory_space<vmem>>, vector<16x30xbf16>
    %cst_9 = arith.constant dense<0.000000e+00> : vector<4x30xf32>
    %8 = tpu.matmul %2, %7, %cst_9 {dimension_numbers = #tpu.dot_dimension_numbers<[1], [0], [0], [1], [0, 0, 1, 1], [], []>} : vector<4x16xbf16>, vector<16x30xbf16>, vector<4x30xf32> -> vector<4x30xf32>
    %9 = vector.extract_strided_slice %8 {offsets = [0, 0], sizes = [4, 10], strides = [1, 1]} : vector<4x30xf32> to vector<4x10xf32>
    %10 = arith.truncf %9 : vector<4x10xf32> to vector<4x10xbf16>
    %c0_10 = arith.constant 0 : index
    %c0_11 = arith.constant 0 : index
    %c0_12 = arith.constant 0 : index
    %11 = vector.load %arg9[%c0_10, %c0_11, %c0_12] : memref<3x8x4xbf16, #tpu.memory_space<vmem>>, vector<1x8x4xbf16>
    %12 = vector.shape_cast %11 : vector<1x8x4xbf16> to vector<8x4xbf16>
    %cst_13 = arith.constant dense<0.000000e+00> : vector<8x10xf32>
    %13 = tpu.matmul %12, %10, %cst_13 {dimension_numbers = #tpu.dot_dimension_numbers<[1], [0], [0], [1], [0, 0, 1, 1], [], []>} : vector<8x4xbf16>, vector<4x10xbf16>, vector<8x10xf32> -> vector<8x10xf32>
    %14 = vector.extract_strided_slice %8 {offsets = [0, 10], sizes = [4, 10], strides = [1, 1]} : vector<4x30xf32> to vector<4x10xf32>
    %15 = arith.truncf %14 : vector<4x10xf32> to vector<4x10xbf16>
    %c1 = arith.constant 1 : index
    %c0_14 = arith.constant 0 : index
    %c0_15 = arith.constant 0 : index
    %16 = vector.load %arg9[%c1, %c0_14, %c0_15] : memref<3x8x4xbf16, #tpu.memory_space<vmem>>, vector<1x8x4xbf16>
    %17 = vector.shape_cast %16 : vector<1x8x4xbf16> to vector<8x4xbf16>
    %cst_16 = arith.constant dense<0.000000e+00> : vector<8x10xf32>
    %18 = tpu.matmul %17, %15, %cst_16 {dimension_numbers = #tpu.dot_dimension_numbers<[1], [0], [0], [1], [0, 0, 1, 1], [], []>} : vector<8x4xbf16>, vector<4x10xbf16>, vector<8x10xf32> -> vector<8x10xf32>
    %19 = arith.addf %13, %18 : vector<8x10xf32>
    %20 = vector.extract_strided_slice %8 {offsets = [0, 20], sizes = [4, 10], strides = [1, 1]} : vector<4x30xf32> to vector<4x10xf32>
    %21 = arith.truncf %20 : vector<4x10xf32> to vector<4x10xbf16>
    %c2 = arith.constant 2 : index
    %c0_17 = arith.constant 0 : index
    %c0_18 = arith.constant 0 : index
    %22 = vector.load %arg9[%c2, %c0_17, %c0_18] : memref<3x8x4xbf16, #tpu.memory_space<vmem>>, vector<1x8x4xbf16>
    %23 = vector.shape_cast %22 : vector<1x8x4xbf16> to vector<8x4xbf16>
    %cst_19 = arith.constant dense<0.000000e+00> : vector<8x10xf32>
    %24 = tpu.matmul %23, %21, %cst_19 {dimension_numbers = #tpu.dot_dimension_numbers<[1], [0], [0], [1], [0, 0, 1, 1], [], []>} : vector<8x4xbf16>, vector<4x10xbf16>, vector<8x10xf32> -> vector<8x10xf32>
    %25 = arith.addf %19, %24 : vector<8x10xf32>
    %cst_20 = arith.constant 0.000000e+00 : f32
    %26 = vector.broadcast %cst_20 : f32 to vector<8x10xf32>
    %27 = arith.cmpf oge, %25, %26 : vector<8x10xf32>
    %cst_21 = arith.constant 0.00999999977 : f32
    %28 = vector.broadcast %cst_21 : f32 to vector<8x10xf32>
    %29 = arith.mulf %28, %25 : vector<8x10xf32>
    %30 = arith.select %27, %25, %29 : vector<8x10xi1>, vector<8x10xf32>
    %31 = arith.truncf %30 : vector<8x10xf32> to vector<8x10xbf16>
    %c0_22 = arith.constant 0 : index
    %c0_23 = arith.constant 0 : index
    %32 = vector.load %arg7[%c0_22, %c0_23] : memref<10x24xbf16, #tpu.memory_space<vmem>>, vector<10x24xbf16>
    %cst_24 = arith.constant dense<0.000000e+00> : vector<8x24xf32>
    %33 = tpu.matmul %31, %32, %cst_24 {dimension_numbers = #tpu.dot_dimension_numbers<[1], [0], [0], [1], [0, 0, 1, 1], [], []>} : vector<8x10xbf16>, vector<10x24xbf16>, vector<8x24xf32> -> vector<8x24xf32>
    %34 = vector.extract_strided_slice %33 {offsets = [0, 0], sizes = [8, 8], strides = [1, 1]} : vector<8x24xf32> to vector<8x8xf32>
    %35 = arith.truncf %34 : vector<8x8xf32> to vector<8x8xbf16>
    %c0_25 = arith.constant 0 : index
    %c0_26 = arith.constant 0 : index
    %c0_27 = arith.constant 0 : index
    %36 = vector.load %arg10[%c0_25, %c0_26, %c0_27] : memref<3x4x8xbf16, #tpu.memory_space<vmem>>, vector<1x4x8xbf16>
    %37 = vector.shape_cast %36 : vector<1x4x8xbf16> to vector<4x8xbf16>
    %cst_28 = arith.constant dense<0.000000e+00> : vector<4x8xf32>
    %38 = tpu.matmul %37, %35, %cst_28 {dimension_numbers = #tpu.dot_dimension_numbers<[1], [0], [0], [1], [0, 0, 1, 1], [], []>} : vector<4x8xbf16>, vector<8x8xbf16>, vector<4x8xf32> -> vector<4x8xf32>
    %39 = vector.extract_strided_slice %33 {offsets = [0, 8], sizes = [8, 8], strides = [1, 1]} : vector<8x24xf32> to vector<8x8xf32>
    %40 = arith.truncf %39 : vector<8x8xf32> to vector<8x8xbf16>
    %c1_29 = arith.constant 1 : index
    %c0_30 = arith.constant 0 : index
    %c0_31 = arith.constant 0 : index
    %41 = vector.load %arg10[%c1_29, %c0_30, %c0_31] : memref<3x4x8xbf16, #tpu.memory_space<vmem>>, vector<1x4x8xbf16>
    %42 = vector.shape_cast %41 : vector<1x4x8xbf16> to vector<4x8xbf16>
    %cst_32 = arith.constant dense<0.000000e+00> : vector<4x8xf32>
    %43 = tpu.matmul %42, %40, %cst_32 {dimension_numbers = #tpu.dot_dimension_numbers<[1], [0], [0], [1], [0, 0, 1, 1], [], []>} : vector<4x8xbf16>, vector<8x8xbf16>, vector<4x8xf32> -> vector<4x8xf32>
    %44 = arith.addf %38, %43 : vector<4x8xf32>
    %45 = vector.extract_strided_slice %33 {offsets = [0, 16], sizes = [8, 8], strides = [1, 1]} : vector<8x24xf32> to vector<8x8xf32>
    %46 = arith.truncf %45 : vector<8x8xf32> to vector<8x8xbf16>
    %c2_33 = arith.constant 2 : index
    %c0_34 = arith.constant 0 : index
    %c0_35 = arith.constant 0 : index
    %47 = vector.load %arg10[%c2_33, %c0_34, %c0_35] : memref<3x4x8xbf16, #tpu.memory_space<vmem>>, vector<1x4x8xbf16>
    %48 = vector.shape_cast %47 : vector<1x4x8xbf16> to vector<4x8xbf16>
    %cst_36 = arith.constant dense<0.000000e+00> : vector<4x8xf32>
    %49 = tpu.matmul %48, %46, %cst_36 {dimension_numbers = #tpu.dot_dimension_numbers<[1], [0], [0], [1], [0, 0, 1, 1], [], []>} : vector<4x8xbf16>, vector<8x8xbf16>, vector<4x8xf32> -> vector<4x8xf32>
    %50 = arith.addf %44, %49 : vector<4x8xf32>
    %51 = math.tanh %50 : vector<4x8xf32>
    %52 = math.exp %51 : vector<4x8xf32>
    %53 = arith.mulf %6, %52 : vector<4x8xf32>
    %c0_37 = arith.constant 0 : index
    %c0_38 = arith.constant 0 : index
    %54 = vector.load %arg5[%c0_37, %c0_38] : memref<16x30xbf16, #tpu.memory_space<vmem>>, vector<16x30xbf16>
    %cst_39 = arith.constant dense<0.000000e+00> : vector<4x30xf32>
    %55 = tpu.matmul %2, %54, %cst_39 {dimension_numbers = #tpu.dot_dimension_numbers<[1], [0], [0], [1], [0, 0, 1, 1], [], []>} : vector<4x16xbf16>, vector<16x30xbf16>, vector<4x30xf32> -> vector<4x30xf32>
    %56 = vector.extract_strided_slice %55 {offsets = [0, 0], sizes = [4, 10], strides = [1, 1]} : vector<4x30xf32> to vector<4x10xf32>
    %57 = arith.truncf %56 : vector<4x10xf32> to vector<4x10xbf16>
    %c0_40 = arith.constant 0 : index
    %c0_41 = arith.constant 0 : index
    %c0_42 = arith.constant 0 : index
    %58 = vector.load %arg11[%c0_40, %c0_41, %c0_42] : memref<3x8x4xbf16, #tpu.memory_space<vmem>>, vector<1x8x4xbf16>
    %59 = vector.shape_cast %58 : vector<1x8x4xbf16> to vector<8x4xbf16>
    %cst_43 = arith.constant dense<0.000000e+00> : vector<8x10xf32>
    %60 = tpu.matmul %59, %57, %cst_43 {dimension_numbers = #tpu.dot_dimension_numbers<[1], [0], [0], [1], [0, 0, 1, 1], [], []>} : vector<8x4xbf16>, vector<4x10xbf16>, vector<8x10xf32> -> vector<8x10xf32>
    %61 = vector.extract_strided_slice %55 {offsets = [0, 10], sizes = [4, 10], strides = [1, 1]} : vector<4x30xf32> to vector<4x10xf32>
    %62 = arith.truncf %61 : vector<4x10xf32> to vector<4x10xbf16>
    %c1_44 = arith.constant 1 : index
    %c0_45 = arith.constant 0 : index
    %c0_46 = arith.constant 0 : index
    %63 = vector.load %arg11[%c1_44, %c0_45, %c0_46] : memref<3x8x4xbf16, #tpu.memory_space<vmem>>, vector<1x8x4xbf16>
    %64 = vector.shape_cast %63 : vector<1x8x4xbf16> to vector<8x4xbf16>
    %cst_47 = arith.constant dense<0.000000e+00> : vector<8x10xf32>
    %65 = tpu.matmul %64, %62, %cst_47 {dimension_numbers = #tpu.dot_dimension_numbers<[1], [0], [0], [1], [0, 0, 1, 1], [], []>} : vector<8x4xbf16>, vector<4x10xbf16>, vector<8x10xf32> -> vector<8x10xf32>
    %66 = arith.addf %60, %65 : vector<8x10xf32>
    %67 = vector.extract_strided_slice %55 {offsets = [0, 20], sizes = [4, 10], strides = [1, 1]} : vector<4x30xf32> to vector<4x10xf32>
    %68 = arith.truncf %67 : vector<4x10xf32> to vector<4x10xbf16>
    %c2_48 = arith.constant 2 : index
    %c0_49 = arith.constant 0 : index
    %c0_50 = arith.constant 0 : index
    %69 = vector.load %arg11[%c2_48, %c0_49, %c0_50] : memref<3x8x4xbf16, #tpu.memory_space<vmem>>, vector<1x8x4xbf16>
    %70 = vector.shape_cast %69 : vector<1x8x4xbf16> to vector<8x4xbf16>
    %cst_51 = arith.constant dense<0.000000e+00> : vector<8x10xf32>
    %71 = tpu.matmul %70, %68, %cst_51 {dimension_numbers = #tpu.dot_dimension_numbers<[1], [0], [0], [1], [0, 0, 1, 1], [], []>} : vector<8x4xbf16>, vector<4x10xbf16>, vector<8x10xf32> -> vector<8x10xf32>
    %72 = arith.addf %66, %71 : vector<8x10xf32>
    %cst_52 = arith.constant 0.000000e+00 : f32
    %73 = vector.broadcast %cst_52 : f32 to vector<8x10xf32>
    %74 = arith.cmpf oge, %72, %73 : vector<8x10xf32>
    %cst_53 = arith.constant 0.00999999977 : f32
    %75 = vector.broadcast %cst_53 : f32 to vector<8x10xf32>
    %76 = arith.mulf %75, %72 : vector<8x10xf32>
    %77 = arith.select %74, %72, %76 : vector<8x10xi1>, vector<8x10xf32>
    %78 = arith.truncf %77 : vector<8x10xf32> to vector<8x10xbf16>
    %c0_54 = arith.constant 0 : index
    %c0_55 = arith.constant 0 : index
    %79 = vector.load %arg7[%c0_54, %c0_55] : memref<10x24xbf16, #tpu.memory_space<vmem>>, vector<10x24xbf16>
    %cst_56 = arith.constant dense<0.000000e+00> : vector<8x24xf32>
    %80 = tpu.matmul %78, %79, %cst_56 {dimension_numbers = #tpu.dot_dimension_numbers<[1], [0], [0], [1], [0, 0, 1, 1], [], []>} : vector<8x10xbf16>, vector<10x24xbf16>, vector<8x24xf32> -> vector<8x24xf32>
    %81 = vector.extract_strided_slice %80 {offsets = [0, 0], sizes = [8, 8], strides = [1, 1]} : vector<8x24xf32> to vector<8x8xf32>
    %82 = arith.truncf %81 : vector<8x8xf32> to vector<8x8xbf16>
    %c0_57 = arith.constant 0 : index
    %c0_58 = arith.constant 0 : index
    %c0_59 = arith.constant 0 : index
    %83 = vector.load %arg12[%c0_57, %c0_58, %c0_59] : memref<3x4x8xbf16, #tpu.memory_space<vmem>>, vector<1x4x8xbf16>
    %84 = vector.shape_cast %83 : vector<1x4x8xbf16> to vector<4x8xbf16>
    %cst_60 = arith.constant dense<0.000000e+00> : vector<4x8xf32>
    %85 = tpu.matmul %84, %82, %cst_60 {dimension_numbers = #tpu.dot_dimension_numbers<[1], [0], [0], [1], [0, 0, 1, 1], [], []>} : vector<4x8xbf16>, vector<8x8xbf16>, vector<4x8xf32> -> vector<4x8xf32>
    %86 = vector.extract_strided_slice %80 {offsets = [0, 8], sizes = [8, 8], strides = [1, 1]} : vector<8x24xf32> to vector<8x8xf32>
    %87 = arith.truncf %86 : vector<8x8xf32> to vector<8x8xbf16>
    %c1_61 = arith.constant 1 : index
    %c0_62 = arith.constant 0 : index
    %c0_63 = arith.constant 0 : index
    %88 = vector.load %arg12[%c1_61, %c0_62, %c0_63] : memref<3x4x8xbf16, #tpu.memory_space<vmem>>, vector<1x4x8xbf16>
    %89 = vector.shape_cast %88 : vector<1x4x8xbf16> to vector<4x8xbf16>
    %cst_64 = arith.constant dense<0.000000e+00> : vector<4x8xf32>
    %90 = tpu.matmul %89, %87, %cst_64 {dimension_numbers = #tpu.dot_dimension_numbers<[1], [0], [0], [1], [0, 0, 1, 1], [], []>} : vector<4x8xbf16>, vector<8x8xbf16>, vector<4x8xf32> -> vector<4x8xf32>
    %91 = arith.addf %85, %90 : vector<4x8xf32>
    %92 = vector.extract_strided_slice %80 {offsets = [0, 16], sizes = [8, 8], strides = [1, 1]} : vector<8x24xf32> to vector<8x8xf32>
    %93 = arith.truncf %92 : vector<8x8xf32> to vector<8x8xbf16>
    %c2_65 = arith.constant 2 : index
    %c0_66 = arith.constant 0 : index
    %c0_67 = arith.constant 0 : index
    %94 = vector.load %arg12[%c2_65, %c0_66, %c0_67] : memref<3x4x8xbf16, #tpu.memory_space<vmem>>, vector<1x4x8xbf16>
    %95 = vector.shape_cast %94 : vector<1x4x8xbf16> to vector<4x8xbf16>
    %cst_68 = arith.constant dense<0.000000e+00> : vector<4x8xf32>
    %96 = tpu.matmul %95, %93, %cst_68 {dimension_numbers = #tpu.dot_dimension_numbers<[1], [0], [0], [1], [0, 0, 1, 1], [], []>} : vector<4x8xbf16>, vector<8x8xbf16>, vector<4x8xf32> -> vector<4x8xf32>
    %97 = arith.addf %91, %96 : vector<4x8xf32>
    %98 = math.tanh %97 : vector<4x8xf32>
    %99 = math.exp %98 : vector<4x8xf32>
    %100 = arith.mulf %4, %99 : vector<4x8xf32>
    %101 = arith.truncf %100 : vector<4x8xf32> to vector<4x8xbf16>
    %c0_69 = arith.constant 0 : index
    %c0_70 = arith.constant 0 : index
    %102 = vector.load %arg6[%c0_69, %c0_70] : memref<8x30xbf16, #tpu.memory_space<vmem>>, vector<8x30xbf16>
    %cst_71 = arith.constant dense<0.000000e+00> : vector<4x30xf32>
    %103 = tpu.matmul %101, %102, %cst_71 {dimension_numbers = #tpu.dot_dimension_numbers<[1], [0], [0], [1], [0, 0, 1, 1], [], []>} : vector<4x8xbf16>, vector<8x30xbf16>, vector<4x30xf32> -> vector<4x30xf32>
    %104 = vector.extract_strided_slice %103 {offsets = [0, 0], sizes = [4, 10], strides = [1, 1]} : vector<4x30xf32> to vector<4x10xf32>
    %105 = arith.truncf %104 : vector<4x10xf32> to vector<4x10xbf16>
    %c0_72 = arith.constant 0 : index
    %c0_73 = arith.constant 0 : index
    %c0_74 = arith.constant 0 : index
    %106 = vector.load %arg13[%c0_72, %c0_73, %c0_74] : memref<3x8x4xbf16, #tpu.memory_space<vmem>>, vector<1x8x4xbf16>
    %107 = vector.shape_cast %106 : vector<1x8x4xbf16> to vector<8x4xbf16>
    %cst_75 = arith.constant dense<0.000000e+00> : vector<8x10xf32>
    %108 = tpu.matmul %107, %105, %cst_75 {dimension_numbers = #tpu.dot_dimension_numbers<[1], [0], [0], [1], [0, 0, 1, 1], [], []>} : vector<8x4xbf16>, vector<4x10xbf16>, vector<8x10xf32> -> vector<8x10xf32>
    %109 = vector.extract_strided_slice %103 {offsets = [0, 10], sizes = [4, 10], strides = [1, 1]} : vector<4x30xf32> to vector<4x10xf32>
    %110 = arith.truncf %109 : vector<4x10xf32> to vector<4x10xbf16>
    %c1_76 = arith.constant 1 : index
    %c0_77 = arith.constant 0 : index
    %c0_78 = arith.constant 0 : index
    %111 = vector.load %arg13[%c1_76, %c0_77, %c0_78] : memref<3x8x4xbf16, #tpu.memory_space<vmem>>, vector<1x8x4xbf16>
    %112 = vector.shape_cast %111 : vector<1x8x4xbf16> to vector<8x4xbf16>
    %cst_79 = arith.constant dense<0.000000e+00> : vector<8x10xf32>
    %113 = tpu.matmul %112, %110, %cst_79 {dimension_numbers = #tpu.dot_dimension_numbers<[1], [0], [0], [1], [0, 0, 1, 1], [], []>} : vector<8x4xbf16>, vector<4x10xbf16>, vector<8x10xf32> -> vector<8x10xf32>
    %114 = arith.addf %108, %113 : vector<8x10xf32>
    %115 = vector.extract_strided_slice %103 {offsets = [0, 20], sizes = [4, 10], strides = [1, 1]} : vector<4x30xf32> to vector<4x10xf32>
    %116 = arith.truncf %115 : vector<4x10xf32> to vector<4x10xbf16>
    %c2_80 = arith.constant 2 : index
    %c0_81 = arith.constant 0 : index
    %c0_82 = arith.constant 0 : index
    %117 = vector.load %arg13[%c2_80, %c0_81, %c0_82] : memref<3x8x4xbf16, #tpu.memory_space<vmem>>, vector<1x8x4xbf16>
    %118 = vector.shape_cast %117 : vector<1x8x4xbf16> to vector<8x4xbf16>
    %cst_83 = arith.constant dense<0.000000e+00> : vector<8x10xf32>
    %119 = tpu.matmul %118, %116, %cst_83 {dimension_numbers = #tpu.dot_dimension_numbers<[1], [0], [0], [1], [0, 0, 1, 1], [], []>} : vector<8x4xbf16>, vector<4x10xbf16>, vector<8x10xf32> -> vector<8x10xf32>
    %120 = arith.addf %114, %119 : vector<8x10xf32>
    %cst_84 = arith.constant 0.000000e+00 : f32
    %121 = vector.broadcast %cst_84 : f32 to vector<8x10xf32>
    %122 = arith.cmpf oge, %120, %121 : vector<8x10xf32>
    %cst_85 = arith.constant 0.00999999977 : f32
    %123 = vector.broadcast %cst_85 : f32 to vector<8x10xf32>
    %124 = arith.mulf %123, %120 : vector<8x10xf32>
    %125 = arith.select %122, %120, %124 : vector<8x10xi1>, vector<8x10xf32>
    %126 = arith.truncf %125 : vector<8x10xf32> to vector<8x10xbf16>
    %c0_86 = arith.constant 0 : index
    %c0_87 = arith.constant 0 : index
    %127 = vector.load %arg7[%c0_86, %c0_87] : memref<10x24xbf16, #tpu.memory_space<vmem>>, vector<10x24xbf16>
    %cst_88 = arith.constant dense<0.000000e+00> : vector<8x24xf32>
    %128 = tpu.matmul %126, %127, %cst_88 {dimension_numbers = #tpu.dot_dimension_numbers<[1], [0], [0], [1], [0, 0, 1, 1], [], []>} : vector<8x10xbf16>, vector<10x24xbf16>, vector<8x24xf32> -> vector<8x24xf32>
    %129 = vector.extract_strided_slice %128 {offsets = [0, 0], sizes = [8, 8], strides = [1, 1]} : vector<8x24xf32> to vector<8x8xf32>
    %130 = arith.truncf %129 : vector<8x8xf32> to vector<8x8xbf16>
    %c0_89 = arith.constant 0 : index
    %c0_90 = arith.constant 0 : index
    %c0_91 = arith.constant 0 : index
    %131 = vector.load %arg14[%c0_89, %c0_90, %c0_91] : memref<3x4x8xbf16, #tpu.memory_space<vmem>>, vector<1x4x8xbf16>
    %132 = vector.shape_cast %131 : vector<1x4x8xbf16> to vector<4x8xbf16>
    %cst_92 = arith.constant dense<0.000000e+00> : vector<4x8xf32>
    %133 = tpu.matmul %132, %130, %cst_92 {dimension_numbers = #tpu.dot_dimension_numbers<[1], [0], [0], [1], [0, 0, 1, 1], [], []>} : vector<4x8xbf16>, vector<8x8xbf16>, vector<4x8xf32> -> vector<4x8xf32>
    %134 = vector.extract_strided_slice %128 {offsets = [0, 8], sizes = [8, 8], strides = [1, 1]} : vector<8x24xf32> to vector<8x8xf32>
    %135 = arith.truncf %134 : vector<8x8xf32> to vector<8x8xbf16>
    %c1_93 = arith.constant 1 : index
    %c0_94 = arith.constant 0 : index
    %c0_95 = arith.constant 0 : index
    %136 = vector.load %arg14[%c1_93, %c0_94, %c0_95] : memref<3x4x8xbf16, #tpu.memory_space<vmem>>, vector<1x4x8xbf16>
    %137 = vector.shape_cast %136 : vector<1x4x8xbf16> to vector<4x8xbf16>
    %cst_96 = arith.constant dense<0.000000e+00> : vector<4x8xf32>
    %138 = tpu.matmul %137, %135, %cst_96 {dimension_numbers = #tpu.dot_dimension_numbers<[1], [0], [0], [1], [0, 0, 1, 1], [], []>} : vector<4x8xbf16>, vector<8x8xbf16>, vector<4x8xf32> -> vector<4x8xf32>
    %139 = arith.addf %133, %138 : vector<4x8xf32>
    %140 = vector.extract_strided_slice %128 {offsets = [0, 16], sizes = [8, 8], strides = [1, 1]} : vector<8x24xf32> to vector<8x8xf32>
    %141 = arith.truncf %140 : vector<8x8xf32> to vector<8x8xbf16>
    %c2_97 = arith.constant 2 : index
    %c0_98 = arith.constant 0 : index
    %c0_99 = arith.constant 0 : index
    %142 = vector.load %arg14[%c2_97, %c0_98, %c0_99] : memref<3x4x8xbf16, #tpu.memory_space<vmem>>, vector<1x4x8xbf16>
    %143 = vector.shape_cast %142 : vector<1x4x8xbf16> to vector<4x8xbf16>
    %cst_100 = arith.constant dense<0.000000e+00> : vector<4x8xf32>
    %144 = tpu.matmul %143, %141, %cst_100 {dimension_numbers = #tpu.dot_dimension_numbers<[1], [0], [0], [1], [0, 0, 1, 1], [], []>} : vector<4x8xbf16>, vector<8x8xbf16>, vector<4x8xf32> -> vector<4x8xf32>
    %145 = arith.addf %139, %144 : vector<4x8xf32>
    %146 = math.tanh %145 : vector<4x8xf32>
    %147 = arith.subf %100, %146 : vector<4x8xf32>
    %148 = arith.truncf %53 : vector<4x8xf32> to vector<4x8xbf16>
    %c0_101 = arith.constant 0 : index
    %c0_102 = arith.constant 0 : index
    %149 = vector.load %arg6[%c0_101, %c0_102] : memref<8x30xbf16, #tpu.memory_space<vmem>>, vector<8x30xbf16>
    %cst_103 = arith.constant dense<0.000000e+00> : vector<4x30xf32>
    %150 = tpu.matmul %148, %149, %cst_103 {dimension_numbers = #tpu.dot_dimension_numbers<[1], [0], [0], [1], [0, 0, 1, 1], [], []>} : vector<4x8xbf16>, vector<8x30xbf16>, vector<4x30xf32> -> vector<4x30xf32>
    %151 = vector.extract_strided_slice %150 {offsets = [0, 0], sizes = [4, 10], strides = [1, 1]} : vector<4x30xf32> to vector<4x10xf32>
    %152 = arith.truncf %151 : vector<4x10xf32> to vector<4x10xbf16>
    %c0_104 = arith.constant 0 : index
    %c0_105 = arith.constant 0 : index
    %c0_106 = arith.constant 0 : index
    %153 = vector.load %arg15[%c0_104, %c0_105, %c0_106] : memref<3x8x4xbf16, #tpu.memory_space<vmem>>, vector<1x8x4xbf16>
    %154 = vector.shape_cast %153 : vector<1x8x4xbf16> to vector<8x4xbf16>
    %cst_107 = arith.constant dense<0.000000e+00> : vector<8x10xf32>
    %155 = tpu.matmul %154, %152, %cst_107 {dimension_numbers = #tpu.dot_dimension_numbers<[1], [0], [0], [1], [0, 0, 1, 1], [], []>} : vector<8x4xbf16>, vector<4x10xbf16>, vector<8x10xf32> -> vector<8x10xf32>
    %156 = vector.extract_strided_slice %150 {offsets = [0, 10], sizes = [4, 10], strides = [1, 1]} : vector<4x30xf32> to vector<4x10xf32>
    %157 = arith.truncf %156 : vector<4x10xf32> to vector<4x10xbf16>
    %c1_108 = arith.constant 1 : index
    %c0_109 = arith.constant 0 : index
    %c0_110 = arith.constant 0 : index
    %158 = vector.load %arg15[%c1_108, %c0_109, %c0_110] : memref<3x8x4xbf16, #tpu.memory_space<vmem>>, vector<1x8x4xbf16>
    %159 = vector.shape_cast %158 : vector<1x8x4xbf16> to vector<8x4xbf16>
    %cst_111 = arith.constant dense<0.000000e+00> : vector<8x10xf32>
    %160 = tpu.matmul %159, %157, %cst_111 {dimension_numbers = #tpu.dot_dimension_numbers<[1], [0], [0], [1], [0, 0, 1, 1], [], []>} : vector<8x4xbf16>, vector<4x10xbf16>, vector<8x10xf32> -> vector<8x10xf32>
    %161 = arith.addf %155, %160 : vector<8x10xf32>
    %162 = vector.extract_strided_slice %150 {offsets = [0, 20], sizes = [4, 10], strides = [1, 1]} : vector<4x30xf32> to vector<4x10xf32>
    %163 = arith.truncf %162 : vector<4x10xf32> to vector<4x10xbf16>
    %c2_112 = arith.constant 2 : index
    %c0_113 = arith.constant 0 : index
    %c0_114 = arith.constant 0 : index
    %164 = vector.load %arg15[%c2_112, %c0_113, %c0_114] : memref<3x8x4xbf16, #tpu.memory_space<vmem>>, vector<1x8x4xbf16>
    %165 = vector.shape_cast %164 : vector<1x8x4xbf16> to vector<8x4xbf16>
    %cst_115 = arith.constant dense<0.000000e+00> : vector<8x10xf32>
    %166 = tpu.matmul %165, %163, %cst_115 {dimension_numbers = #tpu.dot_dimension_numbers<[1], [0], [0], [1], [0, 0, 1, 1], [], []>} : vector<8x4xbf16>, vector<4x10xbf16>, vector<8x10xf32> -> vector<8x10xf32>
    %167 = arith.addf %161, %166 : vector<8x10xf32>
    %cst_116 = arith.constant 0.000000e+00 : f32
    %168 = vector.broadcast %cst_116 : f32 to vector<8x10xf32>
    %169 = arith.cmpf oge, %167, %168 : vector<8x10xf32>
    %cst_117 = arith.constant 0.00999999977 : f32
    %170 = vector.broadcast %cst_117 : f32 to vector<8x10xf32>
    %171 = arith.mulf %170, %167 : vector<8x10xf32>
    %172 = arith.select %169, %167, %171 : vector<8x10xi1>, vector<8x10xf32>
    %173 = arith.truncf %172 : vector<8x10xf32> to vector<8x10xbf16>
    %c0_118 = arith.constant 0 : index
    %c0_119 = arith.constant 0 : index
    %174 = vector.load %arg7[%c0_118, %c0_119] : memref<10x24xbf16, #tpu.memory_space<vmem>>, vector<10x24xbf16>
    %cst_120 = arith.constant dense<0.000000e+00> : vector<8x24xf32>
    %175 = tpu.matmul %173, %174, %cst_120 {dimension_numbers = #tpu.dot_dimension_numbers<[1], [0], [0], [1], [0, 0, 1, 1], [], []>} : vector<8x10xbf16>, vector<10x24xbf16>, vector<8x24xf32> -> vector<8x24xf32>
    %176 = vector.extract_strided_slice %175 {offsets = [0, 0], sizes = [8, 8], strides = [1, 1]} : vector<8x24xf32> to vector<8x8xf32>
    %177 = arith.truncf %176 : vector<8x8xf32> to vector<8x8xbf16>
    %c0_121 = arith.constant 0 : index
    %c0_122 = arith.constant 0 : index
    %c0_123 = arith.constant 0 : index
    %178 = vector.load %arg16[%c0_121, %c0_122, %c0_123] : memref<3x4x8xbf16, #tpu.memory_space<vmem>>, vector<1x4x8xbf16>
    %179 = vector.shape_cast %178 : vector<1x4x8xbf16> to vector<4x8xbf16>
    %cst_124 = arith.constant dense<0.000000e+00> : vector<4x8xf32>
    %180 = tpu.matmul %179, %177, %cst_124 {dimension_numbers = #tpu.dot_dimension_numbers<[1], [0], [0], [1], [0, 0, 1, 1], [], []>} : vector<4x8xbf16>, vector<8x8xbf16>, vector<4x8xf32> -> vector<4x8xf32>
    %181 = vector.extract_strided_slice %175 {offsets = [0, 8], sizes = [8, 8], strides = [1, 1]} : vector<8x24xf32> to vector<8x8xf32>
    %182 = arith.truncf %181 : vector<8x8xf32> to vector<8x8xbf16>
    %c1_125 = arith.constant 1 : index
    %c0_126 = arith.constant 0 : index
    %c0_127 = arith.constant 0 : index
    %183 = vector.load %arg16[%c1_125, %c0_126, %c0_127] : memref<3x4x8xbf16, #tpu.memory_space<vmem>>, vector<1x4x8xbf16>
    %184 = vector.shape_cast %183 : vector<1x4x8xbf16> to vector<4x8xbf16>
    %cst_128 = arith.constant dense<0.000000e+00> : vector<4x8xf32>
    %185 = tpu.matmul %184, %182, %cst_128 {dimension_numbers = #tpu.dot_dimension_numbers<[1], [0], [0], [1], [0, 0, 1, 1], [], []>} : vector<4x8xbf16>, vector<8x8xbf16>, vector<4x8xf32> -> vector<4x8xf32>
    %186 = arith.addf %180, %185 : vector<4x8xf32>
    %187 = vector.extract_strided_slice %175 {offsets = [0, 16], sizes = [8, 8], strides = [1, 1]} : vector<8x24xf32> to vector<8x8xf32>
    %188 = arith.truncf %187 : vector<8x8xf32> to vector<8x8xbf16>
    %c2_129 = arith.constant 2 : index
    %c0_130 = arith.constant 0 : index
    %c0_131 = arith.constant 0 : index
    %189 = vector.load %arg16[%c2_129, %c0_130, %c0_131] : memref<3x4x8xbf16, #tpu.memory_space<vmem>>, vector<1x4x8xbf16>
    %190 = vector.shape_cast %189 : vector<1x4x8xbf16> to vector<4x8xbf16>
    %cst_132 = arith.constant dense<0.000000e+00> : vector<4x8xf32>
    %191 = tpu.matmul %190, %188, %cst_132 {dimension_numbers = #tpu.dot_dimension_numbers<[1], [0], [0], [1], [0, 0, 1, 1], [], []>} : vector<4x8xbf16>, vector<8x8xbf16>, vector<4x8xf32> -> vector<4x8xf32>
    %192 = arith.addf %186, %191 : vector<4x8xf32>
    %193 = math.tanh %192 : vector<4x8xf32>
    %194 = arith.addf %53, %193 : vector<4x8xf32>
    %195 = tpu.concatenate %147, %194 in 1 : vector<4x8xf32>, vector<4x8xf32> -> vector<4x16xf32>
    %196 = arith.truncf %195 : vector<4x16xf32> to vector<4x16xbf16>
    %c0_133 = arith.constant 0 : index
    %c0_134 = arith.constant 0 : index
    %197 = vector.load %arg8[%c0_133, %c0_134] : memref<16x16xbf16, #tpu.memory_space<vmem>>, vector<16x16xbf16>
    %cst_135 = arith.constant dense<0.000000e+00> : vector<4x16xf32>
    %198 = tpu.matmul %196, %197, %cst_135 {dimension_numbers = #tpu.dot_dimension_numbers<[1], [0], [0], [1], [0, 0, 1, 1], [], []>} : vector<4x16xbf16>, vector<16x16xbf16>, vector<4x16xf32> -> vector<4x16xf32>
    %199 = arith.truncf %198 : vector<4x16xf32> to vector<4x16xbf16>
    %c0_136 = arith.constant 0 : index
    %c0_137 = arith.constant 0 : index
    %200 = vector.load %arg17[%c0_136, %c0_137] : memref<16x8xbf16, #tpu.memory_space<vmem>>, vector<16x8xbf16>
    %cst_138 = arith.constant dense<0.000000e+00> : vector<4x8xf32>
    %201 = tpu.matmul %199, %200, %cst_138 {dimension_numbers = #tpu.dot_dimension_numbers<[1], [0], [0], [1], [0, 0, 1, 1], [], []>} : vector<4x16xbf16>, vector<16x8xbf16>, vector<4x8xf32> -> vector<4x8xf32>
    %c0_139 = arith.constant 0 : index
    %c0_140 = arith.constant 0 : index
    %202 = vector.load %arg18[%c0_139, %c0_140] : memref<16x8xbf16, #tpu.memory_space<vmem>>, vector<16x8xbf16>
    %cst_141 = arith.constant dense<0.000000e+00> : vector<4x8xf32>
    %203 = tpu.matmul %199, %202, %cst_141 {dimension_numbers = #tpu.dot_dimension_numbers<[1], [0], [0], [1], [0, 0, 1, 1], [], []>} : vector<4x16xbf16>, vector<16x8xbf16>, vector<4x8xf32> -> vector<4x8xf32>
    %c0_142 = arith.constant 0 : index
    %c0_143 = arith.constant 0 : index
    %204 = vector.load %arg19[%c0_142, %c0_143] : memref<16x36xbf16, #tpu.memory_space<vmem>>, vector<16x36xbf16>
    %cst_144 = arith.constant dense<0.000000e+00> : vector<4x36xf32>
    %205 = tpu.matmul %199, %204, %cst_144 {dimension_numbers = #tpu.dot_dimension_numbers<[1], [0], [0], [1], [0, 0, 1, 1], [], []>} : vector<4x16xbf16>, vector<16x36xbf16>, vector<4x36xf32> -> vector<4x36xf32>
    %206 = vector.extract_strided_slice %205 {offsets = [0, 0], sizes = [4, 12], strides = [1, 1]} : vector<4x36xf32> to vector<4x12xf32>
    %207 = arith.truncf %206 : vector<4x12xf32> to vector<4x12xbf16>
    %c0_145 = arith.constant 0 : index
    %c0_146 = arith.constant 0 : index
    %c0_147 = arith.constant 0 : index
    %208 = vector.load %arg24[%c0_145, %c0_146, %c0_147] : memref<3x8x4xbf16, #tpu.memory_space<vmem>>, vector<1x8x4xbf16>
    %209 = vector.shape_cast %208 : vector<1x8x4xbf16> to vector<8x4xbf16>
    %cst_148 = arith.constant dense<0.000000e+00> : vector<8x12xf32>
    %210 = tpu.matmul %209, %207, %cst_148 {dimension_numbers = #tpu.dot_dimension_numbers<[1], [0], [0], [1], [0, 0, 1, 1], [], []>} : vector<8x4xbf16>, vector<4x12xbf16>, vector<8x12xf32> -> vector<8x12xf32>
    %211 = vector.extract_strided_slice %205 {offsets = [0, 12], sizes = [4, 12], strides = [1, 1]} : vector<4x36xf32> to vector<4x12xf32>
    %212 = arith.truncf %211 : vector<4x12xf32> to vector<4x12xbf16>
    %c1_149 = arith.constant 1 : index
    %c0_150 = arith.constant 0 : index
    %c0_151 = arith.constant 0 : index
    %213 = vector.load %arg24[%c1_149, %c0_150, %c0_151] : memref<3x8x4xbf16, #tpu.memory_space<vmem>>, vector<1x8x4xbf16>
    %214 = vector.shape_cast %213 : vector<1x8x4xbf16> to vector<8x4xbf16>
    %cst_152 = arith.constant dense<0.000000e+00> : vector<8x12xf32>
    %215 = tpu.matmul %214, %212, %cst_152 {dimension_numbers = #tpu.dot_dimension_numbers<[1], [0], [0], [1], [0, 0, 1, 1], [], []>} : vector<8x4xbf16>, vector<4x12xbf16>, vector<8x12xf32> -> vector<8x12xf32>
    %216 = arith.addf %210, %215 : vector<8x12xf32>
    %217 = vector.extract_strided_slice %205 {offsets = [0, 24], sizes = [4, 12], strides = [1, 1]} : vector<4x36xf32> to vector<4x12xf32>
    %218 = arith.truncf %217 : vector<4x12xf32> to vector<4x12xbf16>
    %c2_153 = arith.constant 2 : index
    %c0_154 = arith.constant 0 : index
    %c0_155 = arith.constant 0 : index
    %219 = vector.load %arg24[%c2_153, %c0_154, %c0_155] : memref<3x8x4xbf16, #tpu.memory_space<vmem>>, vector<1x8x4xbf16>
    %220 = vector.shape_cast %219 : vector<1x8x4xbf16> to vector<8x4xbf16>
    %cst_156 = arith.constant dense<0.000000e+00> : vector<8x12xf32>
    %221 = tpu.matmul %220, %218, %cst_156 {dimension_numbers = #tpu.dot_dimension_numbers<[1], [0], [0], [1], [0, 0, 1, 1], [], []>} : vector<8x4xbf16>, vector<4x12xbf16>, vector<8x12xf32> -> vector<8x12xf32>
    %222 = arith.addf %216, %221 : vector<8x12xf32>
    %cst_157 = arith.constant 0.000000e+00 : f32
    %223 = vector.broadcast %cst_157 : f32 to vector<8x12xf32>
    %224 = arith.cmpf oge, %222, %223 : vector<8x12xf32>
    %cst_158 = arith.constant 0.00999999977 : f32
    %225 = vector.broadcast %cst_158 : f32 to vector<8x12xf32>
    %226 = arith.mulf %225, %222 : vector<8x12xf32>
    %227 = arith.select %224, %222, %226 : vector<8x12xi1>, vector<8x12xf32>
    %228 = arith.truncf %227 : vector<8x12xf32> to vector<8x12xbf16>
    %c0_159 = arith.constant 0 : index
    %c0_160 = arith.constant 0 : index
    %229 = vector.load %arg22[%c0_159, %c0_160] : memref<12x24xbf16, #tpu.memory_space<vmem>>, vector<12x24xbf16>
    %cst_161 = arith.constant dense<0.000000e+00> : vector<8x24xf32>
    %230 = tpu.matmul %228, %229, %cst_161 {dimension_numbers = #tpu.dot_dimension_numbers<[1], [0], [0], [1], [0, 0, 1, 1], [], []>} : vector<8x12xbf16>, vector<12x24xbf16>, vector<8x24xf32> -> vector<8x24xf32>
    %231 = vector.extract_strided_slice %230 {offsets = [0, 0], sizes = [8, 8], strides = [1, 1]} : vector<8x24xf32> to vector<8x8xf32>
    %232 = arith.truncf %231 : vector<8x8xf32> to vector<8x8xbf16>
    %c0_162 = arith.constant 0 : index
    %c0_163 = arith.constant 0 : index
    %c0_164 = arith.constant 0 : index
    %233 = vector.load %arg25[%c0_162, %c0_163, %c0_164] : memref<3x4x8xbf16, #tpu.memory_space<vmem>>, vector<1x4x8xbf16>
    %234 = vector.shape_cast %233 : vector<1x4x8xbf16> to vector<4x8xbf16>
    %cst_165 = arith.constant dense<0.000000e+00> : vector<4x8xf32>
    %235 = tpu.matmul %234, %232, %cst_165 {dimension_numbers = #tpu.dot_dimension_numbers<[1], [0], [0], [1], [0, 0, 1, 1], [], []>} : vector<4x8xbf16>, vector<8x8xbf16>, vector<4x8xf32> -> vector<4x8xf32>
    %236 = vector.extract_strided_slice %230 {offsets = [0, 8], sizes = [8, 8], strides = [1, 1]} : vector<8x24xf32> to vector<8x8xf32>
    %237 = arith.truncf %236 : vector<8x8xf32> to vector<8x8xbf16>
    %c1_166 = arith.constant 1 : index
    %c0_167 = arith.constant 0 : index
    %c0_168 = arith.constant 0 : index
    %238 = vector.load %arg25[%c1_166, %c0_167, %c0_168] : memref<3x4x8xbf16, #tpu.memory_space<vmem>>, vector<1x4x8xbf16>
    %239 = vector.shape_cast %238 : vector<1x4x8xbf16> to vector<4x8xbf16>
    %cst_169 = arith.constant dense<0.000000e+00> : vector<4x8xf32>
    %240 = tpu.matmul %239, %237, %cst_169 {dimension_numbers = #tpu.dot_dimension_numbers<[1], [0], [0], [1], [0, 0, 1, 1], [], []>} : vector<4x8xbf16>, vector<8x8xbf16>, vector<4x8xf32> -> vector<4x8xf32>
    %241 = arith.addf %235, %240 : vector<4x8xf32>
    %242 = vector.extract_strided_slice %230 {offsets = [0, 16], sizes = [8, 8], strides = [1, 1]} : vector<8x24xf32> to vector<8x8xf32>
    %243 = arith.truncf %242 : vector<8x8xf32> to vector<8x8xbf16>
    %c2_170 = arith.constant 2 : index
    %c0_171 = arith.constant 0 : index
    %c0_172 = arith.constant 0 : index
    %244 = vector.load %arg25[%c2_170, %c0_171, %c0_172] : memref<3x4x8xbf16, #tpu.memory_space<vmem>>, vector<1x4x8xbf16>
    %245 = vector.shape_cast %244 : vector<1x4x8xbf16> to vector<4x8xbf16>
    %cst_173 = arith.constant dense<0.000000e+00> : vector<4x8xf32>
    %246 = tpu.matmul %245, %243, %cst_173 {dimension_numbers = #tpu.dot_dimension_numbers<[1], [0], [0], [1], [0, 0, 1, 1], [], []>} : vector<4x8xbf16>, vector<8x8xbf16>, vector<4x8xf32> -> vector<4x8xf32>
    %247 = arith.addf %241, %246 : vector<4x8xf32>
    %248 = math.tanh %247 : vector<4x8xf32>
    %249 = math.exp %248 : vector<4x8xf32>
    %250 = arith.mulf %203, %249 : vector<4x8xf32>
    %c0_174 = arith.constant 0 : index
    %c0_175 = arith.constant 0 : index
    %251 = vector.load %arg20[%c0_174, %c0_175] : memref<16x36xbf16, #tpu.memory_space<vmem>>, vector<16x36xbf16>
    %cst_176 = arith.constant dense<0.000000e+00> : vector<4x36xf32>
    %252 = tpu.matmul %199, %251, %cst_176 {dimension_numbers = #tpu.dot_dimension_numbers<[1], [0], [0], [1], [0, 0, 1, 1], [], []>} : vector<4x16xbf16>, vector<16x36xbf16>, vector<4x36xf32> -> vector<4x36xf32>
    %253 = vector.extract_strided_slice %252 {offsets = [0, 0], sizes = [4, 12], strides = [1, 1]} : vector<4x36xf32> to vector<4x12xf32>
    %254 = arith.truncf %253 : vector<4x12xf32> to vector<4x12xbf16>
    %c0_177 = arith.constant 0 : index
    %c0_178 = arith.constant 0 : index
    %c0_179 = arith.constant 0 : index
    %255 = vector.load %arg26[%c0_177, %c0_178, %c0_179] : memref<3x8x4xbf16, #tpu.memory_space<vmem>>, vector<1x8x4xbf16>
    %256 = vector.shape_cast %255 : vector<1x8x4xbf16> to vector<8x4xbf16>
    %cst_180 = arith.constant dense<0.000000e+00> : vector<8x12xf32>
    %257 = tpu.matmul %256, %254, %cst_180 {dimension_numbers = #tpu.dot_dimension_numbers<[1], [0], [0], [1], [0, 0, 1, 1], [], []>} : vector<8x4xbf16>, vector<4x12xbf16>, vector<8x12xf32> -> vector<8x12xf32>
    %258 = vector.extract_strided_slice %252 {offsets = [0, 12], sizes = [4, 12], strides = [1, 1]} : vector<4x36xf32> to vector<4x12xf32>
    %259 = arith.truncf %258 : vector<4x12xf32> to vector<4x12xbf16>
    %c1_181 = arith.constant 1 : index
    %c0_182 = arith.constant 0 : index
    %c0_183 = arith.constant 0 : index
    %260 = vector.load %arg26[%c1_181, %c0_182, %c0_183] : memref<3x8x4xbf16, #tpu.memory_space<vmem>>, vector<1x8x4xbf16>
    %261 = vector.shape_cast %260 : vector<1x8x4xbf16> to vector<8x4xbf16>
    %cst_184 = arith.constant dense<0.000000e+00> : vector<8x12xf32>
    %262 = tpu.matmul %261, %259, %cst_184 {dimension_numbers = #tpu.dot_dimension_numbers<[1], [0], [0], [1], [0, 0, 1, 1], [], []>} : vector<8x4xbf16>, vector<4x12xbf16>, vector<8x12xf32> -> vector<8x12xf32>
    %263 = arith.addf %257, %262 : vector<8x12xf32>
    %264 = vector.extract_strided_slice %252 {offsets = [0, 24], sizes = [4, 12], strides = [1, 1]} : vector<4x36xf32> to vector<4x12xf32>
    %265 = arith.truncf %264 : vector<4x12xf32> to vector<4x12xbf16>
    %c2_185 = arith.constant 2 : index
    %c0_186 = arith.constant 0 : index
    %c0_187 = arith.constant 0 : index
    %266 = vector.load %arg26[%c2_185, %c0_186, %c0_187] : memref<3x8x4xbf16, #tpu.memory_space<vmem>>, vector<1x8x4xbf16>
    %267 = vector.shape_cast %266 : vector<1x8x4xbf16> to vector<8x4xbf16>
    %cst_188 = arith.constant dense<0.000000e+00> : vector<8x12xf32>
    %268 = tpu.matmul %267, %265, %cst_188 {dimension_numbers = #tpu.dot_dimension_numbers<[1], [0], [0], [1], [0, 0, 1, 1], [], []>} : vector<8x4xbf16>, vector<4x12xbf16>, vector<8x12xf32> -> vector<8x12xf32>
    %269 = arith.addf %263, %268 : vector<8x12xf32>
    %cst_189 = arith.constant 0.000000e+00 : f32
    %270 = vector.broadcast %cst_189 : f32 to vector<8x12xf32>
    %271 = arith.cmpf oge, %269, %270 : vector<8x12xf32>
    %cst_190 = arith.constant 0.00999999977 : f32
    %272 = vector.broadcast %cst_190 : f32 to vector<8x12xf32>
    %273 = arith.mulf %272, %269 : vector<8x12xf32>
    %274 = arith.select %271, %269, %273 : vector<8x12xi1>, vector<8x12xf32>
    %275 = arith.truncf %274 : vector<8x12xf32> to vector<8x12xbf16>
    %c0_191 = arith.constant 0 : index
    %c0_192 = arith.constant 0 : index
    %276 = vector.load %arg22[%c0_191, %c0_192] : memref<12x24xbf16, #tpu.memory_space<vmem>>, vector<12x24xbf16>
    %cst_193 = arith.constant dense<0.000000e+00> : vector<8x24xf32>
    %277 = tpu.matmul %275, %276, %cst_193 {dimension_numbers = #tpu.dot_dimension_numbers<[1], [0], [0], [1], [0, 0, 1, 1], [], []>} : vector<8x12xbf16>, vector<12x24xbf16>, vector<8x24xf32> -> vector<8x24xf32>
    %278 = vector.extract_strided_slice %277 {offsets = [0, 0], sizes = [8, 8], strides = [1, 1]} : vector<8x24xf32> to vector<8x8xf32>
    %279 = arith.truncf %278 : vector<8x8xf32> to vector<8x8xbf16>
    %c0_194 = arith.constant 0 : index
    %c0_195 = arith.constant 0 : index
    %c0_196 = arith.constant 0 : index
    %280 = vector.load %arg27[%c0_194, %c0_195, %c0_196] : memref<3x4x8xbf16, #tpu.memory_space<vmem>>, vector<1x4x8xbf16>
    %281 = vector.shape_cast %280 : vector<1x4x8xbf16> to vector<4x8xbf16>
    %cst_197 = arith.constant dense<0.000000e+00> : vector<4x8xf32>
    %282 = tpu.matmul %281, %279, %cst_197 {dimension_numbers = #tpu.dot_dimension_numbers<[1], [0], [0], [1], [0, 0, 1, 1], [], []>} : vector<4x8xbf16>, vector<8x8xbf16>, vector<4x8xf32> -> vector<4x8xf32>
    %283 = vector.extract_strided_slice %277 {offsets = [0, 8], sizes = [8, 8], strides = [1, 1]} : vector<8x24xf32> to vector<8x8xf32>
    %284 = arith.truncf %283 : vector<8x8xf32> to vector<8x8xbf16>
    %c1_198 = arith.constant 1 : index
    %c0_199 = arith.constant 0 : index
    %c0_200 = arith.constant 0 : index
    %285 = vector.load %arg27[%c1_198, %c0_199, %c0_200] : memref<3x4x8xbf16, #tpu.memory_space<vmem>>, vector<1x4x8xbf16>
    %286 = vector.shape_cast %285 : vector<1x4x8xbf16> to vector<4x8xbf16>
    %cst_201 = arith.constant dense<0.000000e+00> : vector<4x8xf32>
    %287 = tpu.matmul %286, %284, %cst_201 {dimension_numbers = #tpu.dot_dimension_numbers<[1], [0], [0], [1], [0, 0, 1, 1], [], []>} : vector<4x8xbf16>, vector<8x8xbf16>, vector<4x8xf32> -> vector<4x8xf32>
    %288 = arith.addf %282, %287 : vector<4x8xf32>
    %289 = vector.extract_strided_slice %277 {offsets = [0, 16], sizes = [8, 8], strides = [1, 1]} : vector<8x24xf32> to vector<8x8xf32>
    %290 = arith.truncf %289 : vector<8x8xf32> to vector<8x8xbf16>
    %c2_202 = arith.constant 2 : index
    %c0_203 = arith.constant 0 : index
    %c0_204 = arith.constant 0 : index
    %291 = vector.load %arg27[%c2_202, %c0_203, %c0_204] : memref<3x4x8xbf16, #tpu.memory_space<vmem>>, vector<1x4x8xbf16>
    %292 = vector.shape_cast %291 : vector<1x4x8xbf16> to vector<4x8xbf16>
    %cst_205 = arith.constant dense<0.000000e+00> : vector<4x8xf32>
    %293 = tpu.matmul %292, %290, %cst_205 {dimension_numbers = #tpu.dot_dimension_numbers<[1], [0], [0], [1], [0, 0, 1, 1], [], []>} : vector<4x8xbf16>, vector<8x8xbf16>, vector<4x8xf32> -> vector<4x8xf32>
    %294 = arith.addf %288, %293 : vector<4x8xf32>
    %295 = math.tanh %294 : vector<4x8xf32>
    %296 = math.exp %295 : vector<4x8xf32>
    %297 = arith.mulf %201, %296 : vector<4x8xf32>
    %298 = arith.truncf %297 : vector<4x8xf32> to vector<4x8xbf16>
    %c0_206 = arith.constant 0 : index
    %c0_207 = arith.constant 0 : index
    %299 = vector.load %arg21[%c0_206, %c0_207] : memref<8x36xbf16, #tpu.memory_space<vmem>>, vector<8x36xbf16>
    %cst_208 = arith.constant dense<0.000000e+00> : vector<4x36xf32>
    %300 = tpu.matmul %298, %299, %cst_208 {dimension_numbers = #tpu.dot_dimension_numbers<[1], [0], [0], [1], [0, 0, 1, 1], [], []>} : vector<4x8xbf16>, vector<8x36xbf16>, vector<4x36xf32> -> vector<4x36xf32>
    %301 = vector.extract_strided_slice %300 {offsets = [0, 0], sizes = [4, 12], strides = [1, 1]} : vector<4x36xf32> to vector<4x12xf32>
    %302 = arith.truncf %301 : vector<4x12xf32> to vector<4x12xbf16>
    %c0_209 = arith.constant 0 : index
    %c0_210 = arith.constant 0 : index
    %c0_211 = arith.constant 0 : index
    %303 = vector.load %arg28[%c0_209, %c0_210, %c0_211] : memref<3x8x4xbf16, #tpu.memory_space<vmem>>, vector<1x8x4xbf16>
    %304 = vector.shape_cast %303 : vector<1x8x4xbf16> to vector<8x4xbf16>
    %cst_212 = arith.constant dense<0.000000e+00> : vector<8x12xf32>
    %305 = tpu.matmul %304, %302, %cst_212 {dimension_numbers = #tpu.dot_dimension_numbers<[1], [0], [0], [1], [0, 0, 1, 1], [], []>} : vector<8x4xbf16>, vector<4x12xbf16>, vector<8x12xf32> -> vector<8x12xf32>
    %306 = vector.extract_strided_slice %300 {offsets = [0, 12], sizes = [4, 12], strides = [1, 1]} : vector<4x36xf32> to vector<4x12xf32>
    %307 = arith.truncf %306 : vector<4x12xf32> to vector<4x12xbf16>
    %c1_213 = arith.constant 1 : index
    %c0_214 = arith.constant 0 : index
    %c0_215 = arith.constant 0 : index
    %308 = vector.load %arg28[%c1_213, %c0_214, %c0_215] : memref<3x8x4xbf16, #tpu.memory_space<vmem>>, vector<1x8x4xbf16>
    %309 = vector.shape_cast %308 : vector<1x8x4xbf16> to vector<8x4xbf16>
    %cst_216 = arith.constant dense<0.000000e+00> : vector<8x12xf32>
    %310 = tpu.matmul %309, %307, %cst_216 {dimension_numbers = #tpu.dot_dimension_numbers<[1], [0], [0], [1], [0, 0, 1, 1], [], []>} : vector<8x4xbf16>, vector<4x12xbf16>, vector<8x12xf32> -> vector<8x12xf32>
    %311 = arith.addf %305, %310 : vector<8x12xf32>
    %312 = vector.extract_strided_slice %300 {offsets = [0, 24], sizes = [4, 12], strides = [1, 1]} : vector<4x36xf32> to vector<4x12xf32>
    %313 = arith.truncf %312 : vector<4x12xf32> to vector<4x12xbf16>
    %c2_217 = arith.constant 2 : index
    %c0_218 = arith.constant 0 : index
    %c0_219 = arith.constant 0 : index
    %314 = vector.load %arg28[%c2_217, %c0_218, %c0_219] : memref<3x8x4xbf16, #tpu.memory_space<vmem>>, vector<1x8x4xbf16>
    %315 = vector.shape_cast %314 : vector<1x8x4xbf16> to vector<8x4xbf16>
    %cst_220 = arith.constant dense<0.000000e+00> : vector<8x12xf32>
    %316 = tpu.matmul %315, %313, %cst_220 {dimension_numbers = #tpu.dot_dimension_numbers<[1], [0], [0], [1], [0, 0, 1, 1], [], []>} : vector<8x4xbf16>, vector<4x12xbf16>, vector<8x12xf32> -> vector<8x12xf32>
    %317 = arith.addf %311, %316 : vector<8x12xf32>
    %cst_221 = arith.constant 0.000000e+00 : f32
    %318 = vector.broadcast %cst_221 : f32 to vector<8x12xf32>
    %319 = arith.cmpf oge, %317, %318 : vector<8x12xf32>
    %cst_222 = arith.constant 0.00999999977 : f32
    %320 = vector.broadcast %cst_222 : f32 to vector<8x12xf32>
    %321 = arith.mulf %320, %317 : vector<8x12xf32>
    %322 = arith.select %319, %317, %321 : vector<8x12xi1>, vector<8x12xf32>
    %323 = arith.truncf %322 : vector<8x12xf32> to vector<8x12xbf16>
    %c0_223 = arith.constant 0 : index
    %c0_224 = arith.constant 0 : index
    %324 = vector.load %arg22[%c0_223, %c0_224] : memref<12x24xbf16, #tpu.memory_space<vmem>>, vector<12x24xbf16>
    %cst_225 = arith.constant dense<0.000000e+00> : vector<8x24xf32>
    %325 = tpu.matmul %323, %324, %cst_225 {dimension_numbers = #tpu.dot_dimension_numbers<[1], [0], [0], [1], [0, 0, 1, 1], [], []>} : vector<8x12xbf16>, vector<12x24xbf16>, vector<8x24xf32> -> vector<8x24xf32>
    %326 = vector.extract_strided_slice %325 {offsets = [0, 0], sizes = [8, 8], strides = [1, 1]} : vector<8x24xf32> to vector<8x8xf32>
    %327 = arith.truncf %326 : vector<8x8xf32> to vector<8x8xbf16>
    %c0_226 = arith.constant 0 : index
    %c0_227 = arith.constant 0 : index
    %c0_228 = arith.constant 0 : index
    %328 = vector.load %arg29[%c0_226, %c0_227, %c0_228] : memref<3x4x8xbf16, #tpu.memory_space<vmem>>, vector<1x4x8xbf16>
    %329 = vector.shape_cast %328 : vector<1x4x8xbf16> to vector<4x8xbf16>
    %cst_229 = arith.constant dense<0.000000e+00> : vector<4x8xf32>
    %330 = tpu.matmul %329, %327, %cst_229 {dimension_numbers = #tpu.dot_dimension_numbers<[1], [0], [0], [1], [0, 0, 1, 1], [], []>} : vector<4x8xbf16>, vector<8x8xbf16>, vector<4x8xf32> -> vector<4x8xf32>
    %331 = vector.extract_strided_slice %325 {offsets = [0, 8], sizes = [8, 8], strides = [1, 1]} : vector<8x24xf32> to vector<8x8xf32>
    %332 = arith.truncf %331 : vector<8x8xf32> to vector<8x8xbf16>
    %c1_230 = arith.constant 1 : index
    %c0_231 = arith.constant 0 : index
    %c0_232 = arith.constant 0 : index
    %333 = vector.load %arg29[%c1_230, %c0_231, %c0_232] : memref<3x4x8xbf16, #tpu.memory_space<vmem>>, vector<1x4x8xbf16>
    %334 = vector.shape_cast %333 : vector<1x4x8xbf16> to vector<4x8xbf16>
    %cst_233 = arith.constant dense<0.000000e+00> : vector<4x8xf32>
    %335 = tpu.matmul %334, %332, %cst_233 {dimension_numbers = #tpu.dot_dimension_numbers<[1], [0], [0], [1], [0, 0, 1, 1], [], []>} : vector<4x8xbf16>, vector<8x8xbf16>, vector<4x8xf32> -> vector<4x8xf32>
    %336 = arith.addf %330, %335 : vector<4x8xf32>
    %337 = vector.extract_strided_slice %325 {offsets = [0, 16], sizes = [8, 8], strides = [1, 1]} : vector<8x24xf32> to vector<8x8xf32>
    %338 = arith.truncf %337 : vector<8x8xf32> to vector<8x8xbf16>
    %c2_234 = arith.constant 2 : index
    %c0_235 = arith.constant 0 : index
    %c0_236 = arith.constant 0 : index
    %339 = vector.load %arg29[%c2_234, %c0_235, %c0_236] : memref<3x4x8xbf16, #tpu.memory_space<vmem>>, vector<1x4x8xbf16>
    %340 = vector.shape_cast %339 : vector<1x4x8xbf16> to vector<4x8xbf16>
    %cst_237 = arith.constant dense<0.000000e+00> : vector<4x8xf32>
    %341 = tpu.matmul %340, %338, %cst_237 {dimension_numbers = #tpu.dot_dimension_numbers<[1], [0], [0], [1], [0, 0, 1, 1], [], []>} : vector<4x8xbf16>, vector<8x8xbf16>, vector<4x8xf32> -> vector<4x8xf32>
    %342 = arith.addf %336, %341 : vector<4x8xf32>
    %343 = math.tanh %342 : vector<4x8xf32>
    %344 = arith.subf %297, %343 : vector<4x8xf32>
    %345 = arith.truncf %250 : vector<4x8xf32> to vector<4x8xbf16>
    %c0_238 = arith.constant 0 : index
    %c0_239 = arith.constant 0 : index
    %346 = vector.load %arg21[%c0_238, %c0_239] : memref<8x36xbf16, #tpu.memory_space<vmem>>, vector<8x36xbf16>
    %cst_240 = arith.constant dense<0.000000e+00> : vector<4x36xf32>
    %347 = tpu.matmul %345, %346, %cst_240 {dimension_numbers = #tpu.dot_dimension_numbers<[1], [0], [0], [1], [0, 0, 1, 1], [], []>} : vector<4x8xbf16>, vector<8x36xbf16>, vector<4x36xf32> -> vector<4x36xf32>
    %348 = vector.extract_strided_slice %347 {offsets = [0, 0], sizes = [4, 12], strides = [1, 1]} : vector<4x36xf32> to vector<4x12xf32>
    %349 = arith.truncf %348 : vector<4x12xf32> to vector<4x12xbf16>
    %c0_241 = arith.constant 0 : index
    %c0_242 = arith.constant 0 : index
    %c0_243 = arith.constant 0 : index
    %350 = vector.load %arg30[%c0_241, %c0_242, %c0_243] : memref<3x8x4xbf16, #tpu.memory_space<vmem>>, vector<1x8x4xbf16>
    %351 = vector.shape_cast %350 : vector<1x8x4xbf16> to vector<8x4xbf16>
    %cst_244 = arith.constant dense<0.000000e+00> : vector<8x12xf32>
    %352 = tpu.matmul %351, %349, %cst_244 {dimension_numbers = #tpu.dot_dimension_numbers<[1], [0], [0], [1], [0, 0, 1, 1], [], []>} : vector<8x4xbf16>, vector<4x12xbf16>, vector<8x12xf32> -> vector<8x12xf32>
    %353 = vector.extract_strided_slice %347 {offsets = [0, 12], sizes = [4, 12], strides = [1, 1]} : vector<4x36xf32> to vector<4x12xf32>
    %354 = arith.truncf %353 : vector<4x12xf32> to vector<4x12xbf16>
    %c1_245 = arith.constant 1 : index
    %c0_246 = arith.constant 0 : index
    %c0_247 = arith.constant 0 : index
    %355 = vector.load %arg30[%c1_245, %c0_246, %c0_247] : memref<3x8x4xbf16, #tpu.memory_space<vmem>>, vector<1x8x4xbf16>
    %356 = vector.shape_cast %355 : vector<1x8x4xbf16> to vector<8x4xbf16>
    %cst_248 = arith.constant dense<0.000000e+00> : vector<8x12xf32>
    %357 = tpu.matmul %356, %354, %cst_248 {dimension_numbers = #tpu.dot_dimension_numbers<[1], [0], [0], [1], [0, 0, 1, 1], [], []>} : vector<8x4xbf16>, vector<4x12xbf16>, vector<8x12xf32> -> vector<8x12xf32>
    %358 = arith.addf %352, %357 : vector<8x12xf32>
    %359 = vector.extract_strided_slice %347 {offsets = [0, 24], sizes = [4, 12], strides = [1, 1]} : vector<4x36xf32> to vector<4x12xf32>
    %360 = arith.truncf %359 : vector<4x12xf32> to vector<4x12xbf16>
    %c2_249 = arith.constant 2 : index
    %c0_250 = arith.constant 0 : index
    %c0_251 = arith.constant 0 : index
    %361 = vector.load %arg30[%c2_249, %c0_250, %c0_251] : memref<3x8x4xbf16, #tpu.memory_space<vmem>>, vector<1x8x4xbf16>
    %362 = vector.shape_cast %361 : vector<1x8x4xbf16> to vector<8x4xbf16>
    %cst_252 = arith.constant dense<0.000000e+00> : vector<8x12xf32>
    %363 = tpu.matmul %362, %360, %cst_252 {dimension_numbers = #tpu.dot_dimension_numbers<[1], [0], [0], [1], [0, 0, 1, 1], [], []>} : vector<8x4xbf16>, vector<4x12xbf16>, vector<8x12xf32> -> vector<8x12xf32>
    %364 = arith.addf %358, %363 : vector<8x12xf32>
    %cst_253 = arith.constant 0.000000e+00 : f32
    %365 = vector.broadcast %cst_253 : f32 to vector<8x12xf32>
    %366 = arith.cmpf oge, %364, %365 : vector<8x12xf32>
    %cst_254 = arith.constant 0.00999999977 : f32
    %367 = vector.broadcast %cst_254 : f32 to vector<8x12xf32>
    %368 = arith.mulf %367, %364 : vector<8x12xf32>
    %369 = arith.select %366, %364, %368 : vector<8x12xi1>, vector<8x12xf32>
    %370 = arith.truncf %369 : vector<8x12xf32> to vector<8x12xbf16>
    %c0_255 = arith.constant 0 : index
    %c0_256 = arith.constant 0 : index
    %371 = vector.load %arg22[%c0_255, %c0_256] : memref<12x24xbf16, #tpu.memory_space<vmem>>, vector<12x24xbf16>
    %cst_257 = arith.constant dense<0.000000e+00> : vector<8x24xf32>
    %372 = tpu.matmul %370, %371, %cst_257 {dimension_numbers = #tpu.dot_dimension_numbers<[1], [0], [0], [1], [0, 0, 1, 1], [], []>} : vector<8x12xbf16>, vector<12x24xbf16>, vector<8x24xf32> -> vector<8x24xf32>
    %373 = vector.extract_strided_slice %372 {offsets = [0, 0], sizes = [8, 8], strides = [1, 1]} : vector<8x24xf32> to vector<8x8xf32>
    %374 = arith.truncf %373 : vector<8x8xf32> to vector<8x8xbf16>
    %c0_258 = arith.constant 0 : index
    %c0_259 = arith.constant 0 : index
    %c0_260 = arith.constant 0 : index
    %375 = vector.load %arg31[%c0_258, %c0_259, %c0_260] : memref<3x4x8xbf16, #tpu.memory_space<vmem>>, vector<1x4x8xbf16>
    %376 = vector.shape_cast %375 : vector<1x4x8xbf16> to vector<4x8xbf16>
    %cst_261 = arith.constant dense<0.000000e+00> : vector<4x8xf32>
    %377 = tpu.matmul %376, %374, %cst_261 {dimension_numbers = #tpu.dot_dimension_numbers<[1], [0], [0], [1], [0, 0, 1, 1], [], []>} : vector<4x8xbf16>, vector<8x8xbf16>, vector<4x8xf32> -> vector<4x8xf32>
    %378 = vector.extract_strided_slice %372 {offsets = [0, 8], sizes = [8, 8], strides = [1, 1]} : vector<8x24xf32> to vector<8x8xf32>
    %379 = arith.truncf %378 : vector<8x8xf32> to vector<8x8xbf16>
    %c1_262 = arith.constant 1 : index
    %c0_263 = arith.constant 0 : index
    %c0_264 = arith.constant 0 : index
    %380 = vector.load %arg31[%c1_262, %c0_263, %c0_264] : memref<3x4x8xbf16, #tpu.memory_space<vmem>>, vector<1x4x8xbf16>
    %381 = vector.shape_cast %380 : vector<1x4x8xbf16> to vector<4x8xbf16>
    %cst_265 = arith.constant dense<0.000000e+00> : vector<4x8xf32>
    %382 = tpu.matmul %381, %379, %cst_265 {dimension_numbers = #tpu.dot_dimension_numbers<[1], [0], [0], [1], [0, 0, 1, 1], [], []>} : vector<4x8xbf16>, vector<8x8xbf16>, vector<4x8xf32> -> vector<4x8xf32>
    %383 = arith.addf %377, %382 : vector<4x8xf32>
    %384 = vector.extract_strided_slice %372 {offsets = [0, 16], sizes = [8, 8], strides = [1, 1]} : vector<8x24xf32> to vector<8x8xf32>
    %385 = arith.truncf %384 : vector<8x8xf32> to vector<8x8xbf16>
    %c2_266 = arith.constant 2 : index
    %c0_267 = arith.constant 0 : index
    %c0_268 = arith.constant 0 : index
    %386 = vector.load %arg31[%c2_266, %c0_267, %c0_268] : memref<3x4x8xbf16, #tpu.memory_space<vmem>>, vector<1x4x8xbf16>
    %387 = vector.shape_cast %386 : vector<1x4x8xbf16> to vector<4x8xbf16>
    %cst_269 = arith.constant dense<0.000000e+00> : vector<4x8xf32>
    %388 = tpu.matmul %387, %385, %cst_269 {dimension_numbers = #tpu.dot_dimension_numbers<[1], [0], [0], [1], [0, 0, 1, 1], [], []>} : vector<4x8xbf16>, vector<8x8xbf16>, vector<4x8xf32> -> vector<4x8xf32>
    %389 = arith.addf %383, %388 : vector<4x8xf32>
    %390 = math.tanh %389 : vector<4x8xf32>
    %391 = arith.addf %250, %390 : vector<4x8xf32>
    %392 = tpu.concatenate %344, %391 in 1 : vector<4x8xf32>, vector<4x8xf32> -> vector<4x16xf32>
    %393 = arith.truncf %392 : vector<4x16xf32> to vector<4x16xbf16>
    %c0_270 = arith.constant 0 : index
    %c0_271 = arith.constant 0 : index
    %394 = vector.load %arg23[%c0_270, %c0_271] : memref<16x16xbf16, #tpu.memory_space<vmem>>, vector<16x16xbf16>
    %cst_272 = arith.constant dense<0.000000e+00> : vector<4x16xf32>
    %395 = tpu.matmul %393, %394, %cst_272 {dimension_numbers = #tpu.dot_dimension_numbers<[1], [0], [0], [1], [0, 0, 1, 1], [], []>} : vector<4x16xbf16>, vector<16x16xbf16>, vector<4x16xf32> -> vector<4x16xf32>
    %396 = arith.addf %395, %1 : vector<4x16xf32>
    %c0_273 = arith.constant 0 : index
    %c0_274 = arith.constant 0 : index
    %397 = vector.load %arg32[%c0_273, %c0_274] : memref<16x50xbf16, #tpu.memory_space<vmem>>, vector<16x50xbf16>
    %c0_275 = arith.constant 0 : index
    %c0_276 = arith.constant 0 : index
    %398 = vector.load %arg33[%c0_275, %c0_276] : memref<1x50xf32, #tpu.memory_space<vmem>>, vector<1x50xf32>
    %c0_277 = arith.constant 0 : index
    %c0_278 = arith.constant 0 : index
    %399 = vector.load %arg34[%c0_277, %c0_278] : memref<50x8xbf16, #tpu.memory_space<vmem>>, vector<50x8xbf16>
    %c0_279 = arith.constant 0 : index
    %c0_280 = arith.constant 0 : index
    %400 = vector.load %arg35[%c0_279, %c0_280] : memref<1x8xf32, #tpu.memory_space<vmem>>, vector<1x8xf32>
    %401 = arith.truncf %396 : vector<4x16xf32> to vector<4x16xbf16>
    %cst_281 = arith.constant dense<0.000000e+00> : vector<4x50xf32>
    %402 = tpu.matmul %401, %397, %cst_281 {dimension_numbers = #tpu.dot_dimension_numbers<[1], [0], [0], [1], [0, 0, 1, 1], [], []>} : vector<4x16xbf16>, vector<16x50xbf16>, vector<4x50xf32> -> vector<4x50xf32>
    %403 = vector.broadcast %398 : vector<1x50xf32> to vector<4x50xf32>
    %404 = arith.addf %402, %403 : vector<4x50xf32>
    %cst_282 = arith.constant 0.000000e+00 : f32
    %405 = vector.broadcast %cst_282 : f32 to vector<4x50xf32>
    %406 = arith.maximumf %404, %405 : vector<4x50xf32>
    %407 = arith.truncf %406 : vector<4x50xf32> to vector<4x50xbf16>
    %cst_283 = arith.constant dense<0.000000e+00> : vector<4x8xf32>
    %408 = tpu.matmul %407, %399, %cst_283 {dimension_numbers = #tpu.dot_dimension_numbers<[1], [0], [0], [1], [0, 0, 1, 1], [], []>} : vector<4x50xbf16>, vector<50x8xbf16>, vector<4x8xf32> -> vector<4x8xf32>
    %409 = vector.broadcast %400 : vector<1x8xf32> to vector<4x8xf32>
    %410 = arith.addf %408, %409 : vector<4x8xf32>
    %c0_284 = arith.constant 0 : index
    %c0_285 = arith.constant 0 : index
    %c0_286 = arith.constant 0 : index
    %411 = vector.load %arg36[%c0_284, %c0_285, %c0_286] : memref<1x4x8xf32, #tpu.memory_space<vmem>>, vector<1x4x8xf32>
    %412 = vector.shape_cast %411 : vector<1x4x8xf32> to vector<4x8xf32>
    %413 = vector.shape_cast %410 : vector<4x8xf32> to vector<1x4x8xf32>
    tpu.vector_store %arg36[%c0_284, %c0_285, %c0_286], %413 {strides = array<i32>} : memref<1x4x8xf32, #tpu.memory_space<vmem>>, vector<1x4x8xf32>,
    return
  }
  func.func @transform_0(%arg0: i32) -> (i32, i32, i32) {
    %c0_i32 = arith.constant 0 : i32
    %c0_i32_0 = arith.constant 0 : i32
    %c0_i32_1 = arith.constant 0 : i32
    return %arg0, %c0_i32, %c0_i32_0 : i32, i32, i32
  }
  func.func @transform_1(%arg0: i32) -> (i32, i32) {
    %c0_i32 = arith.constant 0 : i32
    %c0_i32_0 = arith.constant 0 : i32
    %c0_i32_1 = arith.constant 0 : i32
    return %c0_i32, %c0_i32_0 : i32, i32
  }
  func.func @transform_2(%arg0: i32) -> (i32, i32) {
    %c0_i32 = arith.constant 0 : i32
    %c0_i32_0 = arith.constant 0 : i32
    %c0_i32_1 = arith.constant 0 : i32
    return %c0_i32, %c0_i32_0 : i32, i32
  }
  func.func @transform_3(%arg0: i32) -> (i32, i32) {
    %c0_i32 = arith.constant 0 : i32
    %c0_i32_0 = arith.constant 0 : i32
    %c0_i32_1 = arith.constant 0 : i32
    return %c0_i32, %c0_i32_0 : i32, i32
  }
  func.func @transform_4(%arg0: i32) -> (i32, i32) {
    %c0_i32 = arith.constant 0 : i32
    %c0_i32_0 = arith.constant 0 : i32
    %c0_i32_1 = arith.constant 0 : i32
    return %c0_i32, %c0_i32_0 : i32, i32
  }
  func.func @transform_5(%arg0: i32) -> (i32, i32) {
    %c0_i32 = arith.constant 0 : i32
    %c0_i32_0 = arith.constant 0 : i32
    %c0_i32_1 = arith.constant 0 : i32
    return %c0_i32, %c0_i32_0 : i32, i32
  }
  func.func @transform_6(%arg0: i32) -> (i32, i32) {
    %c0_i32 = arith.constant 0 : i32
    %c0_i32_0 = arith.constant 0 : i32
    %c0_i32_1 = arith.constant 0 : i32
    return %c0_i32, %c0_i32_0 : i32, i32
  }
  func.func @transform_7(%arg0: i32) -> (i32, i32) {
    %c0_i32 = arith.constant 0 : i32
    %c0_i32_0 = arith.constant 0 : i32
    %c0_i32_1 = arith.constant 0 : i32
    return %c0_i32, %c0_i32_0 : i32, i32
  }
  func.func @transform_8(%arg0: i32) -> (i32, i32, i32) {
    %c0_i32 = arith.constant 0 : i32
    %c0_i32_0 = arith.constant 0 : i32
    %c0_i32_1 = arith.constant 0 : i32
    %c0_i32_2 = arith.constant 0 : i32
    return %c0_i32, %c0_i32_0, %c0_i32_1 : i32, i32, i32
  }
  func.func @transform_9(%arg0: i32) -> (i32, i32, i32) {
    %c0_i32 = arith.constant 0 : i32
    %c0_i32_0 = arith.constant 0 : i32
    %c0_i32_1 = arith.constant 0 : i32
    %c0_i32_2 = arith.constant 0 : i32
    return %c0_i32, %c0_i32_0, %c0_i32_1 : i32, i32, i32
  }
  func.func @transform_10(%arg0: i32) -> (i32, i32, i32) {
    %c0_i32 = arith.constant 0 : i32
    %c0_i32_0 = arith.constant 0 : i32
    %c0_i32_1 = arith.constant 0 : i32
    %c0_i32_2 = arith.constant 0 : i32
    return %c0_i32, %c0_i32_0, %c0_i32_1 : i32, i32, i32
  }
  func.func @transform_11(%arg0: i32) -> (i32, i32, i32) {
    %c0_i32 = arith.constant 0 : i32
    %c0_i32_0 = arith.constant 0 : i32
    %c0_i32_1 = arith.constant 0 : i32
    %c0_i32_2 = arith.constant 0 : i32
    return %c0_i32, %c0_i32_0, %c0_i32_1 : i32, i32, i32
  }
  func.func @transform_12(%arg0: i32) -> (i32, i32, i32) {
    %c0_i32 = arith.constant 0 : i32
    %c0_i32_0 = arith.constant 0 : i32
    %c0_i32_1 = arith.constant 0 : i32
    %c0_i32_2 = arith.constant 0 : i32
    return %c0_i32, %c0_i32_0, %c0_i32_1 : i32, i32, i32
  }
  func.func @transform_13(%arg0: i32) -> (i32, i32, i32) {
    %c0_i32 = arith.constant 0 : i32
    %c0_i32_0 = arith.constant 0 : i32
    %c0_i32_1 = arith.constant 0 : i32
    %c0_i32_2 = arith.constant 0 : i32
    return %c0_i32, %c0_i32_0, %c0_i32_1 : i32, i32, i32
  }
  func.func @transform_14(%arg0: i32) -> (i32, i32, i32) {
    %c0_i32 = arith.constant 0 : i32
    %c0_i32_0 = arith.constant 0 : i32
    %c0_i32_1 = arith.constant 0 : i32
    %c0_i32_2 = arith.constant 0 : i32
    return %c0_i32, %c0_i32_0, %c0_i32_1 : i32, i32, i32
  }
  func.func @transform_15(%arg0: i32) -> (i32, i32, i32) {
    %c0_i32 = arith.constant 0 : i32
    %c0_i32_0 = arith.constant 0 : i32
    %c0_i32_1 = arith.constant 0 : i32
    %c0_i32_2 = arith.constant 0 : i32
    return %c0_i32, %c0_i32_0, %c0_i32_1 : i32, i32, i32
  }
  func.func @transform_16(%arg0: i32) -> (i32, i32) {
    %c0_i32 = arith.constant 0 : i32
    %c0_i32_0 = arith.constant 0 : i32
    %c0_i32_1 = arith.constant 0 : i32
    return %c0_i32, %c0_i32_0 : i32, i32
  }
  func.func @transform_17(%arg0: i32) -> (i32, i32) {
    %c0_i32 = arith.constant 0 : i32
    %c0_i32_0 = arith.constant 0 : i32
    %c0_i32_1 = arith.constant 0 : i32
    return %c0_i32, %c0_i32_0 : i32, i32
  }
  func.func @transform_18(%arg0: i32) -> (i32, i32) {
    %c0_i32 = arith.constant 0 : i32
    %c0_i32_0 = arith.constant 0 : i32
    %c0_i32_1 = arith.constant 0 : i32
    return %c0_i32, %c0_i32_0 : i32, i32
  }
  func.func @transform_19(%arg0: i32) -> (i32, i32) {
    %c0_i32 = arith.constant 0 : i32
    %c0_i32_0 = arith.constant 0 : i32
    %c0_i32_1 = arith.constant 0 : i32
    return %c0_i32, %c0_i32_0 : i32, i32
  }
  func.func @transform_20(%arg0: i32) -> (i32, i32) {
    %c0_i32 = arith.constant 0 : i32
    %c0_i32_0 = arith.constant 0 : i32
    %c0_i32_1 = arith.constant 0 : i32
    return %c0_i32, %c0_i32_0 : i32, i32
  }
  func.func @transform_21(%arg0: i32) -> (i32, i32) {
    %c0_i32 = arith.constant 0 : i32
    %c0_i32_0 = arith.constant 0 : i32
    %c0_i32_1 = arith.constant 0 : i32
    return %c0_i32, %c0_i32_0 : i32, i32
  }
  func.func @transform_22(%arg0: i32) -> (i32, i32) {
    %c0_i32 = arith.constant 0 : i32
    %c0_i32_0 = arith.constant 0 : i32
    %c0_i32_1 = arith.constant 0 : i32
    return %c0_i32, %c0_i32_0 : i32, i32
  }
  func.func @transform_23(%arg0: i32) -> (i32, i32, i32) {
    %c0_i32 = arith.constant 0 : i32
    %c0_i32_0 = arith.constant 0 : i32
    %c0_i32_1 = arith.constant 0 : i32
    %c0_i32_2 = arith.constant 0 : i32
    return %c0_i32, %c0_i32_0, %c0_i32_1 : i32, i32, i32
  }
  func.func @transform_24(%arg0: i32) -> (i32, i32, i32) {
    %c0_i32 = arith.constant 0 : i32
    %c0_i32_0 = arith.constant 0 : i32
    %c0_i32_1 = arith.constant 0 : i32
    %c0_i32_2 = arith.constant 0 : i32
    return %c0_i32, %c0_i32_0, %c0_i32_1 : i32, i32, i32
  }
  func.func @transform_25(%arg0: i32) -> (i32, i32, i32) {
    %c0_i32 = arith.constant 0 : i32
    %c0_i32_0 = arith.constant 0 : i32
    %c0_i32_1 = arith.constant 0 : i32
    %c0_i32_2 = arith.constant 0 : i32
    return %c0_i32, %c0_i32_0, %c0_i32_1 : i32, i32, i32
  }
  func.func @transform_26(%arg0: i32) -> (i32, i32, i32) {
    %c0_i32 = arith.constant 0 : i32
    %c0_i32_0 = arith.constant 0 : i32
    %c0_i32_1 = arith.constant 0 : i32
    %c0_i32_2 = arith.constant 0 : i32
    return %c0_i32, %c0_i32_0, %c0_i32_1 : i32, i32, i32
  }
  func.func @transform_27(%arg0: i32) -> (i32, i32, i32) {
    %c0_i32 = arith.constant 0 : i32
    %c0_i32_0 = arith.constant 0 : i32
    %c0_i32_1 = arith.constant 0 : i32
    %c0_i32_2 = arith.constant 0 : i32
    return %c0_i32, %c0_i32_0, %c0_i32_1 : i32, i32, i32
  }
  func.func @transform_28(%arg0: i32) -> (i32, i32, i32) {
    %c0_i32 = arith.constant 0 : i32
    %c0_i32_0 = arith.constant 0 : i32
    %c0_i32_1 = arith.constant 0 : i32
    %c0_i32_2 = arith.constant 0 : i32
    return %c0_i32, %c0_i32_0, %c0_i32_1 : i32, i32, i32
  }
  func.func @transform_29(%arg0: i32) -> (i32, i32, i32) {
    %c0_i32 = arith.constant 0 : i32
    %c0_i32_0 = arith.constant 0 : i32
    %c0_i32_1 = arith.constant 0 : i32
    %c0_i32_2 = arith.constant 0 : i32
    return %c0_i32, %c0_i32_0, %c0_i32_1 : i32, i32, i32
  }
  func.func @transform_30(%arg0: i32) -> (i32, i32, i32) {
    %c0_i32 = arith.constant 0 : i32
    %c0_i32_0 = arith.constant 0 : i32
    %c0_i32_1 = arith.constant 0 : i32
    %c0_i32_2 = arith.constant 0 : i32
    return %c0_i32, %c0_i32_0, %c0_i32_1 : i32, i32, i32
  }
  func.func @transform_31(%arg0: i32) -> (i32, i32) {
    %c0_i32 = arith.constant 0 : i32
    %c0_i32_0 = arith.constant 0 : i32
    %c0_i32_1 = arith.constant 0 : i32
    return %c0_i32, %c0_i32_0 : i32, i32
  }
  func.func @transform_32(%arg0: i32) -> (i32, i32) {
    %c0_i32 = arith.constant 0 : i32
    %c0_i32_0 = arith.constant 0 : i32
    %c0_i32_1 = arith.constant 0 : i32
    return %c0_i32, %c0_i32_0 : i32, i32
  }
  func.func @transform_33(%arg0: i32) -> (i32, i32) {
    %c0_i32 = arith.constant 0 : i32
    %c0_i32_0 = arith.constant 0 : i32
    %c0_i32_1 = arith.constant 0 : i32
    return %c0_i32, %c0_i32_0 : i32, i32
  }
  func.func @transform_34(%arg0: i32) -> (i32, i32) {
    %c0_i32 = arith.constant 0 : i32
    %c0_i32_0 = arith.constant 0 : i32
    %c0_i32_1 = arith.constant 0 : i32
    return %c0_i32, %c0_i32_0 : i32, i32
  }
  func.func @transform_35(%arg0: i32) -> (i32, i32, i32) {
    %c0_i32 = arith.constant 0 : i32
    %c0_i32_0 = arith.constant 0 : i32
    %c0_i32_1 = arith.constant 0 : i32
    return %arg0, %c0_i32, %c0_i32_0 : i32, i32, i32
  }
}

</mosaic_0001>

<llo_original>
// kernel: sci_net_forward.1
$region0: #{sci_net_forward.1}
  #allocation0 [shape = 'u32[]', space=smem, size = 0x4, offset = 0x4, fixed_abs, tag = 'smem constant byte address 0x4 - core index']
  #allocation1 [shape = 'u32[144,128]{1,0:T(1,128)}', space=vmem, size = 0x12000, scoped, tag = 'internal scratch']
  %s0 = inlined_call_operand.smem [shape: u32[36], index: -1, kind: input, shape index: {}]
  %s1 = sld [smem:[%s0]]
  %s2 = scalar_lea.smem %s0, 1
  %s3 = sld [smem:[%s2]]
  %s4 = scalar_lea.smem %s0, 2
  %s5 = sld [smem:[%s4]]
  %s6 = scalar_lea.smem %s0, 3
  %s7 = sld [smem:[%s6]]
  %s8 = scalar_lea.smem %s0, 4
  %s9 = sld [smem:[%s8]]
  %s10 = scalar_lea.smem %s0, 5
  %s11 = sld [smem:[%s10]]
  %s12 = scalar_lea.smem %s0, 6
  %s13 = sld [smem:[%s12]]
  %s14 = scalar_lea.smem %s0, 7
  %s15 = sld [smem:[%s14]]
  %s16 = scalar_lea.smem %s0, 8
  %s17 = sld [smem:[%s16]]
  %s18 = scalar_lea.smem %s0, 9
  %s19 = sld [smem:[%s18]]
  %s20 = scalar_lea.smem %s0, 10
  %s21 = sld [smem:[%s20]]
  %s22 = scalar_lea.smem %s0, 11
  %s23 = sld [smem:[%s22]]
  %s24 = scalar_lea.smem %s0, 12
  %s25 = sld [smem:[%s24]]
  %s26 = scalar_lea.smem %s0, 13
  %s27 = sld [smem:[%s26]]
  %s28 = scalar_lea.smem %s0, 14
  %s29 = sld [smem:[%s28]]
  %s30 = scalar_lea.smem %s0, 15
  %s31 = sld [smem:[%s30]]
  %s32 = scalar_lea.smem %s0, 16
  %s33 = sld [smem:[%s32]]
  %s34 = scalar_lea.smem %s0, 17
  %s35 = sld [smem:[%s34]]
  %s36 = scalar_lea.smem %s0, 18
  %s37 = sld [smem:[%s36]]
  %s38 = scalar_lea.smem %s0, 19
  %s39 = sld [smem:[%s38]]
  %s40 = scalar_lea.smem %s0, 20
  %s41 = sld [smem:[%s40]]
  %s42 = scalar_lea.smem %s0, 21
  %s43 = sld [smem:[%s42]]
  %s44 = scalar_lea.smem %s0, 22
  %s45 = sld [smem:[%s44]]
  %s46 = scalar_lea.smem %s0, 23
  %s47 = sld [smem:[%s46]]
  %s48 = scalar_lea.smem %s0, 24
  %s49 = sld [smem:[%s48]]
  %s50 = scalar_lea.smem %s0, 25
  %s51 = sld [smem:[%s50]]
  %s52 = scalar_lea.smem %s0, 26
  %s53 = sld [smem:[%s52]]
  %s54 = scalar_lea.smem %s0, 27
  %s55 = sld [smem:[%s54]]
  %s56 = scalar_lea.smem %s0, 28
  %s57 = sld [smem:[%s56]]
  %s58 = scalar_lea.smem %s0, 29
  %s59 = sld [smem:[%s58]]
  %s60 = scalar_lea.smem %s0, 30
  %s61 = sld [smem:[%s60]]
  %s62 = scalar_lea.smem %s0, 31
  %s63 = sld [smem:[%s62]]
  %s64 = scalar_lea.smem %s0, 32
  %s65 = sld [smem:[%s64]]
  %s66 = scalar_lea.smem %s0, 33
  %s67 = sld [smem:[%s66]]
  %s68 = scalar_lea.smem %s0, 34
  %s69 = sld [smem:[%s68]]
  %s70 = scalar_lea.smem %s0, 35
  %s71 = sld [smem:[%s70]]
  %s72 = sld [smem:[#allocation0]]
  $region173: #{sci_net_forward.1} parent=0
    _
  %s74 = ssub.s32 1, %s72
  %s75 = scalar_select 0, %s74, %s72
  $region1: #{sci_net_forward.1} parent=0
    #allocation2 [shape = 'u8[4096]{0}', space=vmem, size = 0x1000, scoped, tag = 'output window, operand 0']
    #allocation3 [shape = 's32[2]{0}', space=sflag, size = 0x8, scoped, tag = 'scoped memory for sci_net_forward.1']
    %76 = vsyncpa [#allocation3], 0
    %s77 = scalar_lea.sflag [#allocation3], 1
    %78 = vsyncpa %s77, 0
    loop: start=0, step=1, limit=4
    $region2: #{sci_net_forward.1} parent=1 // loop_pre_header
      _
    $region3: #{sci_net_forward.1} parent=1 // loop_header
      %s80 = sphi 0, %s84
      %p81 = scmp.ge.s32.totalorder %s80, 4
      %s90 = sphi 0, %s92
      %s93 = sphi 0, %s90
      %s94 = sphi 0, %s93
      %s110 = sphi 0, %s94
      %s114 = sphi 0, %s114
      %s116 = sphi 0, %s114
      %s117 = sphi 0, %s116
      %s131 = sphi 0, %s117
      %s135 = sphi 0, %s135
      %s137 = sphi 0, %s135
      %s138 = sphi 0, %s137
      %s152 = sphi 0, %s138
      %s156 = sphi 0, %s156
      %s158 = sphi 0, %s156
      %s159 = sphi 0, %s158
      %s173 = sphi 0, %s159
      %s177 = sphi 0, %s177
      %s179 = sphi 0, %s177
      %s180 = sphi 0, %s179
      %s194 = sphi 0, %s180
      %s198 = sphi 0, %s198
      %s200 = sphi 0, %s198
      %s201 = sphi 0, %s200
      %s215 = sphi 0, %s201
      %s219 = sphi 0, %s219
      %s221 = sphi 0, %s219
      %s222 = sphi 0, %s221
      %s236 = sphi 0, %s222
      %s240 = sphi 0, %s240
      %s242 = sphi 0, %s240
      %s243 = sphi 0, %s242
      %s257 = sphi 0, %s243
      %s261 = sphi 0, %s261
      %s263 = sphi 0, %s261
      %s264 = sphi 0, %s263
      %s278 = sphi 0, %s264
      %s282 = sphi 0, %s282
      %s284 = sphi 0, %s282
      %s285 = sphi 0, %s284
      %s299 = sphi 0, %s285
      %s303 = sphi 0, %s303
      %s305 = sphi 0, %s303
      %s306 = sphi 0, %s305
      %s320 = sphi 0, %s306
      %s324 = sphi 0, %s324
      %s326 = sphi 0, %s324
      %s327 = sphi 0, %s326
      %s341 = sphi 0, %s327
      %s345 = sphi 0, %s345
      %s347 = sphi 0, %s345
      %s348 = sphi 0, %s347
      %s362 = sphi 0, %s348
      %s366 = sphi 0, %s366
      %s368 = sphi 0, %s366
      %s369 = sphi 0, %s368
      %s383 = sphi 0, %s369
      %s387 = sphi 0, %s387
      %s389 = sphi 0, %s387
      %s390 = sphi 0, %s389
      %s404 = sphi 0, %s390
      %s408 = sphi 0, %s408
      %s410 = sphi 0, %s408
      %s411 = sphi 0, %s410
      %s425 = sphi 0, %s411
      %s429 = sphi 0, %s429
      %s431 = sphi 0, %s429
      %s432 = sphi 0, %s431
      %s446 = sphi 0, %s432
      %s450 = sphi 0, %s450
      %s452 = sphi 0, %s450
      %s453 = sphi 0, %s452
      %s467 = sphi 0, %s453
      %s471 = sphi 0, %s471
      %s473 = sphi 0, %s471
      %s474 = sphi 0, %s473
      %s488 = sphi 0, %s474
      %s492 = sphi 0, %s492
      %s494 = sphi 0, %s492
      %s495 = sphi 0, %s494
      %s509 = sphi 0, %s495
      %s513 = sphi 0, %s513
      %s515 = sphi 0, %s513
      %s516 = sphi 0, %s515
      %s530 = sphi 0, %s516
      %s534 = sphi 0, %s534
      %s536 = sphi 0, %s534
      %s537 = sphi 0, %s536
      %s551 = sphi 0, %s537
      %s555 = sphi 0, %s555
      %s557 = sphi 0, %s555
      %s558 = sphi 0, %s557
      %s572 = sphi 0, %s558
      %s576 = sphi 0, %s576
      %s578 = sphi 0, %s576
      %s579 = sphi 0, %s578
      %s593 = sphi 0, %s579
      %s597 = sphi 0, %s597
      %s599 = sphi 0, %s597
      %s600 = sphi 0, %s599
      %s614 = sphi 0, %s600
      %s618 = sphi 0, %s618
      %s620 = sphi 0, %s618
      %s621 = sphi 0, %s620
      %s635 = sphi 0, %s621
      %s639 = sphi 0, %s639
      %s641 = sphi 0, %s639
      %s642 = sphi 0, %s641
      %s656 = sphi 0, %s642
      %s660 = sphi 0, %s660
      %s662 = sphi 0, %s660
      %s663 = sphi 0, %s662
      %s677 = sphi 0, %s663
      %s681 = sphi 0, %s681
      %s683 = sphi 0, %s681
      %s684 = sphi 0, %s683
      %s698 = sphi 0, %s684
      %s702 = sphi 0, %s702
      %s704 = sphi 0, %s702
      %s705 = sphi 0, %s704
      %s719 = sphi 0, %s705
      %s723 = sphi 0, %s723
      %s725 = sphi 0, %s723
      %s726 = sphi 0, %s725
      %s740 = sphi 0, %s726
      %s744 = sphi 0, %s744
      %s746 = sphi 0, %s744
      %s747 = sphi 0, %s746
      %s761 = sphi 0, %s747
      %s765 = sphi 0, %s765
      %s767 = sphi 0, %s765
      %s768 = sphi 0, %s767
      %s782 = sphi 0, %s768
      %s786 = sphi 0, %s786
      %s788 = sphi 0, %s786
      %s789 = sphi 0, %s788
      %s803 = sphi 0, %s789
      %s807 = sphi 0, %s807
      %s809 = sphi 0, %s807
      %s810 = sphi 0, %s809
      %s824 = sphi 0, %s810
      %s830 = sphi 0, %s832
      %s833 = sphi 0, %s830
      %s834 = sphi 0, %s833
      %s850 = sphi 0, %s834
    $region4: #{sci_net_forward.1} parent=1 // loop_header_branch
      %83 = sbr.rel (%p81) target = $region8
    $region5: #{sci_net_forward.1} parent=1 // loop_body
      %s85 = ssub.s32 %s80, 1
      %s86 = ssub.s32 %s80, 2
      %s87 = sadd.s32 %s80, 1
      %s88 = ssub.s32 %s80, %s87
      %p89 = scmp.eq.s32.totalorder %s88, 0
      %s91 = sadd.s32 %s90, 1
      %s92 = scalar_select %p89, %s90, %s91
      %p95 = pneg %p89
      %p96 = scmp.eq.s32.totalorder %s80, 1
      %p97 = por %p95, %p96
      %p98 = scmp.ne.s32.totalorder %s90, %s93
      %p99 = scmp.eq.s32.totalorder %s80, 0
      %p100 = por %p98, %p99
      %p101 = scmp.ne.s32.totalorder %s90, %s93
      %p102 = scmp.eq.s32.totalorder %s85, 1
      %p103 = por %p101, %p102
      %p104 = scmp.ne.s32.totalorder %s93, %s94
      %p105 = scmp.eq.s32.totalorder %s85, 0
      %p106 = por %p104, %p105
      %p107 = scmp.ne.s32.totalorder %s93, %s94
      %p108 = scmp.eq.s32.totalorder %s86, 1
      %p109 = por %p107, %p108
      %p111 = scmp.ne.s32.totalorder %s94, %s110
      %p112 = scmp.eq.s32.totalorder %s86, 0
      %p113 = por %p111, %p112
      %s115 = sadd.s32 %s114, 1
      %p118 = scmp.eq.s32.totalorder %s80, 1
      %p119 = scmp.ne.s32.totalorder %s114, %s116
      %p120 = scmp.eq.s32.totalorder %s80, 0
      %p121 = por %p119, %p120
      %p122 = scmp.ne.s32.totalorder %s114, %s116
      %p123 = scmp.eq.s32.totalorder %s85, 1
      %p124 = por %p122, %p123
      %p125 = scmp.ne.s32.totalorder %s116, %s117
      %p126 = scmp.eq.s32.totalorder %s85, 0
      %p127 = por %p125, %p126
      %p128 = scmp.ne.s32.totalorder %s116, %s117
      %p129 = scmp.eq.s32.totalorder %s86, 1
      %p130 = por %p128, %p129
      %p132 = scmp.ne.s32.totalorder %s117, %s131
      %p133 = scmp.eq.s32.totalorder %s86, 0
      %p134 = por %p132, %p133
      %s136 = sadd.s32 %s135, 1
      %p139 = scmp.eq.s32.totalorder %s80, 1
      %p140 = scmp.ne.s32.totalorder %s135, %s137
      %p141 = scmp.eq.s32.totalorder %s80, 0
      %p142 = por %p140, %p141
      %p143 = scmp.ne.s32.totalorder %s135, %s137
      %p144 = scmp.eq.s32.totalorder %s85, 1
      %p145 = por %p143, %p144
      %p146 = scmp.ne.s32.totalorder %s137, %s138
      %p147 = scmp.eq.s32.totalorder %s85, 0
      %p148 = por %p146, %p147
      %p149 = scmp.ne.s32.totalorder %s137, %s138
      %p150 = scmp.eq.s32.totalorder %s86, 1
      %p151 = por %p149, %p150
      %p153 = scmp.ne.s32.totalorder %s138, %s152
      %p154 = scmp.eq.s32.totalorder %s86, 0
      %p155 = por %p153, %p154
      %s157 = sadd.s32 %s156, 1
      %p160 = scmp.eq.s32.totalorder %s80, 1
      %p161 = scmp.ne.s32.totalorder %s156, %s158
      %p162 = scmp.eq.s32.totalorder %s80, 0
      %p163 = por %p161, %p162
      %p164 = scmp.ne.s32.totalorder %s156, %s158
      %p165 = scmp.eq.s32.totalorder %s85, 1
      %p166 = por %p164, %p165
      %p167 = scmp.ne.s32.totalorder %s158, %s159
      %p168 = scmp.eq.s32.totalorder %s85, 0
      %p169 = por %p167, %p168
      %p170 = scmp.ne.s32.totalorder %s158, %s159
      %p171 = scmp.eq.s32.totalorder %s86, 1
      %p172 = por %p170, %p171
      %p174 = scmp.ne.s32.totalorder %s159, %s173
      %p175 = scmp.eq.s32.totalorder %s86, 0
      %p176 = por %p174, %p175
      %s178 = sadd.s32 %s177, 1
      %p181 = scmp.eq.s32.totalorder %s80, 1
      %p182 = scmp.ne.s32.totalorder %s177, %s179
      %p183 = scmp.eq.s32.totalorder %s80, 0
      %p184 = por %p182, %p183
      %p185 = scmp.ne.s32.totalorder %s177, %s179
      %p186 = scmp.eq.s32.totalorder %s85, 1
      %p187 = por %p185, %p186
      %p188 = scmp.ne.s32.totalorder %s179, %s180
      %p189 = scmp.eq.s32.totalorder %s85, 0
      %p190 = por %p188, %p189
      %p191 = scmp.ne.s32.totalorder %s179, %s180
      %p192 = scmp.eq.s32.totalorder %s86, 1
      %p193 = por %p191, %p192
      %p195 = scmp.ne.s32.totalorder %s180, %s194
      %p196 = scmp.eq.s32.totalorder %s86, 0
      %p197 = por %p195, %p196
      %s199 = sadd.s32 %s198, 1
      %p202 = scmp.eq.s32.totalorder %s80, 1
      %p203 = scmp.ne.s32.totalorder %s198, %s200
      %p204 = scmp.eq.s32.totalorder %s80, 0
      %p205 = por %p203, %p204
      %p206 = scmp.ne.s32.totalorder %s198, %s200
      %p207 = scmp.eq.s32.totalorder %s85, 1
      %p208 = por %p206, %p207
      %p209 = scmp.ne.s32.totalorder %s200, %s201
      %p210 = scmp.eq.s32.totalorder %s85, 0
      %p211 = por %p209, %p210
      %p212 = scmp.ne.s32.totalorder %s200, %s201
      %p213 = scmp.eq.s32.totalorder %s86, 1
      %p214 = por %p212, %p213
      %p216 = scmp.ne.s32.totalorder %s201, %s215
      %p217 = scmp.eq.s32.totalorder %s86, 0
      %p218 = por %p216, %p217
      %s220 = sadd.s32 %s219, 1
      %p223 = scmp.eq.s32.totalorder %s80, 1
      %p224 = scmp.ne.s32.totalorder %s219, %s221
      %p225 = scmp.eq.s32.totalorder %s80, 0
      %p226 = por %p224, %p225
      %p227 = scmp.ne.s32.totalorder %s219, %s221
      %p228 = scmp.eq.s32.totalorder %s85, 1
      %p229 = por %p227, %p228
      %p230 = scmp.ne.s32.totalorder %s221, %s222
      %p231 = scmp.eq.s32.totalorder %s85, 0
      %p232 = por %p230, %p231
      %p233 = scmp.ne.s32.totalorder %s221, %s222
      %p234 = scmp.eq.s32.totalorder %s86, 1
      %p235 = por %p233, %p234
      %p237 = scmp.ne.s32.totalorder %s222, %s236
      %p238 = scmp.eq.s32.totalorder %s86, 0
      %p239 = por %p237, %p238
      %s241 = sadd.s32 %s240, 1
      %p244 = scmp.eq.s32.totalorder %s80, 1
      %p245 = scmp.ne.s32.totalorder %s240, %s242
      %p246 = scmp.eq.s32.totalorder %s80, 0
      %p247 = por %p245, %p246
      %p248 = scmp.ne.s32.totalorder %s240, %s242
      %p249 = scmp.eq.s32.totalorder %s85, 1
      %p250 = por %p248, %p249
      %p251 = scmp.ne.s32.totalorder %s242, %s243
      %p252 = scmp.eq.s32.totalorder %s85, 0
      %p253 = por %p251, %p252
      %p254 = scmp.ne.s32.totalorder %s242, %s243
      %p255 = scmp.eq.s32.totalorder %s86, 1
      %p256 = por %p254, %p255
      %p258 = scmp.ne.s32.totalorder %s243, %s257
      %p259 = scmp.eq.s32.totalorder %s86, 0
      %p260 = por %p258, %p259
      %s262 = sadd.s32 %s261, 1
      %p265 = scmp.eq.s32.totalorder %s80, 1
      %p266 = scmp.ne.s32.totalorder %s261, %s263
      %p267 = scmp.eq.s32.totalorder %s80, 0
      %p268 = por %p266, %p267
      %p269 = scmp.ne.s32.totalorder %s261, %s263
      %p270 = scmp.eq.s32.totalorder %s85, 1
      %p271 = por %p269, %p270
      %p272 = scmp.ne.s32.totalorder %s263, %s264
      %p273 = scmp.eq.s32.totalorder %s85, 0
      %p274 = por %p272, %p273
      %p275 = scmp.ne.s32.totalorder %s263, %s264
      %p276 = scmp.eq.s32.totalorder %s86, 1
      %p277 = por %p275, %p276
      %p279 = scmp.ne.s32.totalorder %s264, %s278
      %p280 = scmp.eq.s32.totalorder %s86, 0
      %p281 = por %p279, %p280
      %s283 = sadd.s32 %s282, 1
      %p286 = scmp.eq.s32.totalorder %s80, 1
      %p287 = scmp.ne.s32.totalorder %s282, %s284
      %p288 = scmp.eq.s32.totalorder %s80, 0
      %p289 = por %p287, %p288
      %p290 = scmp.ne.s32.totalorder %s282, %s284
      %p291 = scmp.eq.s32.totalorder %s85, 1
      %p292 = por %p290, %p291
      %p293 = scmp.ne.s32.totalorder %s284, %s285
      %p294 = scmp.eq.s32.totalorder %s85, 0
      %p295 = por %p293, %p294
      %p296 = scmp.ne.s32.totalorder %s284, %s285
      %p297 = scmp.eq.s32.totalorder %s86, 1
      %p298 = por %p296, %p297
      %p300 = scmp.ne.s32.totalorder %s285, %s299
      %p301 = scmp.eq.s32.totalorder %s86, 0
      %p302 = por %p300, %p301
      %s304 = sadd.s32 %s303, 1
      %p307 = scmp.eq.s32.totalorder %s80, 1
      %p308 = scmp.ne.s32.totalorder %s303, %s305
      %p309 = scmp.eq.s32.totalorder %s80, 0
      %p310 = por %p308, %p309
      %p311 = scmp.ne.s32.totalorder %s303, %s305
      %p312 = scmp.eq.s32.totalorder %s85, 1
      %p313 = por %p311, %p312
      %p314 = scmp.ne.s32.totalorder %s305, %s306
      %p315 = scmp.eq.s32.totalorder %s85, 0
      %p316 = por %p314, %p315
      %p317 = scmp.ne.s32.totalorder %s305, %s306
      %p318 = scmp.eq.s32.totalorder %s86, 1
      %p319 = por %p317, %p318
      %p321 = scmp.ne.s32.totalorder %s306, %s320
      %p322 = scmp.eq.s32.totalorder %s86, 0
      %p323 = por %p321, %p322
      %s325 = sadd.s32 %s324, 1
      %p328 = scmp.eq.s32.totalorder %s80, 1
      %p329 = scmp.ne.s32.totalorder %s324, %s326
      %p330 = scmp.eq.s32.totalorder %s80, 0
      %p331 = por %p329, %p330
      %p332 = scmp.ne.s32.totalorder %s324, %s326
      %p333 = scmp.eq.s32.totalorder %s85, 1
      %p334 = por %p332, %p333
      %p335 = scmp.ne.s32.totalorder %s326, %s327
      %p336 = scmp.eq.s32.totalorder %s85, 0
      %p337 = por %p335, %p336
      %p338 = scmp.ne.s32.totalorder %s326, %s327
      %p339 = scmp.eq.s32.totalorder %s86, 1
      %p340 = por %p338, %p339
      %p342 = scmp.ne.s32.totalorder %s327, %s341
      %p343 = scmp.eq.s32.totalorder %s86, 0
      %p344 = por %p342, %p343
      %s346 = sadd.s32 %s345, 1
      %p349 = scmp.eq.s32.totalorder %s80, 1
      %p350 = scmp.ne.s32.totalorder %s345, %s347
      %p351 = scmp.eq.s32.totalorder %s80, 0
      %p352 = por %p350, %p351
      %p353 = scmp.ne.s32.totalorder %s345, %s347
      %p354 = scmp.eq.s32.totalorder %s85, 1
      %p355 = por %p353, %p354
      %p356 = scmp.ne.s32.totalorder %s347, %s348
      %p357 = scmp.eq.s32.totalorder %s85, 0
      %p358 = por %p356, %p357
      %p359 = scmp.ne.s32.totalorder %s347, %s348
      %p360 = scmp.eq.s32.totalorder %s86, 1
      %p361 = por %p359, %p360
      %p363 = scmp.ne.s32.totalorder %s348, %s362
      %p364 = scmp.eq.s32.totalorder %s86, 0
      %p365 = por %p363, %p364
      %s367 = sadd.s32 %s366, 1
      %p370 = scmp.eq.s32.totalorder %s80, 1
      %p371 = scmp.ne.s32.totalorder %s366, %s368
      %p372 = scmp.eq.s32.totalorder %s80, 0
      %p373 = por %p371, %p372
      %p374 = scmp.ne.s32.totalorder %s366, %s368
      %p375 = scmp.eq.s32.totalorder %s85, 1
      %p376 = por %p374, %p375
      %p377 = scmp.ne.s32.totalorder %s368, %s369
      %p378 = scmp.eq.s32.totalorder %s85, 0
      %p379 = por %p377, %p378
      %p380 = scmp.ne.s32.totalorder %s368, %s369
      %p381 = scmp.eq.s32.totalorder %s86, 1
      %p382 = por %p380, %p381
      %p384 = scmp.ne.s32.totalorder %s369, %s383
      %p385 = scmp.eq.s32.totalorder %s86, 0
      %p386 = por %p384, %p385
      %s388 = sadd.s32 %s387, 1
      %p391 = scmp.eq.s32.totalorder %s80, 1
      %p392 = scmp.ne.s32.totalorder %s387, %s389
      %p393 = scmp.eq.s32.totalorder %s80, 0
      %p394 = por %p392, %p393
      %p395 = scmp.ne.s32.totalorder %s387, %s389
      %p396 = scmp.eq.s32.totalorder %s85, 1
      %p397 = por %p395, %p396
      %p398 = scmp.ne.s32.totalorder %s389, %s390
      %p399 = scmp.eq.s32.totalorder %s85, 0
      %p400 = por %p398, %p399
      %p401 = scmp.ne.s32.totalorder %s389, %s390
      %p402 = scmp.eq.s32.totalorder %s86, 1
      %p403 = por %p401, %p402
      %p405 = scmp.ne.s32.totalorder %s390, %s404
      %p406 = scmp.eq.s32.totalorder %s86, 0
      %p407 = por %p405, %p406
      %s409 = sadd.s32 %s408, 1
      %p412 = scmp.eq.s32.totalorder %s80, 1
      %p413 = scmp.ne.s32.totalorder %s408, %s410
      %p414 = scmp.eq.s32.totalorder %s80, 0
      %p415 = por %p413, %p414
      %p416 = scmp.ne.s32.totalorder %s408, %s410
      %p417 = scmp.eq.s32.totalorder %s85, 1
      %p418 = por %p416, %p417
      %p419 = scmp.ne.s32.totalorder %s410, %s411
      %p420 = scmp.eq.s32.totalorder %s85, 0
      %p421 = por %p419, %p420
      %p422 = scmp.ne.s32.totalorder %s410, %s411
      %p423 = scmp.eq.s32.totalorder %s86, 1
      %p424 = por %p422, %p423
      %p426 = scmp.ne.s32.totalorder %s411, %s425
      %p427 = scmp.eq.s32.totalorder %s86, 0
      %p428 = por %p426, %p427
      %s430 = sadd.s32 %s429, 1
      %p433 = scmp.eq.s32.totalorder %s80, 1
      %p434 = scmp.ne.s32.totalorder %s429, %s431
      %p435 = scmp.eq.s32.totalorder %s80, 0
      %p436 = por %p434, %p435
      %p437 = scmp.ne.s32.totalorder %s429, %s431
      %p438 = scmp.eq.s32.totalorder %s85, 1
      %p439 = por %p437, %p438
      %p440 = scmp.ne.s32.totalorder %s431, %s432
      %p441 = scmp.eq.s32.totalorder %s85, 0
      %p442 = por %p440, %p441
      %p443 = scmp.ne.s32.totalorder %s431, %s432
      %p444 = scmp.eq.s32.totalorder %s86, 1
      %p445 = por %p443, %p444
      %p447 = scmp.ne.s32.totalorder %s432, %s446
      %p448 = scmp.eq.s32.totalorder %s86, 0
      %p449 = por %p447, %p448
      %s451 = sadd.s32 %s450, 1
      %p454 = scmp.eq.s32.totalorder %s80, 1
      %p455 = scmp.ne.s32.totalorder %s450, %s452
      %p456 = scmp.eq.s32.totalorder %s80, 0
      %p457 = por %p455, %p456
      %p458 = scmp.ne.s32.totalorder %s450, %s452
      %p459 = scmp.eq.s32.totalorder %s85, 1
      %p460 = por %p458, %p459
      %p461 = scmp.ne.s32.totalorder %s452, %s453
      %p462 = scmp.eq.s32.totalorder %s85, 0
      %p463 = por %p461, %p462
      %p464 = scmp.ne.s32.totalorder %s452, %s453
      %p465 = scmp.eq.s32.totalorder %s86, 1
      %p466 = por %p464, %p465
      %p468 = scmp.ne.s32.totalorder %s453, %s467
      %p469 = scmp.eq.s32.totalorder %s86, 0
      %p470 = por %p468, %p469
      %s472 = sadd.s32 %s471, 1
      %p475 = scmp.eq.s32.totalorder %s80, 1
      %p476 = scmp.ne.s32.totalorder %s471, %s473
      %p477 = scmp.eq.s32.totalorder %s80, 0
      %p478 = por %p476, %p477
      %p479 = scmp.ne.s32.totalorder %s471, %s473
      %p480 = scmp.eq.s32.totalorder %s85, 1
      %p481 = por %p479, %p480
      %p482 = scmp.ne.s32.totalorder %s473, %s474
      %p483 = scmp.eq.s32.totalorder %s85, 0
      %p484 = por %p482, %p483
      %p485 = scmp.ne.s32.totalorder %s473, %s474
      %p486 = scmp.eq.s32.totalorder %s86, 1
      %p487 = por %p485, %p486
      %p489 = scmp.ne.s32.totalorder %s474, %s488
      %p490 = scmp.eq.s32.totalorder %s86, 0
      %p491 = por %p489, %p490
      %s493 = sadd.s32 %s492, 1
      %p496 = scmp.eq.s32.totalorder %s80, 1
      %p497 = scmp.ne.s32.totalorder %s492, %s494
      %p498 = scmp.eq.s32.totalorder %s80, 0
      %p499 = por %p497, %p498
      %p500 = scmp.ne.s32.totalorder %s492, %s494
      %p501 = scmp.eq.s32.totalorder %s85, 1
      %p502 = por %p500, %p501
      %p503 = scmp.ne.s32.totalorder %s494, %s495
      %p504 = scmp.eq.s32.totalorder %s85, 0
      %p505 = por %p503, %p504
      %p506 = scmp.ne.s32.totalorder %s494, %s495
      %p507 = scmp.eq.s32.totalorder %s86, 1
      %p508 = por %p506, %p507
      %p510 = scmp.ne.s32.totalorder %s495, %s509
      %p511 = scmp.eq.s32.totalorder %s86, 0
      %p512 = por %p510, %p511
      %s514 = sadd.s32 %s513, 1
      %p517 = scmp.eq.s32.totalorder %s80, 1
      %p518 = scmp.ne.s32.totalorder %s513, %s515
      %p519 = scmp.eq.s32.totalorder %s80, 0
      %p520 = por %p518, %p519
      %p521 = scmp.ne.s32.totalorder %s513, %s515
      %p522 = scmp.eq.s32.totalorder %s85, 1
      %p523 = por %p521, %p522
      %p524 = scmp.ne.s32.totalorder %s515, %s516
      %p525 = scmp.eq.s32.totalorder %s85, 0
      %p526 = por %p524, %p525
      %p527 = scmp.ne.s32.totalorder %s515, %s516
      %p528 = scmp.eq.s32.totalorder %s86, 1
      %p529 = por %p527, %p528
      %p531 = scmp.ne.s32.totalorder %s516, %s530
      %p532 = scmp.eq.s32.totalorder %s86, 0
      %p533 = por %p531, %p532
      %s535 = sadd.s32 %s534, 1
      %p538 = scmp.eq.s32.totalorder %s80, 1
      %p539 = scmp.ne.s32.totalorder %s534, %s536
      %p540 = scmp.eq.s32.totalorder %s80, 0
      %p541 = por %p539, %p540
      %p542 = scmp.ne.s32.totalorder %s534, %s536
      %p543 = scmp.eq.s32.totalorder %s85, 1
      %p544 = por %p542, %p543
      %p545 = scmp.ne.s32.totalorder %s536, %s537
      %p546 = scmp.eq.s32.totalorder %s85, 0
      %p547 = por %p545, %p546
      %p548 = scmp.ne.s32.totalorder %s536, %s537
      %p549 = scmp.eq.s32.totalorder %s86, 1
      %p550 = por %p548, %p549
      %p552 = scmp.ne.s32.totalorder %s537, %s551
      %p553 = scmp.eq.s32.totalorder %s86, 0
      %p554 = por %p552, %p553
      %s556 = sadd.s32 %s555, 1
      %p559 = scmp.eq.s32.totalorder %s80, 1
      %p560 = scmp.ne.s32.totalorder %s555, %s557
      %p561 = scmp.eq.s32.totalorder %s80, 0
      %p562 = por %p560, %p561
      %p563 = scmp.ne.s32.totalorder %s555, %s557
      %p564 = scmp.eq.s32.totalorder %s85, 1
      %p565 = por %p563, %p564
      %p566 = scmp.ne.s32.totalorder %s557, %s558
      %p567 = scmp.eq.s32.totalorder %s85, 0
      %p568 = por %p566, %p567
      %p569 = scmp.ne.s32.totalorder %s557, %s558
      %p570 = scmp.eq.s32.totalorder %s86, 1
      %p571 = por %p569, %p570
      %p573 = scmp.ne.s32.totalorder %s558, %s572
      %p574 = scmp.eq.s32.totalorder %s86, 0
      %p575 = por %p573, %p574
      %s577 = sadd.s32 %s576, 1
      %p580 = scmp.eq.s32.totalorder %s80, 1
      %p581 = scmp.ne.s32.totalorder %s576, %s578
      %p582 = scmp.eq.s32.totalorder %s80, 0
      %p583 = por %p581, %p582
      %p584 = scmp.ne.s32.totalorder %s576, %s578
      %p585 = scmp.eq.s32.totalorder %s85, 1
      %p586 = por %p584, %p585
      %p587 = scmp.ne.s32.totalorder %s578, %s579
      %p588 = scmp.eq.s32.totalorder %s85, 0
      %p589 = por %p587, %p588
      %p590 = scmp.ne.s32.totalorder %s578, %s579
      %p591 = scmp.eq.s32.totalorder %s86, 1
      %p592 = por %p590, %p591
      %p594 = scmp.ne.s32.totalorder %s579, %s593
      %p595 = scmp.eq.s32.totalorder %s86, 0
      %p596 = por %p594, %p595
      %s598 = sadd.s32 %s597, 1
      %p601 = scmp.eq.s32.totalorder %s80, 1
      %p602 = scmp.ne.s32.totalorder %s597, %s599
      %p603 = scmp.eq.s32.totalorder %s80, 0
      %p604 = por %p602, %p603
      %p605 = scmp.ne.s32.totalorder %s597, %s599
      %p606 = scmp.eq.s32.totalorder %s85, 1
      %p607 = por %p605, %p606
      %p608 = scmp.ne.s32.totalorder %s599, %s600
      %p609 = scmp.eq.s32.totalorder %s85, 0
      %p610 = por %p608, %p609
      %p611 = scmp.ne.s32.totalorder %s599, %s600
      %p612 = scmp.eq.s32.totalorder %s86, 1
      %p613 = por %p611, %p612
      %p615 = scmp.ne.s32.totalorder %s600, %s614
      %p616 = scmp.eq.s32.totalorder %s86, 0
      %p617 = por %p615, %p616
      %s619 = sadd.s32 %s618, 1
      %p622 = scmp.eq.s32.totalorder %s80, 1
      %p623 = scmp.ne.s32.totalorder %s618, %s620
      %p624 = scmp.eq.s32.totalorder %s80, 0
      %p625 = por %p623, %p624
      %p626 = scmp.ne.s32.totalorder %s618, %s620
      %p627 = scmp.eq.s32.totalorder %s85, 1
      %p628 = por %p626, %p627
      %p629 = scmp.ne.s32.totalorder %s620, %s621
      %p630 = scmp.eq.s32.totalorder %s85, 0
      %p631 = por %p629, %p630
      %p632 = scmp.ne.s32.totalorder %s620, %s621
      %p633 = scmp.eq.s32.totalorder %s86, 1
      %p634 = por %p632, %p633
      %p636 = scmp.ne.s32.totalorder %s621, %s635
      %p637 = scmp.eq.s32.totalorder %s86, 0
      %p638 = por %p636, %p637
      %s640 = sadd.s32 %s639, 1
      %p643 = scmp.eq.s32.totalorder %s80, 1
      %p644 = scmp.ne.s32.totalorder %s639, %s641
      %p645 = scmp.eq.s32.totalorder %s80, 0
      %p646 = por %p644, %p645
      %p647 = scmp.ne.s32.totalorder %s639, %s641
      %p648 = scmp.eq.s32.totalorder %s85, 1
      %p649 = por %p647, %p648
      %p650 = scmp.ne.s32.totalorder %s641, %s642
      %p651 = scmp.eq.s32.totalorder %s85, 0
      %p652 = por %p650, %p651
      %p653 = scmp.ne.s32.totalorder %s641, %s642
      %p654 = scmp.eq.s32.totalorder %s86, 1
      %p655 = por %p653, %p654
      %p657 = scmp.ne.s32.totalorder %s642, %s656
      %p658 = scmp.eq.s32.totalorder %s86, 0
      %p659 = por %p657, %p658
      %s661 = sadd.s32 %s660, 1
      %p664 = scmp.eq.s32.totalorder %s80, 1
      %p665 = scmp.ne.s32.totalorder %s660, %s662
      %p666 = scmp.eq.s32.totalorder %s80, 0
      %p667 = por %p665, %p666
      %p668 = scmp.ne.s32.totalorder %s660, %s662
      %p669 = scmp.eq.s32.totalorder %s85, 1
      %p670 = por %p668, %p669
      %p671 = scmp.ne.s32.totalorder %s662, %s663
      %p672 = scmp.eq.s32.totalorder %s85, 0
      %p673 = por %p671, %p672
      %p674 = scmp.ne.s32.totalorder %s662, %s663
      %p675 = scmp.eq.s32.totalorder %s86, 1
      %p676 = por %p674, %p675
      %p678 = scmp.ne.s32.totalorder %s663, %s677
      %p679 = scmp.eq.s32.totalorder %s86, 0
      %p680 = por %p678, %p679
      %s682 = sadd.s32 %s681, 1
      %p685 = scmp.eq.s32.totalorder %s80, 1
      %p686 = scmp.ne.s32.totalorder %s681, %s683
      %p687 = scmp.eq.s32.totalorder %s80, 0
      %p688 = por %p686, %p687
      %p689 = scmp.ne.s32.totalorder %s681, %s683
      %p690 = scmp.eq.s32.totalorder %s85, 1
      %p691 = por %p689, %p690
      %p692 = scmp.ne.s32.totalorder %s683, %s684
      %p693 = scmp.eq.s32.totalorder %s85, 0
      %p694 = por %p692, %p693
      %p695 = scmp.ne.s32.totalorder %s683, %s684
      %p696 = scmp.eq.s32.totalorder %s86, 1
      %p697 = por %p695, %p696
      %p699 = scmp.ne.s32.totalorder %s684, %s698
      %p700 = scmp.eq.s32.totalorder %s86, 0
      %p701 = por %p699, %p700
      %s703 = sadd.s32 %s702, 1
      %p706 = scmp.eq.s32.totalorder %s80, 1
      %p707 = scmp.ne.s32.totalorder %s702, %s704
      %p708 = scmp.eq.s32.totalorder %s80, 0
      %p709 = por %p707, %p708
      %p710 = scmp.ne.s32.totalorder %s702, %s704
      %p711 = scmp.eq.s32.totalorder %s85, 1
      %p712 = por %p710, %p711
      %p713 = scmp.ne.s32.totalorder %s704, %s705
      %p714 = scmp.eq.s32.totalorder %s85, 0
      %p715 = por %p713, %p714
      %p716 = scmp.ne.s32.totalorder %s704, %s705
      %p717 = scmp.eq.s32.totalorder %s86, 1
      %p718 = por %p716, %p717
      %p720 = scmp.ne.s32.totalorder %s705, %s719
      %p721 = scmp.eq.s32.totalorder %s86, 0
      %p722 = por %p720, %p721
      %s724 = sadd.s32 %s723, 1
      %p727 = scmp.eq.s32.totalorder %s80, 1
      %p728 = scmp.ne.s32.totalorder %s723, %s725
      %p729 = scmp.eq.s32.totalorder %s80, 0
      %p730 = por %p728, %p729
      %p731 = scmp.ne.s32.totalorder %s723, %s725
      %p732 = scmp.eq.s32.totalorder %s85, 1
      %p733 = por %p731, %p732
      %p734 = scmp.ne.s32.totalorder %s725, %s726
      %p735 = scmp.eq.s32.totalorder %s85, 0
      %p736 = por %p734, %p735
      %p737 = scmp.ne.s32.totalorder %s725, %s726
      %p738 = scmp.eq.s32.totalorder %s86, 1
      %p739 = por %p737, %p738
      %p741 = scmp.ne.s32.totalorder %s726, %s740
      %p742 = scmp.eq.s32.totalorder %s86, 0
      %p743 = por %p741, %p742
      %s745 = sadd.s32 %s744, 1
      %p748 = scmp.eq.s32.totalorder %s80, 1
      %p749 = scmp.ne.s32.totalorder %s744, %s746
      %p750 = scmp.eq.s32.totalorder %s80, 0
      %p751 = por %p749, %p750
      %p752 = scmp.ne.s32.totalorder %s744, %s746
      %p753 = scmp.eq.s32.totalorder %s85, 1
      %p754 = por %p752, %p753
      %p755 = scmp.ne.s32.totalorder %s746, %s747
      %p756 = scmp.eq.s32.totalorder %s85, 0
      %p757 = por %p755, %p756
      %p758 = scmp.ne.s32.totalorder %s746, %s747
      %p759 = scmp.eq.s32.totalorder %s86, 1
      %p760 = por %p758, %p759
      %p762 = scmp.ne.s32.totalorder %s747, %s761
      %p763 = scmp.eq.s32.totalorder %s86, 0
      %p764 = por %p762, %p763
      %s766 = sadd.s32 %s765, 1
      %p769 = scmp.eq.s32.totalorder %s80, 1
      %p770 = scmp.ne.s32.totalorder %s765, %s767
      %p771 = scmp.eq.s32.totalorder %s80, 0
      %p772 = por %p770, %p771
      %p773 = scmp.ne.s32.totalorder %s765, %s767
      %p774 = scmp.eq.s32.totalorder %s85, 1
      %p775 = por %p773, %p774
      %p776 = scmp.ne.s32.totalorder %s767, %s768
      %p777 = scmp.eq.s32.totalorder %s85, 0
      %p778 = por %p776, %p777
      %p779 = scmp.ne.s32.totalorder %s767, %s768
      %p780 = scmp.eq.s32.totalorder %s86, 1
      %p781 = por %p779, %p780
      %p783 = scmp.ne.s32.totalorder %s768, %s782
      %p784 = scmp.eq.s32.totalorder %s86, 0
      %p785 = por %p783, %p784
      %s787 = sadd.s32 %s786, 1
      %p790 = scmp.eq.s32.totalorder %s80, 1
      %p791 = scmp.ne.s32.totalorder %s786, %s788
      %p792 = scmp.eq.s32.totalorder %s80, 0
      %p793 = por %p791, %p792
      %p794 = scmp.ne.s32.totalorder %s786, %s788
      %p795 = scmp.eq.s32.totalorder %s85, 1
      %p796 = por %p794, %p795
      %p797 = scmp.ne.s32.totalorder %s788, %s789
      %p798 = scmp.eq.s32.totalorder %s85, 0
      %p799 = por %p797, %p798
      %p800 = scmp.ne.s32.totalorder %s788, %s789
      %p801 = scmp.eq.s32.totalorder %s86, 1
      %p802 = por %p800, %p801
      %p804 = scmp.ne.s32.totalorder %s789, %s803
      %p805 = scmp.eq.s32.totalorder %s86, 0
      %p806 = por %p804, %p805
      %s808 = sadd.s32 %s807, 1
      %p811 = scmp.eq.s32.totalorder %s80, 1
      %p812 = scmp.ne.s32.totalorder %s807, %s809
      %p813 = scmp.eq.s32.totalorder %s80, 0
      %p814 = por %p812, %p813
      %p815 = scmp.ne.s32.totalorder %s807, %s809
      %p816 = scmp.eq.s32.totalorder %s85, 1
      %p817 = por %p815, %p816
      %p818 = scmp.ne.s32.totalorder %s809, %s810
      %p819 = scmp.eq.s32.totalorder %s85, 0
      %p820 = por %p818, %p819
      %p821 = scmp.ne.s32.totalorder %s809, %s810
      %p822 = scmp.eq.s32.totalorder %s86, 1
      %p823 = por %p821, %p822
      %p825 = scmp.ne.s32.totalorder %s810, %s824
      %p826 = scmp.eq.s32.totalorder %s86, 0
      %p827 = por %p825, %p826
      %s828 = ssub.s32 %s80, %s87
      %p829 = scmp.eq.s32.totalorder %s828, 0
      %s831 = sadd.s32 %s830, 1
      %s832 = scalar_select %p829, %s830, %s831
      %p835 = pneg %p829
      %p836 = scmp.eq.s32.totalorder %s80, 1
      %p837 = por %p835, %p836
      %p838 = scmp.ne.s32.totalorder %s830, %s833
      %p839 = scmp.eq.s32.totalorder %s80, 0
      %p840 = por %p838, %p839
      %p841 = scmp.ne.s32.totalorder %s830, %s833
      %p842 = scmp.eq.s32.totalorder %s85, 1
      %p843 = por %p841, %p842
      %p844 = scmp.ne.s32.totalorder %s833, %s834
      %p845 = scmp.eq.s32.totalorder %s85, 0
      %p846 = por %p844, %p845
      %p847 = scmp.ne.s32.totalorder %s833, %s834
      %p848 = scmp.eq.s32.totalorder %s86, 1
      %p849 = por %p847, %p848
      %p851 = scmp.ne.s32.totalorder %s834, %s850
      %p852 = scmp.eq.s32.totalorder %s86, 0
      %p853 = por %p851, %p852
      %p854 = scmp.le.s32.totalorder 1, %s80
      %p855 = scmp.lt.s32.totalorder %s80, 3
      %p856 = pnand %p854, %p855
      %p857 = pneg %p856
      // Predicated region
      $region9: #{sci_net_forward.1} parent=5 // pred_check
        _
      $region10: #{sci_net_forward.1} parent=5 // pred_check_branch
        %859 = sbr.rel (%p856) target = $region12
      $region11: #{sci_net_forward.1} parent=5 // pred_region
        %s860 = ssub.s32 %s80, 1
        // Predicated region
        $region13: #{sci_net_forward.1} parent=11 // pred_check
          %p861 = pneg %p127
        $region14: #{sci_net_forward.1} parent=11 // pred_check_branch
          %863 = sbr.rel (%p861) target = $region16
        $region15: #{sci_net_forward.1} parent=11 // pred_region
          _
        $region16: #{sci_net_forward.1} parent=11 // pred_fallthru
          _
        // Predicated region
        $region17: #{sci_net_forward.1} parent=11 // pred_check
          %p864 = pneg %p148
        $region18: #{sci_net_forward.1} parent=11 // pred_check_branch
          %866 = sbr.rel (%p864) target = $region20
        $region19: #{sci_net_forward.1} parent=11 // pred_region
          _
        $region20: #{sci_net_forward.1} parent=11 // pred_fallthru
          _
        // Predicated region
        $region21: #{sci_net_forward.1} parent=11 // pred_check
          %p867 = pneg %p169
        $region22: #{sci_net_forward.1} parent=11 // pred_check_branch
          %869 = sbr.rel (%p867) target = $region24
        $region23: #{sci_net_forward.1} parent=11 // pred_region
          _
        $region24: #{sci_net_forward.1} parent=11 // pred_fallthru
          _
        // Predicated region
        $region25: #{sci_net_forward.1} parent=11 // pred_check
          %p870 = pneg %p190
        $region26: #{sci_net_forward.1} parent=11 // pred_check_branch
          %872 = sbr.rel (%p870) target = $region28
        $region27: #{sci_net_forward.1} parent=11 // pred_region
          _
        $region28: #{sci_net_forward.1} parent=11 // pred_fallthru
          _
        // Predicated region
        $region29: #{sci_net_forward.1} parent=11 // pred_check
          %p873 = pneg %p211
        $region30: #{sci_net_forward.1} parent=11 // pred_check_branch
          %875 = sbr.rel (%p873) target = $region32
        $region31: #{sci_net_forward.1} parent=11 // pred_region
          _
        $region32: #{sci_net_forward.1} parent=11 // pred_fallthru
          _
        // Predicated region
        $region33: #{sci_net_forward.1} parent=11 // pred_check
          %p876 = pneg %p232
        $region34: #{sci_net_forward.1} parent=11 // pred_check_branch
          %878 = sbr.rel (%p876) target = $region36
        $region35: #{sci_net_forward.1} parent=11 // pred_region
          _
        $region36: #{sci_net_forward.1} parent=11 // pred_fallthru
          _
        // Predicated region
        $region37: #{sci_net_forward.1} parent=11 // pred_check
          %p879 = pneg %p253
        $region38: #{sci_net_forward.1} parent=11 // pred_check_branch
          %881 = sbr.rel (%p879) target = $region40
        $region39: #{sci_net_forward.1} parent=11 // pred_region
          _
        $region40: #{sci_net_forward.1} parent=11 // pred_fallthru
          _
        // Predicated region
        $region41: #{sci_net_forward.1} parent=11 // pred_check
          %p882 = pneg %p274
        $region42: #{sci_net_forward.1} parent=11 // pred_check_branch
          %884 = sbr.rel (%p882) target = $region44
        $region43: #{sci_net_forward.1} parent=11 // pred_region
          _
        $region44: #{sci_net_forward.1} parent=11 // pred_fallthru
          _
        // Predicated region
        $region45: #{sci_net_forward.1} parent=11 // pred_check
          %p885 = pneg %p295
        $region46: #{sci_net_forward.1} parent=11 // pred_check_branch
          %887 = sbr.rel (%p885) target = $region48
        $region47: #{sci_net_forward.1} parent=11 // pred_region
          _
        $region48: #{sci_net_forward.1} parent=11 // pred_fallthru
          _
        // Predicated region
        $region49: #{sci_net_forward.1} parent=11 // pred_check
          %p888 = pneg %p316
        $region50: #{sci_net_forward.1} parent=11 // pred_check_branch
          %890 = sbr.rel (%p888) target = $region52
        $region51: #{sci_net_forward.1} parent=11 // pred_region
          _
        $region52: #{sci_net_forward.1} parent=11 // pred_fallthru
          _
        // Predicated region
        $region53: #{sci_net_forward.1} parent=11 // pred_check
          %p891 = pneg %p337
        $region54: #{sci_net_forward.1} parent=11 // pred_check_branch
          %893 = sbr.rel (%p891) target = $region56
        $region55: #{sci_net_forward.1} parent=11 // pred_region
          _
        $region56: #{sci_net_forward.1} parent=11 // pred_fallthru
          _
        // Predicated region
        $region57: #{sci_net_forward.1} parent=11 // pred_check
          %p894 = pneg %p358
        $region58: #{sci_net_forward.1} parent=11 // pred_check_branch
          %896 = sbr.rel (%p894) target = $region60
        $region59: #{sci_net_forward.1} parent=11 // pred_region
          _
        $region60: #{sci_net_forward.1} parent=11 // pred_fallthru
          _
        // Predicated region
        $region61: #{sci_net_forward.1} parent=11 // pred_check
          %p897 = pneg %p379
        $region62: #{sci_net_forward.1} parent=11 // pred_check_branch
          %899 = sbr.rel (%p897) target = $region64
        $region63: #{sci_net_forward.1} parent=11 // pred_region
          _
        $region64: #{sci_net_forward.1} parent=11 // pred_fallthru
          _
        // Predicated region
        $region65: #{sci_net_forward.1} parent=11 // pred_check
          %p900 = pneg %p400
        $region66: #{sci_net_forward.1} parent=11 // pred_check_branch
          %902 = sbr.rel (%p900) target = $region68
        $region67: #{sci_net_forward.1} parent=11 // pred_region
          _
        $region68: #{sci_net_forward.1} parent=11 // pred_fallthru
          _
        // Predicated region
        $region69: #{sci_net_forward.1} parent=11 // pred_check
          %p903 = pneg %p421
        $region70: #{sci_net_forward.1} parent=11 // pred_check_branch
          %905 = sbr.rel (%p903) target = $region72
        $region71: #{sci_net_forward.1} parent=11 // pred_region
          _
        $region72: #{sci_net_forward.1} parent=11 // pred_fallthru
          _
        // Predicated region
        $region73: #{sci_net_forward.1} parent=11 // pred_check
          %p906 = pneg %p442
        $region74: #{sci_net_forward.1} parent=11 // pred_check_branch
          %908 = sbr.rel (%p906) target = $region76
        $region75: #{sci_net_forward.1} parent=11 // pred_region
          _
        $region76: #{sci_net_forward.1} parent=11 // pred_fallthru
          _
        // Predicated region
        $region77: #{sci_net_forward.1} parent=11 // pred_check
          %p909 = pneg %p463
        $region78: #{sci_net_forward.1} parent=11 // pred_check_branch
          %911 = sbr.rel (%p909) target = $region80
        $region79: #{sci_net_forward.1} parent=11 // pred_region
          _
        $region80: #{sci_net_forward.1} parent=11 // pred_fallthru
          _
        // Predicated region
        $region81: #{sci_net_forward.1} parent=11 // pred_check
          %p912 = pneg %p484
        $region82: #{sci_net_forward.1} parent=11 // pred_check_branch
          %914 = sbr.rel (%p912) target = $region84
        $region83: #{sci_net_forward.1} parent=11 // pred_region
          _
        $region84: #{sci_net_forward.1} parent=11 // pred_fallthru
          _
        // Predicated region
        $region85: #{sci_net_forward.1} parent=11 // pred_check
          %p915 = pneg %p505
        $region86: #{sci_net_forward.1} parent=11 // pred_check_branch
          %917 = sbr.rel (%p915) target = $region88
        $region87: #{sci_net_forward.1} parent=11 // pred_region
          _
        $region88: #{sci_net_forward.1} parent=11 // pred_fallthru
          _
        // Predicated region
        $region89: #{sci_net_forward.1} parent=11 // pred_check
          %p918 = pneg %p526
        $region90: #{sci_net_forward.1} parent=11 // pred_check_branch
          %920 = sbr.rel (%p918) target = $region92
        $region91: #{sci_net_forward.1} parent=11 // pred_region
          _
        $region92: #{sci_net_forward.1} parent=11 // pred_fallthru
          _
        // Predicated region
        $region93: #{sci_net_forward.1} parent=11 // pred_check
          %p921 = pneg %p547
        $region94: #{sci_net_forward.1} parent=11 // pred_check_branch
          %923 = sbr.rel (%p921) target = $region96
        $region95: #{sci_net_forward.1} parent=11 // pred_region
          _
        $region96: #{sci_net_forward.1} parent=11 // pred_fallthru
          _
        // Predicated region
        $region97: #{sci_net_forward.1} parent=11 // pred_check
          %p924 = pneg %p568
        $region98: #{sci_net_forward.1} parent=11 // pred_check_branch
          %926 = sbr.rel (%p924) target = $region100
        $region99: #{sci_net_forward.1} parent=11 // pred_region
          _
        $region100: #{sci_net_forward.1} parent=11 // pred_fallthru
          _
        // Predicated region
        $region101: #{sci_net_forward.1} parent=11 // pred_check
          %p927 = pneg %p589
        $region102: #{sci_net_forward.1} parent=11 // pred_check_branch
          %929 = sbr.rel (%p927) target = $region104
        $region103: #{sci_net_forward.1} parent=11 // pred_region
          _
        $region104: #{sci_net_forward.1} parent=11 // pred_fallthru
          _
        // Predicated region
        $region105: #{sci_net_forward.1} parent=11 // pred_check
          %p930 = pneg %p610
        $region106: #{sci_net_forward.1} parent=11 // pred_check_branch
          %932 = sbr.rel (%p930) target = $region108
        $region107: #{sci_net_forward.1} parent=11 // pred_region
          _
        $region108: #{sci_net_forward.1} parent=11 // pred_fallthru
          _
        // Predicated region
        $region109: #{sci_net_forward.1} parent=11 // pred_check
          %p933 = pneg %p631
        $region110: #{sci_net_forward.1} parent=11 // pred_check_branch
          %935 = sbr.rel (%p933) target = $region112
        $region111: #{sci_net_forward.1} parent=11 // pred_region
          _
        $region112: #{sci_net_forward.1} parent=11 // pred_fallthru
          _
        // Predicated region
        $region113: #{sci_net_forward.1} parent=11 // pred_check
          %p936 = pneg %p652
        $region114: #{sci_net_forward.1} parent=11 // pred_check_branch
          %938 = sbr.rel (%p936) target = $region116
        $region115: #{sci_net_forward.1} parent=11 // pred_region
          _
        $region116: #{sci_net_forward.1} parent=11 // pred_fallthru
          _
        // Predicated region
        $region117: #{sci_net_forward.1} parent=11 // pred_check
          %p939 = pneg %p673
        $region118: #{sci_net_forward.1} parent=11 // pred_check_branch
          %941 = sbr.rel (%p939) target = $region120
        $region119: #{sci_net_forward.1} parent=11 // pred_region
          _
        $region120: #{sci_net_forward.1} parent=11 // pred_fallthru
          _
        // Predicated region
        $region121: #{sci_net_forward.1} parent=11 // pred_check
          %p942 = pneg %p694
        $region122: #{sci_net_forward.1} parent=11 // pred_check_branch
          %944 = sbr.rel (%p942) target = $region124
        $region123: #{sci_net_forward.1} parent=11 // pred_region
          _
        $region124: #{sci_net_forward.1} parent=11 // pred_fallthru
          _
        // Predicated region
        $region125: #{sci_net_forward.1} parent=11 // pred_check
          %p945 = pneg %p715
        $region126: #{sci_net_forward.1} parent=11 // pred_check_branch
          %947 = sbr.rel (%p945) target = $region128
        $region127: #{sci_net_forward.1} parent=11 // pred_region
          _
        $region128: #{sci_net_forward.1} parent=11 // pred_fallthru
          _
        // Predicated region
        $region129: #{sci_net_forward.1} parent=11 // pred_check
          %p948 = pneg %p736
        $region130: #{sci_net_forward.1} parent=11 // pred_check_branch
          %950 = sbr.rel (%p948) target = $region132
        $region131: #{sci_net_forward.1} parent=11 // pred_region
          _
        $region132: #{sci_net_forward.1} parent=11 // pred_fallthru
          _
        // Predicated region
        $region133: #{sci_net_forward.1} parent=11 // pred_check
          %p951 = pneg %p757
        $region134: #{sci_net_forward.1} parent=11 // pred_check_branch
          %953 = sbr.rel (%p951) target = $region136
        $region135: #{sci_net_forward.1} parent=11 // pred_region
          _
        $region136: #{sci_net_forward.1} parent=11 // pred_fallthru
          _
        // Predicated region
        $region137: #{sci_net_forward.1} parent=11 // pred_check
          %p954 = pneg %p778
        $region138: #{sci_net_forward.1} parent=11 // pred_check_branch
          %956 = sbr.rel (%p954) target = $region140
        $region139: #{sci_net_forward.1} parent=11 // pred_region
          _
        $region140: #{sci_net_forward.1} parent=11 // pred_fallthru
          _
        // Predicated region
        $region141: #{sci_net_forward.1} parent=11 // pred_check
          %p957 = pneg %p799
        $region142: #{sci_net_forward.1} parent=11 // pred_check_branch
          %959 = sbr.rel (%p957) target = $region144
        $region143: #{sci_net_forward.1} parent=11 // pred_region
          _
        $region144: #{sci_net_forward.1} parent=11 // pred_fallthru
          _
        // Predicated region
        $region145: #{sci_net_forward.1} parent=11 // pred_check
          %p960 = pneg %p820
        $region146: #{sci_net_forward.1} parent=11 // pred_check_branch
          %962 = sbr.rel (%p960) target = $region148
        $region147: #{sci_net_forward.1} parent=11 // pred_region
          _
        $region148: #{sci_net_forward.1} parent=11 // pred_fallthru
          _
      $region12: #{sci_net_forward.1} parent=5 // pred_fallthru
        _
      %p963 = scmp.lt.s32.totalorder %s80, 2
      // Predicated region
      $region149: #{sci_net_forward.1} parent=5 // pred_check
        %p964 = pneg %p963
      $region150: #{sci_net_forward.1} parent=5 // pred_check_branch
        %966 = sbr.rel (%p964) target = $region152
      $region151: #{sci_net_forward.1} parent=5 // pred_region
        // Predicated region
        $region153: #{sci_net_forward.1} parent=151 // pred_check
          %p967 = pneg %p100
        $region154: #{sci_net_forward.1} parent=151 // pred_check_branch
          %969 = sbr.rel (%p967) target = $region156
        $region155: #{sci_net_forward.1} parent=151 // pred_region
          %p970 = scmp.lt.s32.totalorder %s80, 1
          %s971 = scalar_select %p970, %s80, 1
          %s972 = smul.addr %s971, 4
          %s973 = scalar_lea.vmem %s1, %s972
        $region156: #{sci_net_forward.1} parent=151 // pred_fallthru
          _
      $region152: #{sci_net_forward.1} parent=5 // pred_fallthru
        _
      %p974 = scmp.le.s32.totalorder 1, %s80
      %p975 = scmp.lt.s32.totalorder %s80, 3
      %p976 = pnand %p974, %p975
      %p977 = pneg %p976
      // Predicated region
      $region157: #{sci_net_forward.1} parent=5 // pred_check
        _
      $region158: #{sci_net_forward.1} parent=5 // pred_check_branch
        %979 = sbr.rel (%p976) target = $region160
      $region159: #{sci_net_forward.1} parent=5 // pred_region
        %s980 = ssub.s32 %s80, 1
        %p981 = scmp.lt.s32.totalorder %s85, 1
        %s982 = scalar_select %p981, %s85, 1
        %s983 = smul.addr %s982, 4
        %s984 = scalar_lea.vmem %s1, %s983
        %p985 = pneg %p106
        %p986 = pneg %p103
        %p987 = pneg %p127
        %p988 = pneg %p124
        %p989 = pneg %p148
        %p990 = pneg %p145
        %p991 = pneg %p169
        %p992 = pneg %p166
        %p993 = pneg %p190
        %p994 = pneg %p187
        %p995 = pneg %p211
        %p996 = pneg %p208
        %p997 = pneg %p232
        %p998 = pneg %p229
        %p999 = pneg %p253
        %p1000 = pneg %p250
        %p1001 = pneg %p274
        %p1002 = pneg %p271
        %p1003 = pneg %p295
        %p1004 = pneg %p292
        %p1005 = pneg %p316
        %p1006 = pneg %p313
        %p1007 = pneg %p337
        %p1008 = pneg %p334
        %p1009 = pneg %p358
        %p1010 = pneg %p355
        %p1011 = pneg %p379
        %p1012 = pneg %p376
        %p1013 = pneg %p400
        %p1014 = pneg %p397
        %p1015 = pneg %p421
        %p1016 = pneg %p418
        %p1017 = pneg %p442
        %p1018 = pneg %p439
        %p1019 = pneg %p463
        %p1020 = pneg %p460
        %p1021 = pneg %p484
        %p1022 = pneg %p481
        %p1023 = pneg %p505
        %p1024 = pneg %p502
        %p1025 = pneg %p526
        %p1026 = pneg %p523
        %p1027 = pneg %p547
        %p1028 = pneg %p544
        %p1029 = pneg %p568
        %p1030 = pneg %p565
        %p1031 = pneg %p589
        %p1032 = pneg %p586
        %p1033 = pneg %p610
        %p1034 = pneg %p607
        %p1035 = pneg %p631
        %p1036 = pneg %p628
        %p1037 = pneg %p652
        %p1038 = pneg %p649
        %p1039 = pneg %p673
        %p1040 = pneg %p670
        %p1041 = pneg %p694
        %p1042 = pneg %p691
        %p1043 = pneg %p715
        %p1044 = pneg %p712
        %p1045 = pneg %p736
        %p1046 = pneg %p733
        %p1047 = pneg %p757
        %p1048 = pneg %p754
        %p1049 = pneg %p778
        %p1050 = pneg %p775
        %p1051 = pneg %p799
        %p1052 = pneg %p796
        %p1053 = pneg %p820
        %p1054 = pneg %p817
        %p1055 = pneg %p846
        %p1056 = pneg %p843
        %s1057 = sand.u32 %s833, 1
        %s1058 = scalar_lea.sflag [#allocation3], %s1057
        %s1059 = sand.u32 %s833, 1
        %s1060 = smul.addr %s1059, 4
        %s1061 = scalar_lea.vmem [#allocation2], %s1060
        %p1062 = scmp.lt.s32.totalorder %s85, 1
        %s1063 = scalar_select %p1062, %s85, 1
        %s1064 = smul.addr %s1063, 4
        %s1065 = scalar_lea.vmem %s1, %s1064
        %v1067 = vld [vmem:[%s1065] sm:$0xf]
        %v1068 = vpack.c.bf16 %v1067, %v1067
        %v1069 = vld [vmem:[%s3] sm:$0xf]
        %v1070 = vld [vmem:[%s3 + $0x4] sm:$0xf]
        %v1073 = vunpack.c.l.b16 %v1069
        %v1074 = vunpack.c.l.b16 %v1070
        %v1075 = vpack.c.b16 %v1074, %v1073
        %vm1077 = vcmask 130048
        %v1079 = vsel %vm1077, %v1068, 0
        %1081 = vmatprep.subr.bf16.mxu0 0
        %1082 = vmatpush1.bf16.msra.mxu0 %v1075
        %1083 = vmatprep.subr.bf16.mxu0 0
        %1084 = vmatpush1.bf16.msra.mxu0 0
        %1085 = vmatprep.subr.bf16.mxu0 0
        %1086 = vmatpush1.bf16.msra.mxu0 0
        %1087 = vmatprep.subr.bf16.mxu0 0
        %1088 = vmatpush1.bf16.msra.mxu0 0
        %1089 = vmatprep.subr.bf16.mxu0 0
        %1090 = vmatpush1.bf16.msra.mxu0 0
        %1091 = vmatprep.subr.bf16.mxu0 0
        %1092 = vmatpush1.bf16.msra.mxu0 0
        %1093 = vmatprep.subr.bf16.mxu0 0
        %1094 = vmatpush1.bf16.msra.mxu0 0
        %1095 = vmatprep.subr.bf16.mxu0 0
        %1096 = vmatpush1.bf16.msra.mxu0 0
        %1097 = vmatprep.subr.bf16.mxu0 0
        %1098 = vmatpush1.bf16.msra.mxu0 0
        %1099 = vmatprep.subr.bf16.mxu0 0
        %1100 = vmatpush1.bf16.msra.mxu0 0
        %1101 = vmatprep.subr.bf16.mxu0 0
        %1102 = vmatpush1.bf16.msra.mxu0 0
        %1103 = vmatprep.subr.bf16.mxu0 0
        %1104 = vmatpush1.bf16.msra.mxu0 0
        %1105 = vmatprep.subr.bf16.mxu0 0
        %1106 = vmatpush1.bf16.msra.mxu0 0
        %1107 = vmatprep.subr.bf16.mxu0 0
        %1108 = vmatpush1.bf16.msra.mxu0 0
        %1109 = vmatprep.subr.bf16.mxu0 0
        %1110 = vmatpush1.bf16.msra.mxu0 0
        %1111 = vmatprep.subr.bf16.mxu0 0
        %1112 = vmatpush1.bf16.msra.mxu0 0
        %1113 = vmatprep.mubr.bf16.mxu0 0
        %1114 = vmatmul.mubr.bf16.gmra.mrb[0].mxu0 %v1079
        %v1115 = vpop.f32.mrb[0].mxu0
        %v1116 = vadd.f32 0.0, %v1115
        %v1117 = vpop.f32.mrb[0].mxu0
        %v1118 = vpop.f32.mrb[0].mxu0
        %v1119 = vpop.f32.mrb[0].mxu0
        %1120 = vdwg.mxu0
        %v1121 = vld [vmem:[%s5] sm:$0xf]
        %v1122 = vld [vmem:[%s5 + $0x4] sm:$0xf]
        %v1125 = vunpack.c.l.b16 %v1121
        %v1126 = vunpack.c.l.b16 %v1122
        %v1127 = vpack.c.b16 %v1126, %v1125
        %1129 = vmatprep.subr.bf16.mxu0 0
        %1130 = vmatpush1.bf16.msra.mxu0 %v1127
        %1131 = vmatprep.subr.bf16.mxu0 0
        %1132 = vmatpush1.bf16.msra.mxu0 0
        %1133 = vmatprep.subr.bf16.mxu0 0
        %1134 = vmatpush1.bf16.msra.mxu0 0
        %1135 = vmatprep.subr.bf16.mxu0 0
        %1136 = vmatpush1.bf16.msra.mxu0 0
        %1137 = vmatprep.subr.bf16.mxu0 0
        %1138 = vmatpush1.bf16.msra.mxu0 0
        %1139 = vmatprep.subr.bf16.mxu0 0
        %1140 = vmatpush1.bf16.msra.mxu0 0
        %1141 = vmatprep.subr.bf16.mxu0 0
        %1142 = vmatpush1.bf16.msra.mxu0 0
        %1143 = vmatprep.subr.bf16.mxu0 0
        %1144 = vmatpush1.bf16.msra.mxu0 0
        %1145 = vmatprep.subr.bf16.mxu0 0
        %1146 = vmatpush1.bf16.msra.mxu0 0
        %1147 = vmatprep.subr.bf16.mxu0 0
        %1148 = vmatpush1.bf16.msra.mxu0 0
        %1149 = vmatprep.subr.bf16.mxu0 0
        %1150 = vmatpush1.bf16.msra.mxu0 0
        %1151 = vmatprep.subr.bf16.mxu0 0
        %1152 = vmatpush1.bf16.msra.mxu0 0
        %1153 = vmatprep.subr.bf16.mxu0 0
        %1154 = vmatpush1.bf16.msra.mxu0 0
        %1155 = vmatprep.subr.bf16.mxu0 0
        %1156 = vmatpush1.bf16.msra.mxu0 0
        %1157 = vmatprep.subr.bf16.mxu0 0
        %1158 = vmatpush1.bf16.msra.mxu0 0
        %1159 = vmatprep.subr.bf16.mxu0 0
        %1160 = vmatpush1.bf16.msra.mxu0 0
        %1161 = vmatprep.mubr.bf16.mxu0 0
        %1162 = vmatmul.mubr.bf16.gmra.mrb[0].mxu0 %v1079
        %v1163 = vpop.f32.mrb[0].mxu0
        %v1164 = vadd.f32 0.0, %v1163
        %v1165 = vpop.f32.mrb[0].mxu0
        %v1166 = vpop.f32.mrb[0].mxu0
        %v1167 = vpop.f32.mrb[0].mxu0
        %1168 = vdwg.mxu0
        %v1169 = vld [vmem:[%s7] sm:$0xf]
        %v1170 = vld [vmem:[%s7 + $0x4] sm:$0xf]
        %v1173 = vunpack.c.l.b16 %v1169
        %v1174 = vunpack.c.l.b16 %v1170
        %v1175 = vpack.c.b16 %v1174, %v1173
        %1177 = vmatprep.subr.bf16.mxu0 0
        %1178 = vmatpush1.bf16.msra.mxu0 %v1175
        %1179 = vmatprep.subr.bf16.mxu0 0
        %1180 = vmatpush1.bf16.msra.mxu0 0
        %1181 = vmatprep.subr.bf16.mxu0 0
        %1182 = vmatpush1.bf16.msra.mxu0 0
        %1183 = vmatprep.subr.bf16.mxu0 0
        %1184 = vmatpush1.bf16.msra.mxu0 0
        %1185 = vmatprep.subr.bf16.mxu0 0
        %1186 = vmatpush1.bf16.msra.mxu0 0
        %1187 = vmatprep.subr.bf16.mxu0 0
        %1188 = vmatpush1.bf16.msra.mxu0 0
        %1189 = vmatprep.subr.bf16.mxu0 0
        %1190 = vmatpush1.bf16.msra.mxu0 0
        %1191 = vmatprep.subr.bf16.mxu0 0
        %1192 = vmatpush1.bf16.msra.mxu0 0
        %1193 = vmatprep.subr.bf16.mxu0 0
        %1194 = vmatpush1.bf16.msra.mxu0 0
        %1195 = vmatprep.subr.bf16.mxu0 0
        %1196 = vmatpush1.bf16.msra.mxu0 0
        %1197 = vmatprep.subr.bf16.mxu0 0
        %1198 = vmatpush1.bf16.msra.mxu0 0
        %1199 = vmatprep.subr.bf16.mxu0 0
        %1200 = vmatpush1.bf16.msra.mxu0 0
        %1201 = vmatprep.subr.bf16.mxu0 0
        %1202 = vmatpush1.bf16.msra.mxu0 0
        %1203 = vmatprep.subr.bf16.mxu0 0
        %1204 = vmatpush1.bf16.msra.mxu0 0
        %1205 = vmatprep.subr.bf16.mxu0 0
        %1206 = vmatpush1.bf16.msra.mxu0 0
        %1207 = vmatprep.subr.bf16.mxu0 0
        %1208 = vmatpush1.bf16.msra.mxu0 0
        %1209 = vmatprep.mubr.bf16.mxu0 0
        %1210 = vmatmul.mubr.bf16.gmra.mrb[0].mxu0 %v1079
        %v1211 = vpop.f32.mrb[0].mxu0
        %v1212 = vadd.f32 0.0, %v1211
        %v1213 = vpop.f32.mrb[0].mxu0
        %v1214 = vpop.f32.mrb[0].mxu0
        %v1215 = vpop.f32.mrb[0].mxu0
        %1216 = vdwg.mxu0
        %v1217 = vpack.c.bf16 %v1212, %v1212
        %v1218 = vld [vmem:[%s17] sm:$0xf]
        %s1219 = scalar_lea.vmem %s17, 4
        %v1220 = vld [vmem:[%s1219] sm:$0xf]
        %1222 = vrot.lane.b32.xlu0 %v1217, 118
        %v1223 = vpop.permute.xlu0 %1222
        %vm1224 = vcmask 31744
        %v1226 = vsel %vm1224, %v1220, 0
        %vm1228 = vcmask 1041408
        %v1230 = vsel %vm1228, %v1223, 0
        %1232 = vmatprep.subr.bf16.mxu0 0
        %1233 = vmatpush1.bf16.msra.mxu0 %v1230
        %1234 = vmatprep.subr.bf16.mxu0 0
        %1235 = vmatpush1.bf16.msra.mxu0 0
        %1236 = vmatprep.subr.bf16.mxu0 0
        %1237 = vmatpush1.bf16.msra.mxu0 0
        %1238 = vmatprep.subr.bf16.mxu0 0
        %1239 = vmatpush1.bf16.msra.mxu0 0
        %1240 = vmatprep.subr.bf16.mxu0 0
        %1241 = vmatpush1.bf16.msra.mxu0 0
        %1242 = vmatprep.subr.bf16.mxu0 0
        %1243 = vmatpush1.bf16.msra.mxu0 0
        %1244 = vmatprep.subr.bf16.mxu0 0
        %1245 = vmatpush1.bf16.msra.mxu0 0
        %1246 = vmatprep.subr.bf16.mxu0 0
        %1247 = vmatpush1.bf16.msra.mxu0 0
        %1248 = vmatprep.subr.bf16.mxu0 0
        %1249 = vmatpush1.bf16.msra.mxu0 0
        %1250 = vmatprep.subr.bf16.mxu0 0
        %1251 = vmatpush1.bf16.msra.mxu0 0
        %1252 = vmatprep.subr.bf16.mxu0 0
        %1253 = vmatpush1.bf16.msra.mxu0 0
        %1254 = vmatprep.subr.bf16.mxu0 0
        %1255 = vmatpush1.bf16.msra.mxu0 0
        %1256 = vmatprep.subr.bf16.mxu0 0
        %1257 = vmatpush1.bf16.msra.mxu0 0
        %1258 = vmatprep.subr.bf16.mxu0 0
        %1259 = vmatpush1.bf16.msra.mxu0 0
        %1260 = vmatprep.subr.bf16.mxu0 0
        %1261 = vmatpush1.bf16.msra.mxu0 0
        %1262 = vmatprep.subr.bf16.mxu0 0
        %1263 = vmatpush1.bf16.msra.mxu0 0
        %1264 = vmatprep.mubr.bf16.mxu0 0
        %1265 = vmatmul.mubr.bf16.gmra.mrb[0].mxu0 %v1226
        %v1266 = vpop.f32.mrb[0].mxu0
        %v1267 = vadd.f32 0.0, %v1266
        %v1268 = vpop.f32.mrb[0].mxu0
        %v1269 = vpop.f32.mrb[0].mxu0
        %v1270 = vpop.f32.mrb[0].mxu0
        %1271 = vdwg.mxu0
        %v1273 = vsel %vm1224, %v1218, 0
        %v1276 = vsel %vm1228, %v1217, 0
        %1278 = vmatprep.subr.bf16.mxu0 0
        %1279 = vmatpush1.bf16.msra.mxu0 %v1276
        %1280 = vmatprep.subr.bf16.mxu0 0
        %1281 = vmatpush1.bf16.msra.mxu0 0
        %1282 = vmatprep.subr.bf16.mxu0 0
        %1283 = vmatpush1.bf16.msra.mxu0 0
        %1284 = vmatprep.subr.bf16.mxu0 0
        %1285 = vmatpush1.bf16.msra.mxu0 0
        %1286 = vmatprep.subr.bf16.mxu0 0
        %1287 = vmatpush1.bf16.msra.mxu0 0
        %1288 = vmatprep.subr.bf16.mxu0 0
        %1289 = vmatpush1.bf16.msra.mxu0 0
        %1290 = vmatprep.subr.bf16.mxu0 0
        %1291 = vmatpush1.bf16.msra.mxu0 0
        %1292 = vmatprep.subr.bf16.mxu0 0
        %1293 = vmatpush1.bf16.msra.mxu0 0
        %1294 = vmatprep.subr.bf16.mxu0 0
        %1295 = vmatpush1.bf16.msra.mxu0 0
        %1296 = vmatprep.subr.bf16.mxu0 0
        %1297 = vmatpush1.bf16.msra.mxu0 0
        %1298 = vmatprep.subr.bf16.mxu0 0
        %1299 = vmatpush1.bf16.msra.mxu0 0
        %1300 = vmatprep.subr.bf16.mxu0 0
        %1301 = vmatpush1.bf16.msra.mxu0 0
        %1302 = vmatprep.subr.bf16.mxu0 0
        %1303 = vmatpush1.bf16.msra.mxu0 0
        %1304 = vmatprep.subr.bf16.mxu0 0
        %1305 = vmatpush1.bf16.msra.mxu0 0
        %1306 = vmatprep.subr.bf16.mxu0 0
        %1307 = vmatpush1.bf16.msra.mxu0 0
        %1308 = vmatprep.subr.bf16.mxu0 0
        %1309 = vmatpush1.bf16.msra.mxu0 0
        %1310 = vmatprep.mubr.bf16.mxu0 0
        %1311 = vmatmul.mubr.bf16.gmra.mrb[0].mxu0 %v1273
        %v1312 = vpop.f32.mrb[0].mxu0
        %v1313 = vadd.f32 %v1267, %v1312
        %v1314 = vpop.f32.mrb[0].mxu0
        %v1315 = vpop.f32.mrb[0].mxu0
        %v1316 = vpop.f32.mrb[0].mxu0
        %1317 = vdwg.mxu0
        %s1318 = scalar_lea.vmem %s17, 8
        %v1319 = vld [vmem:[%s1318] sm:$0xf]
        %1320 = vrot.lane.b32.xlu0 %v1217, 108
        %v1321 = vpop.permute.xlu0 %1320
        %v1323 = vsel %vm1224, %v1319, 0
        %v1326 = vsel %vm1228, %v1321, 0
        %1328 = vmatprep.subr.bf16.mxu0 0
        %1329 = vmatpush1.bf16.msra.mxu0 %v1326
        %1330 = vmatprep.subr.bf16.mxu0 0
        %1331 = vmatpush1.bf16.msra.mxu0 0
        %1332 = vmatprep.subr.bf16.mxu0 0
        %1333 = vmatpush1.bf16.msra.mxu0 0
        %1334 = vmatprep.subr.bf16.mxu0 0
        %1335 = vmatpush1.bf16.msra.mxu0 0
        %1336 = vmatprep.subr.bf16.mxu0 0
        %1337 = vmatpush1.bf16.msra.mxu0 0
        %1338 = vmatprep.subr.bf16.mxu0 0
        %1339 = vmatpush1.bf16.msra.mxu0 0
        %1340 = vmatprep.subr.bf16.mxu0 0
        %1341 = vmatpush1.bf16.msra.mxu0 0
        %1342 = vmatprep.subr.bf16.mxu0 0
        %1343 = vmatpush1.bf16.msra.mxu0 0
        %1344 = vmatprep.subr.bf16.mxu0 0
        %1345 = vmatpush1.bf16.msra.mxu0 0
        %1346 = vmatprep.subr.bf16.mxu0 0
        %1347 = vmatpush1.bf16.msra.mxu0 0
        %1348 = vmatprep.subr.bf16.mxu0 0
        %1349 = vmatpush1.bf16.msra.mxu0 0
        %1350 = vmatprep.subr.bf16.mxu0 0
        %1351 = vmatpush1.bf16.msra.mxu0 0
        %1352 = vmatprep.subr.bf16.mxu0 0
        %1353 = vmatpush1.bf16.msra.mxu0 0
        %1354 = vmatprep.subr.bf16.mxu0 0
        %1355 = vmatpush1.bf16.msra.mxu0 0
        %1356 = vmatprep.subr.bf16.mxu0 0
        %1357 = vmatpush1.bf16.msra.mxu0 0
        %1358 = vmatprep.subr.bf16.mxu0 0
        %1359 = vmatpush1.bf16.msra.mxu0 0
        %1360 = vmatprep.mubr.bf16.mxu0 0
        %1361 = vmatmul.mubr.bf16.gmra.mrb[0].mxu0 %v1323
        %v1362 = vpop.f32.mrb[0].mxu0
        %v1363 = vadd.f32 0.0, %v1362
        %v1364 = vpop.f32.mrb[0].mxu0
        %v1365 = vpop.f32.mrb[0].mxu0
        %v1366 = vpop.f32.mrb[0].mxu0
        %1367 = vdwg.mxu0
        %v1368 = vadd.f32 %v1313, %v1363
        %vm1369 = vcmp.ge.f32.partialorder %v1368, 0.0
        %v1370 = vmul.f32 %v1368, 0.01
        %v1371 = vsel %vm1369, %v1368, %v1370
        %v1372 = vpack.c.bf16 %v1371, %v1371
        %v1373 = vld [vmem:[%s13] sm:$0xf]
        %v1374 = vld [vmem:[%s13 + $0x4] sm:$0x1]
        %v1377 = vunpack.c.l.b16 %v1373
        %v1378 = vunpack.c.l.b16 %v1374
        %v1379 = vpack.c.b16 %v1378, %v1377
        %vm1380 = vcmask 80896
        %v1382 = vsel %vm1380, %v1372, 0
        %vm1384 = vcmask 1044480
        %v1386 = vsel %vm1384, %v1379, 0
        %1388 = vmatprep.subr.bf16.mxu0 0
        %1389 = vmatpush1.bf16.msra.mxu0 %v1386
        %1390 = vmatprep.subr.bf16.mxu0 0
        %1391 = vmatpush1.bf16.msra.mxu0 0
        %1392 = vmatprep.subr.bf16.mxu0 0
        %1393 = vmatpush1.bf16.msra.mxu0 0
        %1394 = vmatprep.subr.bf16.mxu0 0
        %1395 = vmatpush1.bf16.msra.mxu0 0
        %1396 = vmatprep.subr.bf16.mxu0 0
        %1397 = vmatpush1.bf16.msra.mxu0 0
        %1398 = vmatprep.subr.bf16.mxu0 0
        %1399 = vmatpush1.bf16.msra.mxu0 0
        %1400 = vmatprep.subr.bf16.mxu0 0
        %1401 = vmatpush1.bf16.msra.mxu0 0
        %1402 = vmatprep.subr.bf16.mxu0 0
        %1403 = vmatpush1.bf16.msra.mxu0 0
        %1404 = vmatprep.subr.bf16.mxu0 0
        %1405 = vmatpush1.bf16.msra.mxu0 0
        %1406 = vmatprep.subr.bf16.mxu0 0
        %1407 = vmatpush1.bf16.msra.mxu0 0
        %1408 = vmatprep.subr.bf16.mxu0 0
        %1409 = vmatpush1.bf16.msra.mxu0 0
        %1410 = vmatprep.subr.bf16.mxu0 0
        %1411 = vmatpush1.bf16.msra.mxu0 0
        %1412 = vmatprep.subr.bf16.mxu0 0
        %1413 = vmatpush1.bf16.msra.mxu0 0
        %1414 = vmatprep.subr.bf16.mxu0 0
        %1415 = vmatpush1.bf16.msra.mxu0 0
        %1416 = vmatprep.subr.bf16.mxu0 0
        %1417 = vmatpush1.bf16.msra.mxu0 0
        %1418 = vmatprep.subr.bf16.mxu0 0
        %1419 = vmatpush1.bf16.msra.mxu0 0
        %1420 = vmatprep.mubr.bf16.mxu0 0
        %1421 = vmatmul.mubr.bf16.gmra.mrb[0].mxu0 %v1382
        %v1422 = vpop.f32.mrb[0].mxu0
        %v1423 = vadd.f32 0.0, %v1422
        %v1424 = vpop.f32.mrb[0].mxu0
        %v1425 = vpop.f32.mrb[0].mxu0
        %v1426 = vpop.f32.mrb[0].mxu0
        %1427 = vdwg.mxu0
        %v1428 = vpack.c.bf16 %v1423, %v1423
        %v1429 = vld [vmem:[%s19] sm:$0x3]
        %s1430 = scalar_lea.vmem %s19, 2
        %v1431 = vld [vmem:[%s1430] sm:$0x3]
        %1433 = vrot.lane.b32.xlu0 %v1428, 120
        %v1434 = vpop.permute.xlu0 %1433
        %vm1435 = vcmask 64512
        %v1437 = vsel %vm1435, %v1431, 0
        %vm1439 = vcmask 1043456
        %v1441 = vsel %vm1439, %v1434, 0
        %1443 = vmatprep.subr.bf16.mxu0 0
        %1444 = vmatpush1.bf16.msra.mxu0 %v1441
        %1445 = vmatprep.subr.bf16.mxu0 0
        %1446 = vmatpush1.bf16.msra.mxu0 0
        %1447 = vmatprep.subr.bf16.mxu0 0
        %1448 = vmatpush1.bf16.msra.mxu0 0
        %1449 = vmatprep.subr.bf16.mxu0 0
        %1450 = vmatpush1.bf16.msra.mxu0 0
        %1451 = vmatprep.subr.bf16.mxu0 0
        %1452 = vmatpush1.bf16.msra.mxu0 0
        %1453 = vmatprep.subr.bf16.mxu0 0
        %1454 = vmatpush1.bf16.msra.mxu0 0
        %1455 = vmatprep.subr.bf16.mxu0 0
        %1456 = vmatpush1.bf16.msra.mxu0 0
        %1457 = vmatprep.subr.bf16.mxu0 0
        %1458 = vmatpush1.bf16.msra.mxu0 0
        %1459 = vmatprep.subr.bf16.mxu0 0
        %1460 = vmatpush1.bf16.msra.mxu0 0
        %1461 = vmatprep.subr.bf16.mxu0 0
        %1462 = vmatpush1.bf16.msra.mxu0 0
        %1463 = vmatprep.subr.bf16.mxu0 0
        %1464 = vmatpush1.bf16.msra.mxu0 0
        %1465 = vmatprep.subr.bf16.mxu0 0
        %1466 = vmatpush1.bf16.msra.mxu0 0
        %1467 = vmatprep.subr.bf16.mxu0 0
        %1468 = vmatpush1.bf16.msra.mxu0 0
        %1469 = vmatprep.subr.bf16.mxu0 0
        %1470 = vmatpush1.bf16.msra.mxu0 0
        %1471 = vmatprep.subr.bf16.mxu0 0
        %1472 = vmatpush1.bf16.msra.mxu0 0
        %1473 = vmatprep.subr.bf16.mxu0 0
        %1474 = vmatpush1.bf16.msra.mxu0 0
        %1475 = vmatprep.mubr.bf16.mxu0 0
        %1476 = vmatmul.mubr.bf16.gmra.mrb[0].mxu0 %v1437
        %v1477 = vpop.f32.mrb[0].mxu0
        %v1478 = vadd.f32 0.0, %v1477
        %v1479 = vpop.f32.mrb[0].mxu0
        %v1480 = vpop.f32.mrb[0].mxu0
        %v1481 = vpop.f32.mrb[0].mxu0
        %1482 = vdwg.mxu0
        %v1484 = vsel %vm1435, %v1429, 0
        %v1487 = vsel %vm1439, %v1428, 0
        %1489 = vmatprep.subr.bf16.mxu0 0
        %1490 = vmatpush1.bf16.msra.mxu0 %v1487
        %1491 = vmatprep.subr.bf16.mxu0 0
        %1492 = vmatpush1.bf16.msra.mxu0 0
        %1493 = vmatprep.subr.bf16.mxu0 0
        %1494 = vmatpush1.bf16.msra.mxu0 0
        %1495 = vmatprep.subr.bf16.mxu0 0
        %1496 = vmatpush1.bf16.msra.mxu0 0
        %1497 = vmatprep.subr.bf16.mxu0 0
        %1498 = vmatpush1.bf16.msra.mxu0 0
        %1499 = vmatprep.subr.bf16.mxu0 0
        %1500 = vmatpush1.bf16.msra.mxu0 0
        %1501 = vmatprep.subr.bf16.mxu0 0
        %1502 = vmatpush1.bf16.msra.mxu0 0
        %1503 = vmatprep.subr.bf16.mxu0 0
        %1504 = vmatpush1.bf16.msra.mxu0 0
        %1505 = vmatprep.subr.bf16.mxu0 0
        %1506 = vmatpush1.bf16.msra.mxu0 0
        %1507 = vmatprep.subr.bf16.mxu0 0
        %1508 = vmatpush1.bf16.msra.mxu0 0
        %1509 = vmatprep.subr.bf16.mxu0 0
        %1510 = vmatpush1.bf16.msra.mxu0 0
        %1511 = vmatprep.subr.bf16.mxu0 0
        %1512 = vmatpush1.bf16.msra.mxu0 0
        %1513 = vmatprep.subr.bf16.mxu0 0
        %1514 = vmatpush1.bf16.msra.mxu0 0
        %1515 = vmatprep.subr.bf16.mxu0 0
        %1516 = vmatpush1.bf16.msra.mxu0 0
        %1517 = vmatprep.subr.bf16.mxu0 0
        %1518 = vmatpush1.bf16.msra.mxu0 0
        %1519 = vmatprep.subr.bf16.mxu0 0
        %1520 = vmatpush1.bf16.msra.mxu0 0
        %1521 = vmatprep.mubr.bf16.mxu0 0
        %1522 = vmatmul.mubr.bf16.gmra.mrb[0].mxu0 %v1484
        %v1523 = vpop.f32.mrb[0].mxu0
        %v1524 = vadd.f32 %v1478, %v1523
        %v1525 = vpop.f32.mrb[0].mxu0
        %v1526 = vpop.f32.mrb[0].mxu0
        %v1527 = vpop.f32.mrb[0].mxu0
        %1528 = vdwg.mxu0
        %s1529 = scalar_lea.vmem %s19, 4
        %v1530 = vld [vmem:[%s1529] sm:$0x3]
        %1531 = vrot.lane.b32.xlu0 %v1428, 112
        %v1532 = vpop.permute.xlu0 %1531
        %v1534 = vsel %vm1435, %v1530, 0
        %v1537 = vsel %vm1439, %v1532, 0
        %1539 = vmatprep.subr.bf16.mxu0 0
        %1540 = vmatpush1.bf16.msra.mxu0 %v1537
        %1541 = vmatprep.subr.bf16.mxu0 0
        %1542 = vmatpush1.bf16.msra.mxu0 0
        %1543 = vmatprep.subr.bf16.mxu0 0
        %1544 = vmatpush1.bf16.msra.mxu0 0
        %1545 = vmatprep.subr.bf16.mxu0 0
        %1546 = vmatpush1.bf16.msra.mxu0 0
        %1547 = vmatprep.subr.bf16.mxu0 0
        %1548 = vmatpush1.bf16.msra.mxu0 0
        %1549 = vmatprep.subr.bf16.mxu0 0
        %1550 = vmatpush1.bf16.msra.mxu0 0
        %1551 = vmatprep.subr.bf16.mxu0 0
        %1552 = vmatpush1.bf16.msra.mxu0 0
        %1553 = vmatprep.subr.bf16.mxu0 0
        %1554 = vmatpush1.bf16.msra.mxu0 0
        %1555 = vmatprep.subr.bf16.mxu0 0
        %1556 = vmatpush1.bf16.msra.mxu0 0
        %1557 = vmatprep.subr.bf16.mxu0 0
        %1558 = vmatpush1.bf16.msra.mxu0 0
        %1559 = vmatprep.subr.bf16.mxu0 0
        %1560 = vmatpush1.bf16.msra.mxu0 0
        %1561 = vmatprep.subr.bf16.mxu0 0
        %1562 = vmatpush1.bf16.msra.mxu0 0
        %1563 = vmatprep.subr.bf16.mxu0 0
        %1564 = vmatpush1.bf16.msra.mxu0 0
        %1565 = vmatprep.subr.bf16.mxu0 0
        %1566 = vmatpush1.bf16.msra.mxu0 0
        %1567 = vmatprep.subr.bf16.mxu0 0
        %1568 = vmatpush1.bf16.msra.mxu0 0
        %1569 = vmatprep.subr.bf16.mxu0 0
        %1570 = vmatpush1.bf16.msra.mxu0 0
        %1571 = vmatprep.mubr.bf16.mxu0 0
        %1572 = vmatmul.mubr.bf16.gmra.mrb[0].mxu0 %v1534
        %v1573 = vpop.f32.mrb[0].mxu0
        %v1574 = vadd.f32 0.0, %v1573
        %v1575 = vpop.f32.mrb[0].mxu0
        %v1576 = vpop.f32.mrb[0].mxu0
        %v1577 = vpop.f32.mrb[0].mxu0
        %1578 = vdwg.mxu0
        %v1579 = vadd.f32 %v1524, %v1574
        %v1580 = vtanh.pop %v1579
        %v1581 = vmul.f32 %v1580, 1.442695
        %v1582 = vpow.pop %v1581
        %v1583 = vmul.f32 %v1164, %v1582
        %v1584 = vld [vmem:[%s9] sm:$0xf]
        %v1585 = vld [vmem:[%s9 + $0x4] sm:$0xf]
        %v1588 = vunpack.c.l.b16 %v1584
        %v1589 = vunpack.c.l.b16 %v1585
        %v1590 = vpack.c.b16 %v1589, %v1588
        %1592 = vmatprep.subr.bf16.mxu0 0
        %1593 = vmatpush1.bf16.msra.mxu0 %v1590
        %1594 = vmatprep.subr.bf16.mxu0 0
        %1595 = vmatpush1.bf16.msra.mxu0 0
        %1596 = vmatprep.subr.bf16.mxu0 0
        %1597 = vmatpush1.bf16.msra.mxu0 0
        %1598 = vmatprep.subr.bf16.mxu0 0
        %1599 = vmatpush1.bf16.msra.mxu0 0
        %1600 = vmatprep.subr.bf16.mxu0 0
        %1601 = vmatpush1.bf16.msra.mxu0 0
        %1602 = vmatprep.subr.bf16.mxu0 0
        %1603 = vmatpush1.bf16.msra.mxu0 0
        %1604 = vmatprep.subr.bf16.mxu0 0
        %1605 = vmatpush1.bf16.msra.mxu0 0
        %1606 = vmatprep.subr.bf16.mxu0 0
        %1607 = vmatpush1.bf16.msra.mxu0 0
        %1608 = vmatprep.subr.bf16.mxu0 0
        %1609 = vmatpush1.bf16.msra.mxu0 0
        %1610 = vmatprep.subr.bf16.mxu0 0
        %1611 = vmatpush1.bf16.msra.mxu0 0
        %1612 = vmatprep.subr.bf16.mxu0 0
        %1613 = vmatpush1.bf16.msra.mxu0 0
        %1614 = vmatprep.subr.bf16.mxu0 0
        %1615 = vmatpush1.bf16.msra.mxu0 0
        %1616 = vmatprep.subr.bf16.mxu0 0
        %1617 = vmatpush1.bf16.msra.mxu0 0
        %1618 = vmatprep.subr.bf16.mxu0 0
        %1619 = vmatpush1.bf16.msra.mxu0 0
        %1620 = vmatprep.subr.bf16.mxu0 0
        %1621 = vmatpush1.bf16.msra.mxu0 0
        %1622 = vmatprep.subr.bf16.mxu0 0
        %1623 = vmatpush1.bf16.msra.mxu0 0
        %1624 = vmatprep.mubr.bf16.mxu0 0
        %1625 = vmatmul.mubr.bf16.gmra.mrb[0].mxu0 %v1079
        %v1626 = vpop.f32.mrb[0].mxu0
        %v1627 = vadd.f32 0.0, %v1626
        %v1628 = vpop.f32.mrb[0].mxu0
        %v1629 = vpop.f32.mrb[0].mxu0
        %v1630 = vpop.f32.mrb[0].mxu0
        %1631 = vdwg.mxu0
        %v1632 = vpack.c.bf16 %v1627, %v1627
        %v1633 = vld [vmem:[%s21] sm:$0xf]
        %s1634 = scalar_lea.vmem %s21, 4
        %v1635 = vld [vmem:[%s1634] sm:$0xf]
        %1637 = vrot.lane.b32.xlu0 %v1632, 118
        %v1638 = vpop.permute.xlu0 %1637
        %v1640 = vsel %vm1224, %v1635, 0
        %v1643 = vsel %vm1228, %v1638, 0
        %1645 = vmatprep.subr.bf16.mxu0 0
        %1646 = vmatpush1.bf16.msra.mxu0 %v1643
        %1647 = vmatprep.subr.bf16.mxu0 0
        %1648 = vmatpush1.bf16.msra.mxu0 0
        %1649 = vmatprep.subr.bf16.mxu0 0
        %1650 = vmatpush1.bf16.msra.mxu0 0
        %1651 = vmatprep.subr.bf16.mxu0 0
        %1652 = vmatpush1.bf16.msra.mxu0 0
        %1653 = vmatprep.subr.bf16.mxu0 0
        %1654 = vmatpush1.bf16.msra.mxu0 0
        %1655 = vmatprep.subr.bf16.mxu0 0
        %1656 = vmatpush1.bf16.msra.mxu0 0
        %1657 = vmatprep.subr.bf16.mxu0 0
        %1658 = vmatpush1.bf16.msra.mxu0 0
        %1659 = vmatprep.subr.bf16.mxu0 0
        %1660 = vmatpush1.bf16.msra.mxu0 0
        %1661 = vmatprep.subr.bf16.mxu0 0
        %1662 = vmatpush1.bf16.msra.mxu0 0
        %1663 = vmatprep.subr.bf16.mxu0 0
        %1664 = vmatpush1.bf16.msra.mxu0 0
        %1665 = vmatprep.subr.bf16.mxu0 0
        %1666 = vmatpush1.bf16.msra.mxu0 0
        %1667 = vmatprep.subr.bf16.mxu0 0
        %1668 = vmatpush1.bf16.msra.mxu0 0
        %1669 = vmatprep.subr.bf16.mxu0 0
        %1670 = vmatpush1.bf16.msra.mxu0 0
        %1671 = vmatprep.subr.bf16.mxu0 0
        %1672 = vmatpush1.bf16.msra.mxu0 0
        %1673 = vmatprep.subr.bf16.mxu0 0
        %1674 = vmatpush1.bf16.msra.mxu0 0
        %1675 = vmatprep.subr.bf16.mxu0 0
        %1676 = vmatpush1.bf16.msra.mxu0 0
        %1677 = vmatprep.mubr.bf16.mxu0 0
        %1678 = vmatmul.mubr.bf16.gmra.mrb[0].mxu0 %v1640
        %v1679 = vpop.f32.mrb[0].mxu0
        %v1680 = vadd.f32 0.0, %v1679
        %v1681 = vpop.f32.mrb[0].mxu0
        %v1682 = vpop.f32.mrb[0].mxu0
        %v1683 = vpop.f32.mrb[0].mxu0
        %1684 = vdwg.mxu0
        %v1686 = vsel %vm1224, %v1633, 0
        %v1689 = vsel %vm1228, %v1632, 0
        %1691 = vmatprep.subr.bf16.mxu0 0
        %1692 = vmatpush1.bf16.msra.mxu0 %v1689
        %1693 = vmatprep.subr.bf16.mxu0 0
        %1694 = vmatpush1.bf16.msra.mxu0 0
        %1695 = vmatprep.subr.bf16.mxu0 0
        %1696 = vmatpush1.bf16.msra.mxu0 0
        %1697 = vmatprep.subr.bf16.mxu0 0
        %1698 = vmatpush1.bf16.msra.mxu0 0
        %1699 = vmatprep.subr.bf16.mxu0 0
        %1700 = vmatpush1.bf16.msra.mxu0 0
        %1701 = vmatprep.subr.bf16.mxu0 0
        %1702 = vmatpush1.bf16.msra.mxu0 0
        %1703 = vmatprep.subr.bf16.mxu0 0
        %1704 = vmatpush1.bf16.msra.mxu0 0
        %1705 = vmatprep.subr.bf16.mxu0 0
        %1706 = vmatpush1.bf16.msra.mxu0 0
        %1707 = vmatprep.subr.bf16.mxu0 0
        %1708 = vmatpush1.bf16.msra.mxu0 0
        %1709 = vmatprep.subr.bf16.mxu0 0
        %1710 = vmatpush1.bf16.msra.mxu0 0
        %1711 = vmatprep.subr.bf16.mxu0 0
        %1712 = vmatpush1.bf16.msra.mxu0 0
        %1713 = vmatprep.subr.bf16.mxu0 0
        %1714 = vmatpush1.bf16.msra.mxu0 0
        %1715 = vmatprep.subr.bf16.mxu0 0
        %1716 = vmatpush1.bf16.msra.mxu0 0
        %1717 = vmatprep.subr.bf16.mxu0 0
        %1718 = vmatpush1.bf16.msra.mxu0 0
        %1719 = vmatprep.subr.bf16.mxu0 0
        %1720 = vmatpush1.bf16.msra.mxu0 0
        %1721 = vmatprep.subr.bf16.mxu0 0
        %1722 = vmatpush1.bf16.msra.mxu0 0
        %1723 = vmatprep.mubr.bf16.mxu0 0
        %1724 = vmatmul.mubr.bf16.gmra.mrb[0].mxu0 %v1686
        %v1725 = vpop.f32.mrb[0].mxu0
        %v1726 = vadd.f32 %v1680, %v1725
        %v1727 = vpop.f32.mrb[0].mxu0
        %v1728 = vpop.f32.mrb[0].mxu0
        %v1729 = vpop.f32.mrb[0].mxu0
        %1730 = vdwg.mxu0
        %s1731 = scalar_lea.vmem %s21, 8
        %v1732 = vld [vmem:[%s1731] sm:$0xf]
        %1733 = vrot.lane.b32.xlu0 %v1632, 108
        %v1734 = vpop.permute.xlu0 %1733
        %v1736 = vsel %vm1224, %v1732, 0
        %v1739 = vsel %vm1228, %v1734, 0
        %1741 = vmatprep.subr.bf16.mxu0 0
        %1742 = vmatpush1.bf16.msra.mxu0 %v1739
        %1743 = vmatprep.subr.bf16.mxu0 0
        %1744 = vmatpush1.bf16.msra.mxu0 0
        %1745 = vmatprep.subr.bf16.mxu0 0
        %1746 = vmatpush1.bf16.msra.mxu0 0
        %1747 = vmatprep.subr.bf16.mxu0 0
        %1748 = vmatpush1.bf16.msra.mxu0 0
        %1749 = vmatprep.subr.bf16.mxu0 0
        %1750 = vmatpush1.bf16.msra.mxu0 0
        %1751 = vmatprep.subr.bf16.mxu0 0
        %1752 = vmatpush1.bf16.msra.mxu0 0
        %1753 = vmatprep.subr.bf16.mxu0 0
        %1754 = vmatpush1.bf16.msra.mxu0 0
        %1755 = vmatprep.subr.bf16.mxu0 0
        %1756 = vmatpush1.bf16.msra.mxu0 0
        %1757 = vmatprep.subr.bf16.mxu0 0
        %1758 = vmatpush1.bf16.msra.mxu0 0
        %1759 = vmatprep.subr.bf16.mxu0 0
        %1760 = vmatpush1.bf16.msra.mxu0 0
        %1761 = vmatprep.subr.bf16.mxu0 0
        %1762 = vmatpush1.bf16.msra.mxu0 0
        %1763 = vmatprep.subr.bf16.mxu0 0
        %1764 = vmatpush1.bf16.msra.mxu0 0
        %1765 = vmatprep.subr.bf16.mxu0 0
        %1766 = vmatpush1.bf16.msra.mxu0 0
        %1767 = vmatprep.subr.bf16.mxu0 0
        %1768 = vmatpush1.bf16.msra.mxu0 0
        %1769 = vmatprep.subr.bf16.mxu0 0
        %1770 = vmatpush1.bf16.msra.mxu0 0
        %1771 = vmatprep.subr.bf16.mxu0 0
        %1772 = vmatpush1.bf16.msra.mxu0 0
        %1773 = vmatprep.mubr.bf16.mxu0 0
        %1774 = vmatmul.mubr.bf16.gmra.mrb[0].mxu0 %v1736
        %v1775 = vpop.f32.mrb[0].mxu0
        %v1776 = vadd.f32 0.0, %v1775
        %v1777 = vpop.f32.mrb[0].mxu0
        %v1778 = vpop.f32.mrb[0].mxu0
        %v1779 = vpop.f32.mrb[0].mxu0
        %1780 = vdwg.mxu0
        %v1781 = vadd.f32 %v1726, %v1776
        %vm1782 = vcmp.ge.f32.partialorder %v1781, 0.0
        %v1783 = vmul.f32 %v1781, 0.01
        %v1784 = vsel %vm1782, %v1781, %v1783
        %v1785 = vpack.c.bf16 %v1784, %v1784
        %v1787 = vsel %vm1380, %v1785, 0
        %1789 = vmatprep.subr.bf16.mxu0 0
        %1790 = vmatpush1.bf16.msra.mxu0 %v1386
        %1791 = vmatprep.subr.bf16.mxu0 0
        %1792 = vmatpush1.bf16.msra.mxu0 0
        %1793 = vmatprep.subr.bf16.mxu0 0
        %1794 = vmatpush1.bf16.msra.mxu0 0
        %1795 = vmatprep.subr.bf16.mxu0 0
        %1796 = vmatpush1.bf16.msra.mxu0 0
        %1797 = vmatprep.subr.bf16.mxu0 0
        %1798 = vmatpush1.bf16.msra.mxu0 0
        %1799 = vmatprep.subr.bf16.mxu0 0
        %1800 = vmatpush1.bf16.msra.mxu0 0
        %1801 = vmatprep.subr.bf16.mxu0 0
        %1802 = vmatpush1.bf16.msra.mxu0 0
        %1803 = vmatprep.subr.bf16.mxu0 0
        %1804 = vmatpush1.bf16.msra.mxu0 0
        %1805 = vmatprep.subr.bf16.mxu0 0
        %1806 = vmatpush1.bf16.msra.mxu0 0
        %1807 = vmatprep.subr.bf16.mxu0 0
        %1808 = vmatpush1.bf16.msra.mxu0 0
        %1809 = vmatprep.subr.bf16.mxu0 0
        %1810 = vmatpush1.bf16.msra.mxu0 0
        %1811 = vmatprep.subr.bf16.mxu0 0
        %1812 = vmatpush1.bf16.msra.mxu0 0
        %1813 = vmatprep.subr.bf16.mxu0 0
        %1814 = vmatpush1.bf16.msra.mxu0 0
        %1815 = vmatprep.subr.bf16.mxu0 0
        %1816 = vmatpush1.bf16.msra.mxu0 0
        %1817 = vmatprep.subr.bf16.mxu0 0
        %1818 = vmatpush1.bf16.msra.mxu0 0
        %1819 = vmatprep.subr.bf16.mxu0 0
        %1820 = vmatpush1.bf16.msra.mxu0 0
        %1821 = vmatprep.mubr.bf16.mxu0 0
        %1822 = vmatmul.mubr.bf16.gmra.mrb[0].mxu0 %v1787
        %v1823 = vpop.f32.mrb[0].mxu0
        %v1824 = vadd.f32 0.0, %v1823
        %v1825 = vpop.f32.mrb[0].mxu0
        %v1826 = vpop.f32.mrb[0].mxu0
        %v1827 = vpop.f32.mrb[0].mxu0
        %1828 = vdwg.mxu0
        %v1829 = vpack.c.bf16 %v1824, %v1824
        %v1830 = vld [vmem:[%s23] sm:$0x3]
        %s1831 = scalar_lea.vmem %s23, 2
        %v1832 = vld [vmem:[%s1831] sm:$0x3]
        %1834 = vrot.lane.b32.xlu0 %v1829, 120
        %v1835 = vpop.permute.xlu0 %1834
        %v1837 = vsel %vm1435, %v1832, 0
        %v1840 = vsel %vm1439, %v1835, 0
        %1842 = vmatprep.subr.bf16.mxu0 0
        %1843 = vmatpush1.bf16.msra.mxu0 %v1840
        %1844 = vmatprep.subr.bf16.mxu0 0
        %1845 = vmatpush1.bf16.msra.mxu0 0
        %1846 = vmatprep.subr.bf16.mxu0 0
        %1847 = vmatpush1.bf16.msra.mxu0 0
        %1848 = vmatprep.subr.bf16.mxu0 0
        %1849 = vmatpush1.bf16.msra.mxu0 0
        %1850 = vmatprep.subr.bf16.mxu0 0
        %1851 = vmatpush1.bf16.msra.mxu0 0
        %1852 = vmatprep.subr.bf16.mxu0 0
        %1853 = vmatpush1.bf16.msra.mxu0 0
        %1854 = vmatprep.subr.bf16.mxu0 0
        %1855 = vmatpush1.bf16.msra.mxu0 0
        %1856 = vmatprep.subr.bf16.mxu0 0
        %1857 = vmatpush1.bf16.msra.mxu0 0
        %1858 = vmatprep.subr.bf16.mxu0 0
        %1859 = vmatpush1.bf16.msra.mxu0 0
        %1860 = vmatprep.subr.bf16.mxu0 0
        %1861 = vmatpush1.bf16.msra.mxu0 0
        %1862 = vmatprep.subr.bf16.mxu0 0
        %1863 = vmatpush1.bf16.msra.mxu0 0
        %1864 = vmatprep.subr.bf16.mxu0 0
        %1865 = vmatpush1.bf16.msra.mxu0 0
        %1866 = vmatprep.subr.bf16.mxu0 0
        %1867 = vmatpush1.bf16.msra.mxu0 0
        %1868 = vmatprep.subr.bf16.mxu0 0
        %1869 = vmatpush1.bf16.msra.mxu0 0
        %1870 = vmatprep.subr.bf16.mxu0 0
        %1871 = vmatpush1.bf16.msra.mxu0 0
        %1872 = vmatprep.subr.bf16.mxu0 0
        %1873 = vmatpush1.bf16.msra.mxu0 0
        %1874 = vmatprep.mubr.bf16.mxu0 0
        %1875 = vmatmul.mubr.bf16.gmra.mrb[0].mxu0 %v1837
        %v1876 = vpop.f32.mrb[0].mxu0
        %v1877 = vadd.f32 0.0, %v1876
        %v1878 = vpop.f32.mrb[0].mxu0
        %v1879 = vpop.f32.mrb[0].mxu0
        %v1880 = vpop.f32.mrb[0].mxu0
        %1881 = vdwg.mxu0
        %v1883 = vsel %vm1435, %v1830, 0
        %v1886 = vsel %vm1439, %v1829, 0
        %1888 = vmatprep.subr.bf16.mxu0 0
        %1889 = vmatpush1.bf16.msra.mxu0 %v1886
        %1890 = vmatprep.subr.bf16.mxu0 0
        %1891 = vmatpush1.bf16.msra.mxu0 0
        %1892 = vmatprep.subr.bf16.mxu0 0
        %1893 = vmatpush1.bf16.msra.mxu0 0
        %1894 = vmatprep.subr.bf16.mxu0 0
        %1895 = vmatpush1.bf16.msra.mxu0 0
        %1896 = vmatprep.subr.bf16.mxu0 0
        %1897 = vmatpush1.bf16.msra.mxu0 0
        %1898 = vmatprep.subr.bf16.mxu0 0
        %1899 = vmatpush1.bf16.msra.mxu0 0
        %1900 = vmatprep.subr.bf16.mxu0 0
        %1901 = vmatpush1.bf16.msra.mxu0 0
        %1902 = vmatprep.subr.bf16.mxu0 0
        %1903 = vmatpush1.bf16.msra.mxu0 0
        %1904 = vmatprep.subr.bf16.mxu0 0
        %1905 = vmatpush1.bf16.msra.mxu0 0
        %1906 = vmatprep.subr.bf16.mxu0 0
        %1907 = vmatpush1.bf16.msra.mxu0 0
        %1908 = vmatprep.subr.bf16.mxu0 0
        %1909 = vmatpush1.bf16.msra.mxu0 0
        %1910 = vmatprep.subr.bf16.mxu0 0
        %1911 = vmatpush1.bf16.msra.mxu0 0
        %1912 = vmatprep.subr.bf16.mxu0 0
        %1913 = vmatpush1.bf16.msra.mxu0 0
        %1914 = vmatprep.subr.bf16.mxu0 0
        %1915 = vmatpush1.bf16.msra.mxu0 0
        %1916 = vmatprep.subr.bf16.mxu0 0
        %1917 = vmatpush1.bf16.msra.mxu0 0
        %1918 = vmatprep.subr.bf16.mxu0 0
        %1919 = vmatpush1.bf16.msra.mxu0 0
        %1920 = vmatprep.mubr.bf16.mxu0 0
        %1921 = vmatmul.mubr.bf16.gmra.mrb[0].mxu0 %v1883
        %v1922 = vpop.f32.mrb[0].mxu0
        %v1923 = vadd.f32 %v1877, %v1922
        %v1924 = vpop.f32.mrb[0].mxu0
        %v1925 = vpop.f32.mrb[0].mxu0
        %v1926 = vpop.f32.mrb[0].mxu0
        %1927 = vdwg.mxu0
        %s1928 = scalar_lea.vmem %s23, 4
        %v1929 = vld [vmem:[%s1928] sm:$0x3]
        %1930 = vrot.lane.b32.xlu0 %v1829, 112
        %v1931 = vpop.permute.xlu0 %1930
        %v1933 = vsel %vm1435, %v1929, 0
        %v1936 = vsel %vm1439, %v1931, 0
        %1938 = vmatprep.subr.bf16.mxu0 0
        %1939 = vmatpush1.bf16.msra.mxu0 %v1936
        %1940 = vmatprep.subr.bf16.mxu0 0
        %1941 = vmatpush1.bf16.msra.mxu0 0
        %1942 = vmatprep.subr.bf16.mxu0 0
        %1943 = vmatpush1.bf16.msra.mxu0 0
        %1944 = vmatprep.subr.bf16.mxu0 0
        %1945 = vmatpush1.bf16.msra.mxu0 0
        %1946 = vmatprep.subr.bf16.mxu0 0
        %1947 = vmatpush1.bf16.msra.mxu0 0
        %1948 = vmatprep.subr.bf16.mxu0 0
        %1949 = vmatpush1.bf16.msra.mxu0 0
        %1950 = vmatprep.subr.bf16.mxu0 0
        %1951 = vmatpush1.bf16.msra.mxu0 0
        %1952 = vmatprep.subr.bf16.mxu0 0
        %1953 = vmatpush1.bf16.msra.mxu0 0
        %1954 = vmatprep.subr.bf16.mxu0 0
        %1955 = vmatpush1.bf16.msra.mxu0 0
        %1956 = vmatprep.subr.bf16.mxu0 0
        %1957 = vmatpush1.bf16.msra.mxu0 0
        %1958 = vmatprep.subr.bf16.mxu0 0
        %1959 = vmatpush1.bf16.msra.mxu0 0
        %1960 = vmatprep.subr.bf16.mxu0 0
        %1961 = vmatpush1.bf16.msra.mxu0 0
        %1962 = vmatprep.subr.bf16.mxu0 0
        %1963 = vmatpush1.bf16.msra.mxu0 0
        %1964 = vmatprep.subr.bf16.mxu0 0
        %1965 = vmatpush1.bf16.msra.mxu0 0
        %1966 = vmatprep.subr.bf16.mxu0 0
        %1967 = vmatpush1.bf16.msra.mxu0 0
        %1968 = vmatprep.subr.bf16.mxu0 0
        %1969 = vmatpush1.bf16.msra.mxu0 0
        %1970 = vmatprep.mubr.bf16.mxu0 0
        %1971 = vmatmul.mubr.bf16.gmra.mrb[0].mxu0 %v1933
        %v1972 = vpop.f32.mrb[0].mxu0
        %v1973 = vadd.f32 0.0, %v1972
        %v1974 = vpop.f32.mrb[0].mxu0
        %v1975 = vpop.f32.mrb[0].mxu0
        %v1976 = vpop.f32.mrb[0].mxu0
        %1977 = vdwg.mxu0
        %v1978 = vadd.f32 %v1923, %v1973
        %v1979 = vtanh.pop %v1978
        %v1980 = vmul.f32 %v1979, 1.442695
        %v1981 = vpow.pop %v1980
        %v1982 = vmul.f32 %v1116, %v1981
        %v1983 = vpack.c.bf16 %v1982, %v1982
        %v1984 = vld [vmem:[%s11] sm:$0xf]
        %v1986 = vsel %vm1435, %v1983, 0
        %v1989 = vsel %vm1439, %v1984, 0
        %1991 = vmatprep.subr.bf16.mxu0 0
        %1992 = vmatpush1.bf16.msra.mxu0 %v1989
        %1993 = vmatprep.subr.bf16.mxu0 0
        %1994 = vmatpush1.bf16.msra.mxu0 0
        %1995 = vmatprep.subr.bf16.mxu0 0
        %1996 = vmatpush1.bf16.msra.mxu0 0
        %1997 = vmatprep.subr.bf16.mxu0 0
        %1998 = vmatpush1.bf16.msra.mxu0 0
        %1999 = vmatprep.subr.bf16.mxu0 0
        %2000 = vmatpush1.bf16.msra.mxu0 0
        %2001 = vmatprep.subr.bf16.mxu0 0
        %2002 = vmatpush1.bf16.msra.mxu0 0
        %2003 = vmatprep.subr.bf16.mxu0 0
        %2004 = vmatpush1.bf16.msra.mxu0 0
        %2005 = vmatprep.subr.bf16.mxu0 0
        %2006 = vmatpush1.bf16.msra.mxu0 0
        %2007 = vmatprep.subr.bf16.mxu0 0
        %2008 = vmatpush1.bf16.msra.mxu0 0
        %2009 = vmatprep.subr.bf16.mxu0 0
        %2010 = vmatpush1.bf16.msra.mxu0 0
        %2011 = vmatprep.subr.bf16.mxu0 0
        %2012 = vmatpush1.bf16.msra.mxu0 0
        %2013 = vmatprep.subr.bf16.mxu0 0
        %2014 = vmatpush1.bf16.msra.mxu0 0
        %2015 = vmatprep.subr.bf16.mxu0 0
        %2016 = vmatpush1.bf16.msra.mxu0 0
        %2017 = vmatprep.subr.bf16.mxu0 0
        %2018 = vmatpush1.bf16.msra.mxu0 0
        %2019 = vmatprep.subr.bf16.mxu0 0
        %2020 = vmatpush1.bf16.msra.mxu0 0
        %2021 = vmatprep.subr.bf16.mxu0 0
        %2022 = vmatpush1.bf16.msra.mxu0 0
        %2023 = vmatprep.mubr.bf16.mxu0 0
        %2024 = vmatmul.mubr.bf16.gmra.mrb[0].mxu0 %v1986
        %v2025 = vpop.f32.mrb[0].mxu0
        %v2026 = vadd.f32 0.0, %v2025
        %v2027 = vpop.f32.mrb[0].mxu0
        %v2028 = vpop.f32.mrb[0].mxu0
        %v2029 = vpop.f32.mrb[0].mxu0
        %2030 = vdwg.mxu0
        %v2031 = vpack.c.bf16 %v2026, %v2026
        %v2032 = vld [vmem:[%s25] sm:$0xf]
        %s2033 = scalar_lea.vmem %s25, 4
        %v2034 = vld [vmem:[%s2033] sm:$0xf]
        %2036 = vrot.lane.b32.xlu0 %v2031, 118
        %v2037 = vpop.permute.xlu0 %2036
        %v2039 = vsel %vm1224, %v2034, 0
        %v2042 = vsel %vm1228, %v2037, 0
        %2044 = vmatprep.subr.bf16.mxu0 0
        %2045 = vmatpush1.bf16.msra.mxu0 %v2042
        %2046 = vmatprep.subr.bf16.mxu0 0
        %2047 = vmatpush1.bf16.msra.mxu0 0
        %2048 = vmatprep.subr.bf16.mxu0 0
        %2049 = vmatpush1.bf16.msra.mxu0 0
        %2050 = vmatprep.subr.bf16.mxu0 0
        %2051 = vmatpush1.bf16.msra.mxu0 0
        %2052 = vmatprep.subr.bf16.mxu0 0
        %2053 = vmatpush1.bf16.msra.mxu0 0
        %2054 = vmatprep.subr.bf16.mxu0 0
        %2055 = vmatpush1.bf16.msra.mxu0 0
        %2056 = vmatprep.subr.bf16.mxu0 0
        %2057 = vmatpush1.bf16.msra.mxu0 0
        %2058 = vmatprep.subr.bf16.mxu0 0
        %2059 = vmatpush1.bf16.msra.mxu0 0
        %2060 = vmatprep.subr.bf16.mxu0 0
        %2061 = vmatpush1.bf16.msra.mxu0 0
        %2062 = vmatprep.subr.bf16.mxu0 0
        %2063 = vmatpush1.bf16.msra.mxu0 0
        %2064 = vmatprep.subr.bf16.mxu0 0
        %2065 = vmatpush1.bf16.msra.mxu0 0
        %2066 = vmatprep.subr.bf16.mxu0 0
        %2067 = vmatpush1.bf16.msra.mxu0 0
        %2068 = vmatprep.subr.bf16.mxu0 0
        %2069 = vmatpush1.bf16.msra.mxu0 0
        %2070 = vmatprep.subr.bf16.mxu0 0
        %2071 = vmatpush1.bf16.msra.mxu0 0
        %2072 = vmatprep.subr.bf16.mxu0 0
        %2073 = vmatpush1.bf16.msra.mxu0 0
        %2074 = vmatprep.subr.bf16.mxu0 0
        %2075 = vmatpush1.bf16.msra.mxu0 0
        %2076 = vmatprep.mubr.bf16.mxu0 0
        %2077 = vmatmul.mubr.bf16.gmra.mrb[0].mxu0 %v2039
        %v2078 = vpop.f32.mrb[0].mxu0
        %v2079 = vadd.f32 0.0, %v2078
        %v2080 = vpop.f32.mrb[0].mxu0
        %v2081 = vpop.f32.mrb[0].mxu0
        %v2082 = vpop.f32.mrb[0].mxu0
        %2083 = vdwg.mxu0
        %v2085 = vsel %vm1224, %v2032, 0
        %v2088 = vsel %vm1228, %v2031, 0
        %2090 = vmatprep.subr.bf16.mxu0 0
        %2091 = vmatpush1.bf16.msra.mxu0 %v2088
        %2092 = vmatprep.subr.bf16.mxu0 0
        %2093 = vmatpush1.bf16.msra.mxu0 0
        %2094 = vmatprep.subr.bf16.mxu0 0
        %2095 = vmatpush1.bf16.msra.mxu0 0
        %2096 = vmatprep.subr.bf16.mxu0 0
        %2097 = vmatpush1.bf16.msra.mxu0 0
        %2098 = vmatprep.subr.bf16.mxu0 0
        %2099 = vmatpush1.bf16.msra.mxu0 0
        %2100 = vmatprep.subr.bf16.mxu0 0
        %2101 = vmatpush1.bf16.msra.mxu0 0
        %2102 = vmatprep.subr.bf16.mxu0 0
        %2103 = vmatpush1.bf16.msra.mxu0 0
        %2104 = vmatprep.subr.bf16.mxu0 0
        %2105 = vmatpush1.bf16.msra.mxu0 0
        %2106 = vmatprep.subr.bf16.mxu0 0
        %2107 = vmatpush1.bf16.msra.mxu0 0
        %2108 = vmatprep.subr.bf16.mxu0 0
        %2109 = vmatpush1.bf16.msra.mxu0 0
        %2110 = vmatprep.subr.bf16.mxu0 0
        %2111 = vmatpush1.bf16.msra.mxu0 0
        %2112 = vmatprep.subr.bf16.mxu0 0
        %2113 = vmatpush1.bf16.msra.mxu0 0
        %2114 = vmatprep.subr.bf16.mxu0 0
        %2115 = vmatpush1.bf16.msra.mxu0 0
        %2116 = vmatprep.subr.bf16.mxu0 0
        %2117 = vmatpush1.bf16.msra.mxu0 0
        %2118 = vmatprep.subr.bf16.mxu0 0
        %2119 = vmatpush1.bf16.msra.mxu0 0
        %2120 = vmatprep.subr.bf16.mxu0 0
        %2121 = vmatpush1.bf16.msra.mxu0 0
        %2122 = vmatprep.mubr.bf16.mxu0 0
        %2123 = vmatmul.mubr.bf16.gmra.mrb[0].mxu0 %v2085
        %v2124 = vpop.f32.mrb[0].mxu0
        %v2125 = vadd.f32 %v2079, %v2124
        %v2126 = vpop.f32.mrb[0].mxu0
        %v2127 = vpop.f32.mrb[0].mxu0
        %v2128 = vpop.f32.mrb[0].mxu0
        %2129 = vdwg.mxu0
        %s2130 = scalar_lea.vmem %s25, 8
        %v2131 = vld [vmem:[%s2130] sm:$0xf]
        %2132 = vrot.lane.b32.xlu0 %v2031, 108
        %v2133 = vpop.permute.xlu0 %2132
        %v2135 = vsel %vm1224, %v2131, 0
        %v2138 = vsel %vm1228, %v2133, 0
        %2140 = vmatprep.subr.bf16.mxu0 0
        %2141 = vmatpush1.bf16.msra.mxu0 %v2138
        %2142 = vmatprep.subr.bf16.mxu0 0
        %2143 = vmatpush1.bf16.msra.mxu0 0
        %2144 = vmatprep.subr.bf16.mxu0 0
        %2145 = vmatpush1.bf16.msra.mxu0 0
        %2146 = vmatprep.subr.bf16.mxu0 0
        %2147 = vmatpush1.bf16.msra.mxu0 0
        %2148 = vmatprep.subr.bf16.mxu0 0
        %2149 = vmatpush1.bf16.msra.mxu0 0
        %2150 = vmatprep.subr.bf16.mxu0 0
        %2151 = vmatpush1.bf16.msra.mxu0 0
        %2152 = vmatprep.subr.bf16.mxu0 0
        %2153 = vmatpush1.bf16.msra.mxu0 0
        %2154 = vmatprep.subr.bf16.mxu0 0
        %2155 = vmatpush1.bf16.msra.mxu0 0
        %2156 = vmatprep.subr.bf16.mxu0 0
        %2157 = vmatpush1.bf16.msra.mxu0 0
        %2158 = vmatprep.subr.bf16.mxu0 0
        %2159 = vmatpush1.bf16.msra.mxu0 0
        %2160 = vmatprep.subr.bf16.mxu0 0
        %2161 = vmatpush1.bf16.msra.mxu0 0
        %2162 = vmatprep.subr.bf16.mxu0 0
        %2163 = vmatpush1.bf16.msra.mxu0 0
        %2164 = vmatprep.subr.bf16.mxu0 0
        %2165 = vmatpush1.bf16.msra.mxu0 0
        %2166 = vmatprep.subr.bf16.mxu0 0
        %2167 = vmatpush1.bf16.msra.mxu0 0
        %2168 = vmatprep.subr.bf16.mxu0 0
        %2169 = vmatpush1.bf16.msra.mxu0 0
        %2170 = vmatprep.subr.bf16.mxu0 0
        %2171 = vmatpush1.bf16.msra.mxu0 0
        %2172 = vmatprep.mubr.bf16.mxu0 0
        %2173 = vmatmul.mubr.bf16.gmra.mrb[0].mxu0 %v2135
        %v2174 = vpop.f32.mrb[0].mxu0
        %v2175 = vadd.f32 0.0, %v2174
        %v2176 = vpop.f32.mrb[0].mxu0
        %v2177 = vpop.f32.mrb[0].mxu0
        %v2178 = vpop.f32.mrb[0].mxu0
        %2179 = vdwg.mxu0
        %v2180 = vadd.f32 %v2125, %v2175
        %vm2181 = vcmp.ge.f32.partialorder %v2180, 0.0
        %v2182 = vmul.f32 %v2180, 0.01
        %v2183 = vsel %vm2181, %v2180, %v2182
        %v2184 = vpack.c.bf16 %v2183, %v2183
        %v2186 = vsel %vm1380, %v2184, 0
        %2188 = vmatprep.subr.bf16.mxu0 0
        %2189 = vmatpush1.bf16.msra.mxu0 %v1386
        %2190 = vmatprep.subr.bf16.mxu0 0
        %2191 = vmatpush1.bf16.msra.mxu0 0
        %2192 = vmatprep.subr.bf16.mxu0 0
        %2193 = vmatpush1.bf16.msra.mxu0 0
        %2194 = vmatprep.subr.bf16.mxu0 0
        %2195 = vmatpush1.bf16.msra.mxu0 0
        %2196 = vmatprep.subr.bf16.mxu0 0
        %2197 = vmatpush1.bf16.msra.mxu0 0
        %2198 = vmatprep.subr.bf16.mxu0 0
        %2199 = vmatpush1.bf16.msra.mxu0 0
        %2200 = vmatprep.subr.bf16.mxu0 0
        %2201 = vmatpush1.bf16.msra.mxu0 0
        %2202 = vmatprep.subr.bf16.mxu0 0
        %2203 = vmatpush1.bf16.msra.mxu0 0
        %2204 = vmatprep.subr.bf16.mxu0 0
        %2205 = vmatpush1.bf16.msra.mxu0 0
        %2206 = vmatprep.subr.bf16.mxu0 0
        %2207 = vmatpush1.bf16.msra.mxu0 0
        %2208 = vmatprep.subr.bf16.mxu0 0
        %2209 = vmatpush1.bf16.msra.mxu0 0
        %2210 = vmatprep.subr.bf16.mxu0 0
        %2211 = vmatpush1.bf16.msra.mxu0 0
        %2212 = vmatprep.subr.bf16.mxu0 0
        %2213 = vmatpush1.bf16.msra.mxu0 0
        %2214 = vmatprep.subr.bf16.mxu0 0
        %2215 = vmatpush1.bf16.msra.mxu0 0
        %2216 = vmatprep.subr.bf16.mxu0 0
        %2217 = vmatpush1.bf16.msra.mxu0 0
        %2218 = vmatprep.subr.bf16.mxu0 0
        %2219 = vmatpush1.bf16.msra.mxu0 0
        %2220 = vmatprep.mubr.bf16.mxu0 0
        %2221 = vmatmul.mubr.bf16.gmra.mrb[0].mxu0 %v2186
        %v2222 = vpop.f32.mrb[0].mxu0
        %v2223 = vadd.f32 0.0, %v2222
        %v2224 = vpop.f32.mrb[0].mxu0
        %v2225 = vpop.f32.mrb[0].mxu0
        %v2226 = vpop.f32.mrb[0].mxu0
        %2227 = vdwg.mxu0
        %v2228 = vpack.c.bf16 %v2223, %v2223
        %v2229 = vld [vmem:[%s27] sm:$0x3]
        %s2230 = scalar_lea.vmem %s27, 2
        %v2231 = vld [vmem:[%s2230] sm:$0x3]
        %2233 = vrot.lane.b32.xlu0 %v2228, 120
        %v2234 = vpop.permute.xlu0 %2233
        %v2236 = vsel %vm1435, %v2231, 0
        %v2239 = vsel %vm1439, %v2234, 0
        %2241 = vmatprep.subr.bf16.mxu0 0
        %2242 = vmatpush1.bf16.msra.mxu0 %v2239
        %2243 = vmatprep.subr.bf16.mxu0 0
        %2244 = vmatpush1.bf16.msra.mxu0 0
        %2245 = vmatprep.subr.bf16.mxu0 0
        %2246 = vmatpush1.bf16.msra.mxu0 0
        %2247 = vmatprep.subr.bf16.mxu0 0
        %2248 = vmatpush1.bf16.msra.mxu0 0
        %2249 = vmatprep.subr.bf16.mxu0 0
        %2250 = vmatpush1.bf16.msra.mxu0 0
        %2251 = vmatprep.subr.bf16.mxu0 0
        %2252 = vmatpush1.bf16.msra.mxu0 0
        %2253 = vmatprep.subr.bf16.mxu0 0
        %2254 = vmatpush1.bf16.msra.mxu0 0
        %2255 = vmatprep.subr.bf16.mxu0 0
        %2256 = vmatpush1.bf16.msra.mxu0 0
        %2257 = vmatprep.subr.bf16.mxu0 0
        %2258 = vmatpush1.bf16.msra.mxu0 0
        %2259 = vmatprep.subr.bf16.mxu0 0
        %2260 = vmatpush1.bf16.msra.mxu0 0
        %2261 = vmatprep.subr.bf16.mxu0 0
        %2262 = vmatpush1.bf16.msra.mxu0 0
        %2263 = vmatprep.subr.bf16.mxu0 0
        %2264 = vmatpush1.bf16.msra.mxu0 0
        %2265 = vmatprep.subr.bf16.mxu0 0
        %2266 = vmatpush1.bf16.msra.mxu0 0
        %2267 = vmatprep.subr.bf16.mxu0 0
        %2268 = vmatpush1.bf16.msra.mxu0 0
        %2269 = vmatprep.subr.bf16.mxu0 0
        %2270 = vmatpush1.bf16.msra.mxu0 0
        %2271 = vmatprep.subr.bf16.mxu0 0
        %2272 = vmatpush1.bf16.msra.mxu0 0
        %2273 = vmatprep.mubr.bf16.mxu0 0
        %2274 = vmatmul.mubr.bf16.gmra.mrb[0].mxu0 %v2236
        %v2275 = vpop.f32.mrb[0].mxu0
        %v2276 = vadd.f32 0.0, %v2275
        %v2277 = vpop.f32.mrb[0].mxu0
        %v2278 = vpop.f32.mrb[0].mxu0
        %v2279 = vpop.f32.mrb[0].mxu0
        %2280 = vdwg.mxu0
        %v2282 = vsel %vm1435, %v2229, 0
        %v2285 = vsel %vm1439, %v2228, 0
        %2287 = vmatprep.subr.bf16.mxu0 0
        %2288 = vmatpush1.bf16.msra.mxu0 %v2285
        %2289 = vmatprep.subr.bf16.mxu0 0
        %2290 = vmatpush1.bf16.msra.mxu0 0
        %2291 = vmatprep.subr.bf16.mxu0 0
        %2292 = vmatpush1.bf16.msra.mxu0 0
        %2293 = vmatprep.subr.bf16.mxu0 0
        %2294 = vmatpush1.bf16.msra.mxu0 0
        %2295 = vmatprep.subr.bf16.mxu0 0
        %2296 = vmatpush1.bf16.msra.mxu0 0
        %2297 = vmatprep.subr.bf16.mxu0 0
        %2298 = vmatpush1.bf16.msra.mxu0 0
        %2299 = vmatprep.subr.bf16.mxu0 0
        %2300 = vmatpush1.bf16.msra.mxu0 0
        %2301 = vmatprep.subr.bf16.mxu0 0
        %2302 = vmatpush1.bf16.msra.mxu0 0
        %2303 = vmatprep.subr.bf16.mxu0 0
        %2304 = vmatpush1.bf16.msra.mxu0 0
        %2305 = vmatprep.subr.bf16.mxu0 0
        %2306 = vmatpush1.bf16.msra.mxu0 0
        %2307 = vmatprep.subr.bf16.mxu0 0
        %2308 = vmatpush1.bf16.msra.mxu0 0
        %2309 = vmatprep.subr.bf16.mxu0 0
        %2310 = vmatpush1.bf16.msra.mxu0 0
        %2311 = vmatprep.subr.bf16.mxu0 0
        %2312 = vmatpush1.bf16.msra.mxu0 0
        %2313 = vmatprep.subr.bf16.mxu0 0
        %2314 = vmatpush1.bf16.msra.mxu0 0
        %2315 = vmatprep.subr.bf16.mxu0 0
        %2316 = vmatpush1.bf16.msra.mxu0 0
        %2317 = vmatprep.subr.bf16.mxu0 0
        %2318 = vmatpush1.bf16.msra.mxu0 0
        %2319 = vmatprep.mubr.bf16.mxu0 0
        %2320 = vmatmul.mubr.bf16.gmra.mrb[0].mxu0 %v2282
        %v2321 = vpop.f32.mrb[0].mxu0
        %v2322 = vadd.f32 %v2276, %v2321
        %v2323 = vpop.f32.mrb[0].mxu0
        %v2324 = vpop.f32.mrb[0].mxu0
        %v2325 = vpop.f32.mrb[0].mxu0
        %2326 = vdwg.mxu0
        %s2327 = scalar_lea.vmem %s27, 4
        %v2328 = vld [vmem:[%s2327] sm:$0x3]
        %2329 = vrot.lane.b32.xlu0 %v2228, 112
        %v2330 = vpop.permute.xlu0 %2329
        %v2332 = vsel %vm1435, %v2328, 0
        %v2335 = vsel %vm1439, %v2330, 0
        %2337 = vmatprep.subr.bf16.mxu0 0
        %2338 = vmatpush1.bf16.msra.mxu0 %v2335
        %2339 = vmatprep.subr.bf16.mxu0 0
        %2340 = vmatpush1.bf16.msra.mxu0 0
        %2341 = vmatprep.subr.bf16.mxu0 0
        %2342 = vmatpush1.bf16.msra.mxu0 0
        %2343 = vmatprep.subr.bf16.mxu0 0
        %2344 = vmatpush1.bf16.msra.mxu0 0
        %2345 = vmatprep.subr.bf16.mxu0 0
        %2346 = vmatpush1.bf16.msra.mxu0 0
        %2347 = vmatprep.subr.bf16.mxu0 0
        %2348 = vmatpush1.bf16.msra.mxu0 0
        %2349 = vmatprep.subr.bf16.mxu0 0
        %2350 = vmatpush1.bf16.msra.mxu0 0
        %2351 = vmatprep.subr.bf16.mxu0 0
        %2352 = vmatpush1.bf16.msra.mxu0 0
        %2353 = vmatprep.subr.bf16.mxu0 0
        %2354 = vmatpush1.bf16.msra.mxu0 0
        %2355 = vmatprep.subr.bf16.mxu0 0
        %2356 = vmatpush1.bf16.msra.mxu0 0
        %2357 = vmatprep.subr.bf16.mxu0 0
        %2358 = vmatpush1.bf16.msra.mxu0 0
        %2359 = vmatprep.subr.bf16.mxu0 0
        %2360 = vmatpush1.bf16.msra.mxu0 0
        %2361 = vmatprep.subr.bf16.mxu0 0
        %2362 = vmatpush1.bf16.msra.mxu0 0
        %2363 = vmatprep.subr.bf16.mxu0 0
        %2364 = vmatpush1.bf16.msra.mxu0 0
        %2365 = vmatprep.subr.bf16.mxu0 0
        %2366 = vmatpush1.bf16.msra.mxu0 0
        %2367 = vmatprep.subr.bf16.mxu0 0
        %2368 = vmatpush1.bf16.msra.mxu0 0
        %2369 = vmatprep.mubr.bf16.mxu0 0
        %2370 = vmatmul.mubr.bf16.gmra.mrb[0].mxu0 %v2332
        %v2371 = vpop.f32.mrb[0].mxu0
        %v2372 = vadd.f32 0.0, %v2371
        %v2373 = vpop.f32.mrb[0].mxu0
        %v2374 = vpop.f32.mrb[0].mxu0
        %v2375 = vpop.f32.mrb[0].mxu0
        %2376 = vdwg.mxu0
        %v2377 = vadd.f32 %v2322, %v2372
        %v2378 = vtanh.pop %v2377
        %v2379 = vsub.f32 %v1982, %v2378
        %v2380 = vpack.c.bf16 %v1583, %v1583
        %v2382 = vsel %vm1435, %v2380, 0
        %2384 = vmatprep.subr.bf16.mxu0 0
        %2385 = vmatpush1.bf16.msra.mxu0 %v1989
        %2386 = vmatprep.subr.bf16.mxu0 0
        %2387 = vmatpush1.bf16.msra.mxu0 0
        %2388 = vmatprep.subr.bf16.mxu0 0
        %2389 = vmatpush1.bf16.msra.mxu0 0
        %2390 = vmatprep.subr.bf16.mxu0 0
        %2391 = vmatpush1.bf16.msra.mxu0 0
        %2392 = vmatprep.subr.bf16.mxu0 0
        %2393 = vmatpush1.bf16.msra.mxu0 0
        %2394 = vmatprep.subr.bf16.mxu0 0
        %2395 = vmatpush1.bf16.msra.mxu0 0
        %2396 = vmatprep.subr.bf16.mxu0 0
        %2397 = vmatpush1.bf16.msra.mxu0 0
        %2398 = vmatprep.subr.bf16.mxu0 0
        %2399 = vmatpush1.bf16.msra.mxu0 0
        %2400 = vmatprep.subr.bf16.mxu0 0
        %2401 = vmatpush1.bf16.msra.mxu0 0
        %2402 = vmatprep.subr.bf16.mxu0 0
        %2403 = vmatpush1.bf16.msra.mxu0 0
        %2404 = vmatprep.subr.bf16.mxu0 0
        %2405 = vmatpush1.bf16.msra.mxu0 0
        %2406 = vmatprep.subr.bf16.mxu0 0
        %2407 = vmatpush1.bf16.msra.mxu0 0
        %2408 = vmatprep.subr.bf16.mxu0 0
        %2409 = vmatpush1.bf16.msra.mxu0 0
        %2410 = vmatprep.subr.bf16.mxu0 0
        %2411 = vmatpush1.bf16.msra.mxu0 0
        %2412 = vmatprep.subr.bf16.mxu0 0
        %2413 = vmatpush1.bf16.msra.mxu0 0
        %2414 = vmatprep.subr.bf16.mxu0 0
        %2415 = vmatpush1.bf16.msra.mxu0 0
        %2416 = vmatprep.mubr.bf16.mxu0 0
        %2417 = vmatmul.mubr.bf16.gmra.mrb[0].mxu0 %v2382
        %v2418 = vpop.f32.mrb[0].mxu0
        %v2419 = vadd.f32 0.0, %v2418
        %v2420 = vpop.f32.mrb[0].mxu0
        %v2421 = vpop.f32.mrb[0].mxu0
        %v2422 = vpop.f32.mrb[0].mxu0
        %2423 = vdwg.mxu0
        %v2424 = vpack.c.bf16 %v2419, %v2419
        %v2425 = vld [vmem:[%s29] sm:$0xf]
        %s2426 = scalar_lea.vmem %s29, 4
        %v2427 = vld [vmem:[%s2426] sm:$0xf]
        %2429 = vrot.lane.b32.xlu0 %v2424, 118
        %v2430 = vpop.permute.xlu0 %2429
        %v2432 = vsel %vm1224, %v2427, 0
        %v2435 = vsel %vm1228, %v2430, 0
        %2437 = vmatprep.subr.bf16.mxu0 0
        %2438 = vmatpush1.bf16.msra.mxu0 %v2435
        %2439 = vmatprep.subr.bf16.mxu0 0
        %2440 = vmatpush1.bf16.msra.mxu0 0
        %2441 = vmatprep.subr.bf16.mxu0 0
        %2442 = vmatpush1.bf16.msra.mxu0 0
        %2443 = vmatprep.subr.bf16.mxu0 0
        %2444 = vmatpush1.bf16.msra.mxu0 0
        %2445 = vmatprep.subr.bf16.mxu0 0
        %2446 = vmatpush1.bf16.msra.mxu0 0
        %2447 = vmatprep.subr.bf16.mxu0 0
        %2448 = vmatpush1.bf16.msra.mxu0 0
        %2449 = vmatprep.subr.bf16.mxu0 0
        %2450 = vmatpush1.bf16.msra.mxu0 0
        %2451 = vmatprep.subr.bf16.mxu0 0
        %2452 = vmatpush1.bf16.msra.mxu0 0
        %2453 = vmatprep.subr.bf16.mxu0 0
        %2454 = vmatpush1.bf16.msra.mxu0 0
        %2455 = vmatprep.subr.bf16.mxu0 0
        %2456 = vmatpush1.bf16.msra.mxu0 0
        %2457 = vmatprep.subr.bf16.mxu0 0
        %2458 = vmatpush1.bf16.msra.mxu0 0
        %2459 = vmatprep.subr.bf16.mxu0 0
        %2460 = vmatpush1.bf16.msra.mxu0 0
        %2461 = vmatprep.subr.bf16.mxu0 0
        %2462 = vmatpush1.bf16.msra.mxu0 0
        %2463 = vmatprep.subr.bf16.mxu0 0
        %2464 = vmatpush1.bf16.msra.mxu0 0
        %2465 = vmatprep.subr.bf16.mxu0 0
        %2466 = vmatpush1.bf16.msra.mxu0 0
        %2467 = vmatprep.subr.bf16.mxu0 0
        %2468 = vmatpush1.bf16.msra.mxu0 0
        %2469 = vmatprep.mubr.bf16.mxu0 0
        %2470 = vmatmul.mubr.bf16.gmra.mrb[0].mxu0 %v2432
        %v2471 = vpop.f32.mrb[0].mxu0
        %v2472 = vadd.f32 0.0, %v2471
        %v2473 = vpop.f32.mrb[0].mxu0
        %v2474 = vpop.f32.mrb[0].mxu0
        %v2475 = vpop.f32.mrb[0].mxu0
        %2476 = vdwg.mxu0
        %v2478 = vsel %vm1224, %v2425, 0
        %v2481 = vsel %vm1228, %v2424, 0
        %2483 = vmatprep.subr.bf16.mxu0 0
        %2484 = vmatpush1.bf16.msra.mxu0 %v2481
        %2485 = vmatprep.subr.bf16.mxu0 0
        %2486 = vmatpush1.bf16.msra.mxu0 0
        %2487 = vmatprep.subr.bf16.mxu0 0
        %2488 = vmatpush1.bf16.msra.mxu0 0
        %2489 = vmatprep.subr.bf16.mxu0 0
        %2490 = vmatpush1.bf16.msra.mxu0 0
        %2491 = vmatprep.subr.bf16.mxu0 0
        %2492 = vmatpush1.bf16.msra.mxu0 0
        %2493 = vmatprep.subr.bf16.mxu0 0
        %2494 = vmatpush1.bf16.msra.mxu0 0
        %2495 = vmatprep.subr.bf16.mxu0 0
        %2496 = vmatpush1.bf16.msra.mxu0 0
        %2497 = vmatprep.subr.bf16.mxu0 0
        %2498 = vmatpush1.bf16.msra.mxu0 0
        %2499 = vmatprep.subr.bf16.mxu0 0
        %2500 = vmatpush1.bf16.msra.mxu0 0
        %2501 = vmatprep.subr.bf16.mxu0 0
        %2502 = vmatpush1.bf16.msra.mxu0 0
        %2503 = vmatprep.subr.bf16.mxu0 0
        %2504 = vmatpush1.bf16.msra.mxu0 0
        %2505 = vmatprep.subr.bf16.mxu0 0
        %2506 = vmatpush1.bf16.msra.mxu0 0
        %2507 = vmatprep.subr.bf16.mxu0 0
        %2508 = vmatpush1.bf16.msra.mxu0 0
        %2509 = vmatprep.subr.bf16.mxu0 0
        %2510 = vmatpush1.bf16.msra.mxu0 0
        %2511 = vmatprep.subr.bf16.mxu0 0
        %2512 = vmatpush1.bf16.msra.mxu0 0
        %2513 = vmatprep.subr.bf16.mxu0 0
        %2514 = vmatpush1.bf16.msra.mxu0 0
        %2515 = vmatprep.mubr.bf16.mxu0 0
        %2516 = vmatmul.mubr.bf16.gmra.mrb[0].mxu0 %v2478
        %v2517 = vpop.f32.mrb[0].mxu0
        %v2518 = vadd.f32 %v2472, %v2517
        %v2519 = vpop.f32.mrb[0].mxu0
        %v2520 = vpop.f32.mrb[0].mxu0
        %v2521 = vpop.f32.mrb[0].mxu0
        %2522 = vdwg.mxu0
        %s2523 = scalar_lea.vmem %s29, 8
        %v2524 = vld [vmem:[%s2523] sm:$0xf]
        %2525 = vrot.lane.b32.xlu0 %v2424, 108
        %v2526 = vpop.permute.xlu0 %2525
        %v2528 = vsel %vm1224, %v2524, 0
        %v2531 = vsel %vm1228, %v2526, 0
        %2533 = vmatprep.subr.bf16.mxu0 0
        %2534 = vmatpush1.bf16.msra.mxu0 %v2531
        %2535 = vmatprep.subr.bf16.mxu0 0
        %2536 = vmatpush1.bf16.msra.mxu0 0
        %2537 = vmatprep.subr.bf16.mxu0 0
        %2538 = vmatpush1.bf16.msra.mxu0 0
        %2539 = vmatprep.subr.bf16.mxu0 0
        %2540 = vmatpush1.bf16.msra.mxu0 0
        %2541 = vmatprep.subr.bf16.mxu0 0
        %2542 = vmatpush1.bf16.msra.mxu0 0
        %2543 = vmatprep.subr.bf16.mxu0 0
        %2544 = vmatpush1.bf16.msra.mxu0 0
        %2545 = vmatprep.subr.bf16.mxu0 0
        %2546 = vmatpush1.bf16.msra.mxu0 0
        %2547 = vmatprep.subr.bf16.mxu0 0
        %2548 = vmatpush1.bf16.msra.mxu0 0
        %2549 = vmatprep.subr.bf16.mxu0 0
        %2550 = vmatpush1.bf16.msra.mxu0 0
        %2551 = vmatprep.subr.bf16.mxu0 0
        %2552 = vmatpush1.bf16.msra.mxu0 0
        %2553 = vmatprep.subr.bf16.mxu0 0
        %2554 = vmatpush1.bf16.msra.mxu0 0
        %2555 = vmatprep.subr.bf16.mxu0 0
        %2556 = vmatpush1.bf16.msra.mxu0 0
        %2557 = vmatprep.subr.bf16.mxu0 0
        %2558 = vmatpush1.bf16.msra.mxu0 0
        %2559 = vmatprep.subr.bf16.mxu0 0
        %2560 = vmatpush1.bf16.msra.mxu0 0
        %2561 = vmatprep.subr.bf16.mxu0 0
        %2562 = vmatpush1.bf16.msra.mxu0 0
        %2563 = vmatprep.subr.bf16.mxu0 0
        %2564 = vmatpush1.bf16.msra.mxu0 0
        %2565 = vmatprep.mubr.bf16.mxu0 0
        %2566 = vmatmul.mubr.bf16.gmra.mrb[0].mxu0 %v2528
        %v2567 = vpop.f32.mrb[0].mxu0
        %v2568 = vadd.f32 0.0, %v2567
        %v2569 = vpop.f32.mrb[0].mxu0
        %v2570 = vpop.f32.mrb[0].mxu0
        %v2571 = vpop.f32.mrb[0].mxu0
        %2572 = vdwg.mxu0
        %v2573 = vadd.f32 %v2518, %v2568
        %vm2574 = vcmp.ge.f32.partialorder %v2573, 0.0
        %v2575 = vmul.f32 %v2573, 0.01
        %v2576 = vsel %vm2574, %v2573, %v2575
        %v2577 = vpack.c.bf16 %v2576, %v2576
        %v2579 = vsel %vm1380, %v2577, 0
        %2581 = vmatprep.subr.bf16.mxu0 0
        %2582 = vmatpush1.bf16.msra.mxu0 %v1386
        %2583 = vmatprep.subr.bf16.mxu0 0
        %2584 = vmatpush1.bf16.msra.mxu0 0
        %2585 = vmatprep.subr.bf16.mxu0 0
        %2586 = vmatpush1.bf16.msra.mxu0 0
        %2587 = vmatprep.subr.bf16.mxu0 0
        %2588 = vmatpush1.bf16.msra.mxu0 0
        %2589 = vmatprep.subr.bf16.mxu0 0
        %2590 = vmatpush1.bf16.msra.mxu0 0
        %2591 = vmatprep.subr.bf16.mxu0 0
        %2592 = vmatpush1.bf16.msra.mxu0 0
        %2593 = vmatprep.subr.bf16.mxu0 0
        %2594 = vmatpush1.bf16.msra.mxu0 0
        %2595 = vmatprep.subr.bf16.mxu0 0
        %2596 = vmatpush1.bf16.msra.mxu0 0
        %2597 = vmatprep.subr.bf16.mxu0 0
        %2598 = vmatpush1.bf16.msra.mxu0 0
        %2599 = vmatprep.subr.bf16.mxu0 0
        %2600 = vmatpush1.bf16.msra.mxu0 0
        %2601 = vmatprep.subr.bf16.mxu0 0
        %2602 = vmatpush1.bf16.msra.mxu0 0
        %2603 = vmatprep.subr.bf16.mxu0 0
        %2604 = vmatpush1.bf16.msra.mxu0 0
        %2605 = vmatprep.subr.bf16.mxu0 0
        %2606 = vmatpush1.bf16.msra.mxu0 0
        %2607 = vmatprep.subr.bf16.mxu0 0
        %2608 = vmatpush1.bf16.msra.mxu0 0
        %2609 = vmatprep.subr.bf16.mxu0 0
        %2610 = vmatpush1.bf16.msra.mxu0 0
        %2611 = vmatprep.subr.bf16.mxu0 0
        %2612 = vmatpush1.bf16.msra.mxu0 0
        %2613 = vmatprep.mubr.bf16.mxu0 0
        %2614 = vmatmul.mubr.bf16.gmra.mrb[0].mxu0 %v2579
        %v2615 = vpop.f32.mrb[0].mxu0
        %v2616 = vadd.f32 0.0, %v2615
        %v2617 = vpop.f32.mrb[0].mxu0
        %v2618 = vpop.f32.mrb[0].mxu0
        %v2619 = vpop.f32.mrb[0].mxu0
        %2620 = vdwg.mxu0
        %v2621 = vpack.c.bf16 %v2616, %v2616
        %v2622 = vld [vmem:[%s31] sm:$0x3]
        %s2623 = scalar_lea.vmem %s31, 2
        %v2624 = vld [vmem:[%s2623] sm:$0x3]
        %2626 = vrot.lane.b32.xlu0 %v2621, 120
        %v2627 = vpop.permute.xlu0 %2626
        %v2629 = vsel %vm1435, %v2624, 0
        %v2632 = vsel %vm1439, %v2627, 0
        %2634 = vmatprep.subr.bf16.mxu0 0
        %2635 = vmatpush1.bf16.msra.mxu0 %v2632
        %2636 = vmatprep.subr.bf16.mxu0 0
        %2637 = vmatpush1.bf16.msra.mxu0 0
        %2638 = vmatprep.subr.bf16.mxu0 0
        %2639 = vmatpush1.bf16.msra.mxu0 0
        %2640 = vmatprep.subr.bf16.mxu0 0
        %2641 = vmatpush1.bf16.msra.mxu0 0
        %2642 = vmatprep.subr.bf16.mxu0 0
        %2643 = vmatpush1.bf16.msra.mxu0 0
        %2644 = vmatprep.subr.bf16.mxu0 0
        %2645 = vmatpush1.bf16.msra.mxu0 0
        %2646 = vmatprep.subr.bf16.mxu0 0
        %2647 = vmatpush1.bf16.msra.mxu0 0
        %2648 = vmatprep.subr.bf16.mxu0 0
        %2649 = vmatpush1.bf16.msra.mxu0 0
        %2650 = vmatprep.subr.bf16.mxu0 0
        %2651 = vmatpush1.bf16.msra.mxu0 0
        %2652 = vmatprep.subr.bf16.mxu0 0
        %2653 = vmatpush1.bf16.msra.mxu0 0
        %2654 = vmatprep.subr.bf16.mxu0 0
        %2655 = vmatpush1.bf16.msra.mxu0 0
        %2656 = vmatprep.subr.bf16.mxu0 0
        %2657 = vmatpush1.bf16.msra.mxu0 0
        %2658 = vmatprep.subr.bf16.mxu0 0
        %2659 = vmatpush1.bf16.msra.mxu0 0
        %2660 = vmatprep.subr.bf16.mxu0 0
        %2661 = vmatpush1.bf16.msra.mxu0 0
        %2662 = vmatprep.subr.bf16.mxu0 0
        %2663 = vmatpush1.bf16.msra.mxu0 0
        %2664 = vmatprep.subr.bf16.mxu0 0
        %2665 = vmatpush1.bf16.msra.mxu0 0
        %2666 = vmatprep.mubr.bf16.mxu0 0
        %2667 = vmatmul.mubr.bf16.gmra.mrb[0].mxu0 %v2629
        %v2668 = vpop.f32.mrb[0].mxu0
        %v2669 = vadd.f32 0.0, %v2668
        %v2670 = vpop.f32.mrb[0].mxu0
        %v2671 = vpop.f32.mrb[0].mxu0
        %v2672 = vpop.f32.mrb[0].mxu0
        %2673 = vdwg.mxu0
        %v2675 = vsel %vm1435, %v2622, 0
        %v2678 = vsel %vm1439, %v2621, 0
        %2680 = vmatprep.subr.bf16.mxu0 0
        %2681 = vmatpush1.bf16.msra.mxu0 %v2678
        %2682 = vmatprep.subr.bf16.mxu0 0
        %2683 = vmatpush1.bf16.msra.mxu0 0
        %2684 = vmatprep.subr.bf16.mxu0 0
        %2685 = vmatpush1.bf16.msra.mxu0 0
        %2686 = vmatprep.subr.bf16.mxu0 0
        %2687 = vmatpush1.bf16.msra.mxu0 0
        %2688 = vmatprep.subr.bf16.mxu0 0
        %2689 = vmatpush1.bf16.msra.mxu0 0
        %2690 = vmatprep.subr.bf16.mxu0 0
        %2691 = vmatpush1.bf16.msra.mxu0 0
        %2692 = vmatprep.subr.bf16.mxu0 0
        %2693 = vmatpush1.bf16.msra.mxu0 0
        %2694 = vmatprep.subr.bf16.mxu0 0
        %2695 = vmatpush1.bf16.msra.mxu0 0
        %2696 = vmatprep.subr.bf16.mxu0 0
        %2697 = vmatpush1.bf16.msra.mxu0 0
        %2698 = vmatprep.subr.bf16.mxu0 0
        %2699 = vmatpush1.bf16.msra.mxu0 0
        %2700 = vmatprep.subr.bf16.mxu0 0
        %2701 = vmatpush1.bf16.msra.mxu0 0
        %2702 = vmatprep.subr.bf16.mxu0 0
        %2703 = vmatpush1.bf16.msra.mxu0 0
        %2704 = vmatprep.subr.bf16.mxu0 0
        %2705 = vmatpush1.bf16.msra.mxu0 0
        %2706 = vmatprep.subr.bf16.mxu0 0
        %2707 = vmatpush1.bf16.msra.mxu0 0
        %2708 = vmatprep.subr.bf16.mxu0 0
        %2709 = vmatpush1.bf16.msra.mxu0 0
        %2710 = vmatprep.subr.bf16.mxu0 0
        %2711 = vmatpush1.bf16.msra.mxu0 0
        %2712 = vmatprep.mubr.bf16.mxu0 0
        %2713 = vmatmul.mubr.bf16.gmra.mrb[0].mxu0 %v2675
        %v2714 = vpop.f32.mrb[0].mxu0
        %v2715 = vadd.f32 %v2669, %v2714
        %v2716 = vpop.f32.mrb[0].mxu0
        %v2717 = vpop.f32.mrb[0].mxu0
        %v2718 = vpop.f32.mrb[0].mxu0
        %2719 = vdwg.mxu0
        %s2720 = scalar_lea.vmem %s31, 4
        %v2721 = vld [vmem:[%s2720] sm:$0x3]
        %2722 = vrot.lane.b32.xlu0 %v2621, 112
        %v2723 = vpop.permute.xlu0 %2722
        %v2725 = vsel %vm1435, %v2721, 0
        %v2728 = vsel %vm1439, %v2723, 0
        %2730 = vmatprep.subr.bf16.mxu0 0
        %2731 = vmatpush1.bf16.msra.mxu0 %v2728
        %2732 = vmatprep.subr.bf16.mxu0 0
        %2733 = vmatpush1.bf16.msra.mxu0 0
        %2734 = vmatprep.subr.bf16.mxu0 0
        %2735 = vmatpush1.bf16.msra.mxu0 0
        %2736 = vmatprep.subr.bf16.mxu0 0
        %2737 = vmatpush1.bf16.msra.mxu0 0
        %2738 = vmatprep.subr.bf16.mxu0 0
        %2739 = vmatpush1.bf16.msra.mxu0 0
        %2740 = vmatprep.subr.bf16.mxu0 0
        %2741 = vmatpush1.bf16.msra.mxu0 0
        %2742 = vmatprep.subr.bf16.mxu0 0
        %2743 = vmatpush1.bf16.msra.mxu0 0
        %2744 = vmatprep.subr.bf16.mxu0 0
        %2745 = vmatpush1.bf16.msra.mxu0 0
        %2746 = vmatprep.subr.bf16.mxu0 0
        %2747 = vmatpush1.bf16.msra.mxu0 0
        %2748 = vmatprep.subr.bf16.mxu0 0
        %2749 = vmatpush1.bf16.msra.mxu0 0
        %2750 = vmatprep.subr.bf16.mxu0 0
        %2751 = vmatpush1.bf16.msra.mxu0 0
        %2752 = vmatprep.subr.bf16.mxu0 0
        %2753 = vmatpush1.bf16.msra.mxu0 0
        %2754 = vmatprep.subr.bf16.mxu0 0
        %2755 = vmatpush1.bf16.msra.mxu0 0
        %2756 = vmatprep.subr.bf16.mxu0 0
        %2757 = vmatpush1.bf16.msra.mxu0 0
        %2758 = vmatprep.subr.bf16.mxu0 0
        %2759 = vmatpush1.bf16.msra.mxu0 0
        %2760 = vmatprep.subr.bf16.mxu0 0
        %2761 = vmatpush1.bf16.msra.mxu0 0
        %2762 = vmatprep.mubr.bf16.mxu0 0
        %2763 = vmatmul.mubr.bf16.gmra.mrb[0].mxu0 %v2725
        %v2764 = vpop.f32.mrb[0].mxu0
        %v2765 = vadd.f32 0.0, %v2764
        %v2766 = vpop.f32.mrb[0].mxu0
        %v2767 = vpop.f32.mrb[0].mxu0
        %v2768 = vpop.f32.mrb[0].mxu0
        %2769 = vdwg.mxu0
        %v2770 = vadd.f32 %v2715, %v2765
        %v2771 = vtanh.pop %v2770
        %v2772 = vadd.f32 %v1583, %v2771
        %2774 = vrot.lane.b32.xlu0 %v2772, 8
        %v2775 = vpop.permute.xlu0 %2774
        %v2777 = vsel %vm1435, %v2379, %v2775
        %v2778 = vpack.c.bf16 %v2777, %v2777
        %v2779 = vld [vmem:[%s15] sm:$0xf]
        %v2780 = vld [vmem:[%s15 + $0x4] sm:$0xf]
        %v2783 = vunpack.c.l.b16 %v2779
        %v2784 = vunpack.c.l.b16 %v2780
        %v2785 = vpack.c.b16 %v2784, %v2783
        %v2788 = vsel %vm1077, %v2778, 0
        %2790 = vmatprep.subr.bf16.mxu0 0
        %2791 = vmatpush1.bf16.msra.mxu0 %v2785
        %2792 = vmatprep.subr.bf16.mxu0 0
        %2793 = vmatpush1.bf16.msra.mxu0 0
        %2794 = vmatprep.subr.bf16.mxu0 0
        %2795 = vmatpush1.bf16.msra.mxu0 0
        %2796 = vmatprep.subr.bf16.mxu0 0
        %2797 = vmatpush1.bf16.msra.mxu0 0
        %2798 = vmatprep.subr.bf16.mxu0 0
        %2799 = vmatpush1.bf16.msra.mxu0 0
        %2800 = vmatprep.subr.bf16.mxu0 0
        %2801 = vmatpush1.bf16.msra.mxu0 0
        %2802 = vmatprep.subr.bf16.mxu0 0
        %2803 = vmatpush1.bf16.msra.mxu0 0
        %2804 = vmatprep.subr.bf16.mxu0 0
        %2805 = vmatpush1.bf16.msra.mxu0 0
        %2806 = vmatprep.subr.bf16.mxu0 0
        %2807 = vmatpush1.bf16.msra.mxu0 0
        %2808 = vmatprep.subr.bf16.mxu0 0
        %2809 = vmatpush1.bf16.msra.mxu0 0
        %2810 = vmatprep.subr.bf16.mxu0 0
        %2811 = vmatpush1.bf16.msra.mxu0 0
        %2812 = vmatprep.subr.bf16.mxu0 0
        %2813 = vmatpush1.bf16.msra.mxu0 0
        %2814 = vmatprep.subr.bf16.mxu0 0
        %2815 = vmatpush1.bf16.msra.mxu0 0
        %2816 = vmatprep.subr.bf16.mxu0 0
        %2817 = vmatpush1.bf16.msra.mxu0 0
        %2818 = vmatprep.subr.bf16.mxu0 0
        %2819 = vmatpush1.bf16.msra.mxu0 0
        %2820 = vmatprep.subr.bf16.mxu0 0
        %2821 = vmatpush1.bf16.msra.mxu0 0
        %2822 = vmatprep.mubr.bf16.mxu0 0
        %2823 = vmatmul.mubr.bf16.gmra.mrb[0].mxu0 %v2788
        %v2824 = vpop.f32.mrb[0].mxu0
        %v2825 = vadd.f32 0.0, %v2824
        %v2826 = vpop.f32.mrb[0].mxu0
        %v2827 = vpop.f32.mrb[0].mxu0
        %v2828 = vpop.f32.mrb[0].mxu0
        %2829 = vdwg.mxu0
        %v2830 = vpack.c.bf16 %v2825, %v2825
        %v2831 = vld [vmem:[%s33] sm:$0xf]
        %v2832 = vld [vmem:[%s33 + $0x4] sm:$0xf]
        %v2835 = vunpack.c.l.b16 %v2831
        %v2836 = vunpack.c.l.b16 %v2832
        %v2837 = vpack.c.b16 %v2836, %v2835
        %v2840 = vsel %vm1077, %v2830, 0
        %2842 = vmatprep.subr.bf16.mxu0 0
        %2843 = vmatpush1.bf16.msra.mxu0 %v2837
        %2844 = vmatprep.subr.bf16.mxu0 0
        %2845 = vmatpush1.bf16.msra.mxu0 0
        %2846 = vmatprep.subr.bf16.mxu0 0
        %2847 = vmatpush1.bf16.msra.mxu0 0
        %2848 = vmatprep.subr.bf16.mxu0 0
        %2849 = vmatpush1.bf16.msra.mxu0 0
        %2850 = vmatprep.subr.bf16.mxu0 0
        %2851 = vmatpush1.bf16.msra.mxu0 0
        %2852 = vmatprep.subr.bf16.mxu0 0
        %2853 = vmatpush1.bf16.msra.mxu0 0
        %2854 = vmatprep.subr.bf16.mxu0 0
        %2855 = vmatpush1.bf16.msra.mxu0 0
        %2856 = vmatprep.subr.bf16.mxu0 0
        %2857 = vmatpush1.bf16.msra.mxu0 0
        %2858 = vmatprep.subr.bf16.mxu0 0
        %2859 = vmatpush1.bf16.msra.mxu0 0
        %2860 = vmatprep.subr.bf16.mxu0 0
        %2861 = vmatpush1.bf16.msra.mxu0 0
        %2862 = vmatprep.subr.bf16.mxu0 0
        %2863 = vmatpush1.bf16.msra.mxu0 0
        %2864 = vmatprep.subr.bf16.mxu0 0
        %2865 = vmatpush1.bf16.msra.mxu0 0
        %2866 = vmatprep.subr.bf16.mxu0 0
        %2867 = vmatpush1.bf16.msra.mxu0 0
        %2868 = vmatprep.subr.bf16.mxu0 0
        %2869 = vmatpush1.bf16.msra.mxu0 0
        %2870 = vmatprep.subr.bf16.mxu0 0
        %2871 = vmatpush1.bf16.msra.mxu0 0
        %2872 = vmatprep.subr.bf16.mxu0 0
        %2873 = vmatpush1.bf16.msra.mxu0 0
        %2874 = vmatprep.mubr.bf16.mxu0 0
        %2875 = vmatmul.mubr.bf16.gmra.mrb[0].mxu0 %v2840
        %v2876 = vpop.f32.mrb[0].mxu0
        %v2877 = vadd.f32 0.0, %v2876
        %v2878 = vpop.f32.mrb[0].mxu0
        %v2879 = vpop.f32.mrb[0].mxu0
        %v2880 = vpop.f32.mrb[0].mxu0
        %2881 = vdwg.mxu0
        %v2882 = vld [vmem:[%s35] sm:$0xf]
        %v2883 = vld [vmem:[%s35 + $0x4] sm:$0xf]
        %v2886 = vunpack.c.l.b16 %v2882
        %v2887 = vunpack.c.l.b16 %v2883
        %v2888 = vpack.c.b16 %v2887, %v2886
        %2890 = vmatprep.subr.bf16.mxu0 0
        %2891 = vmatpush1.bf16.msra.mxu0 %v2888
        %2892 = vmatprep.subr.bf16.mxu0 0
        %2893 = vmatpush1.bf16.msra.mxu0 0
        %2894 = vmatprep.subr.bf16.mxu0 0
        %2895 = vmatpush1.bf16.msra.mxu0 0
        %2896 = vmatprep.subr.bf16.mxu0 0
        %2897 = vmatpush1.bf16.msra.mxu0 0
        %2898 = vmatprep.subr.bf16.mxu0 0
        %2899 = vmatpush1.bf16.msra.mxu0 0
        %2900 = vmatprep.subr.bf16.mxu0 0
        %2901 = vmatpush1.bf16.msra.mxu0 0
        %2902 = vmatprep.subr.bf16.mxu0 0
        %2903 = vmatpush1.bf16.msra.mxu0 0
        %2904 = vmatprep.subr.bf16.mxu0 0
        %2905 = vmatpush1.bf16.msra.mxu0 0
        %2906 = vmatprep.subr.bf16.mxu0 0
        %2907 = vmatpush1.bf16.msra.mxu0 0
        %2908 = vmatprep.subr.bf16.mxu0 0
        %2909 = vmatpush1.bf16.msra.mxu0 0
        %2910 = vmatprep.subr.bf16.mxu0 0
        %2911 = vmatpush1.bf16.msra.mxu0 0
        %2912 = vmatprep.subr.bf16.mxu0 0
        %2913 = vmatpush1.bf16.msra.mxu0 0
        %2914 = vmatprep.subr.bf16.mxu0 0
        %2915 = vmatpush1.bf16.msra.mxu0 0
        %2916 = vmatprep.subr.bf16.mxu0 0
        %2917 = vmatpush1.bf16.msra.mxu0 0
        %2918 = vmatprep.subr.bf16.mxu0 0
        %2919 = vmatpush1.bf16.msra.mxu0 0
        %2920 = vmatprep.subr.bf16.mxu0 0
        %2921 = vmatpush1.bf16.msra.mxu0 0
        %2922 = vmatprep.mubr.bf16.mxu0 0
        %2923 = vmatmul.mubr.bf16.gmra.mrb[0].mxu0 %v2840
        %v2924 = vpop.f32.mrb[0].mxu0
        %v2925 = vadd.f32 0.0, %v2924
        %v2926 = vpop.f32.mrb[0].mxu0
        %v2927 = vpop.f32.mrb[0].mxu0
        %v2928 = vpop.f32.mrb[0].mxu0
        %2929 = vdwg.mxu0
        %v2930 = vld [vmem:[%s37] sm:$0xf]
        %v2931 = vld [vmem:[%s37 + $0x4] sm:$0xf]
        %v2934 = vunpack.c.l.b16 %v2930
        %v2935 = vunpack.c.l.b16 %v2931
        %v2936 = vpack.c.b16 %v2935, %v2934
        %2938 = vmatprep.subr.bf16.mxu0 0
        %2939 = vmatpush1.bf16.msra.mxu0 %v2936
        %2940 = vmatprep.subr.bf16.mxu0 0
        %2941 = vmatpush1.bf16.msra.mxu0 0
        %2942 = vmatprep.subr.bf16.mxu0 0
        %2943 = vmatpush1.bf16.msra.mxu0 0
        %2944 = vmatprep.subr.bf16.mxu0 0
        %2945 = vmatpush1.bf16.msra.mxu0 0
        %2946 = vmatprep.subr.bf16.mxu0 0
        %2947 = vmatpush1.bf16.msra.mxu0 0
        %2948 = vmatprep.subr.bf16.mxu0 0
        %2949 = vmatpush1.bf16.msra.mxu0 0
        %2950 = vmatprep.subr.bf16.mxu0 0
        %2951 = vmatpush1.bf16.msra.mxu0 0
        %2952 = vmatprep.subr.bf16.mxu0 0
        %2953 = vmatpush1.bf16.msra.mxu0 0
        %2954 = vmatprep.subr.bf16.mxu0 0
        %2955 = vmatpush1.bf16.msra.mxu0 0
        %2956 = vmatprep.subr.bf16.mxu0 0
        %2957 = vmatpush1.bf16.msra.mxu0 0
        %2958 = vmatprep.subr.bf16.mxu0 0
        %2959 = vmatpush1.bf16.msra.mxu0 0
        %2960 = vmatprep.subr.bf16.mxu0 0
        %2961 = vmatpush1.bf16.msra.mxu0 0
        %2962 = vmatprep.subr.bf16.mxu0 0
        %2963 = vmatpush1.bf16.msra.mxu0 0
        %2964 = vmatprep.subr.bf16.mxu0 0
        %2965 = vmatpush1.bf16.msra.mxu0 0
        %2966 = vmatprep.subr.bf16.mxu0 0
        %2967 = vmatpush1.bf16.msra.mxu0 0
        %2968 = vmatprep.subr.bf16.mxu0 0
        %2969 = vmatpush1.bf16.msra.mxu0 0
        %2970 = vmatprep.mubr.bf16.mxu0 0
        %2971 = vmatmul.mubr.bf16.gmra.mrb[0].mxu0 %v2840
        %v2972 = vpop.f32.mrb[0].mxu0
        %v2973 = vadd.f32 0.0, %v2972
        %v2974 = vpop.f32.mrb[0].mxu0
        %v2975 = vpop.f32.mrb[0].mxu0
        %v2976 = vpop.f32.mrb[0].mxu0
        %2977 = vdwg.mxu0
        %v2978 = vpack.c.bf16 %v2973, %v2973
        %v2979 = vld [vmem:[%s47] sm:$0xf]
        %s2980 = scalar_lea.vmem %s47, 4
        %v2981 = vld [vmem:[%s2980] sm:$0xf]
        %2983 = vrot.lane.b32.xlu0 %v2978, 116
        %v2984 = vpop.permute.xlu0 %2983
        %v2986 = vsel %vm1224, %v2981, 0
        %v2989 = vsel %vm1228, %v2984, 0
        %2991 = vmatprep.subr.bf16.mxu0 0
        %2992 = vmatpush1.bf16.msra.mxu0 %v2989
        %2993 = vmatprep.subr.bf16.mxu0 0
        %2994 = vmatpush1.bf16.msra.mxu0 0
        %2995 = vmatprep.subr.bf16.mxu0 0
        %2996 = vmatpush1.bf16.msra.mxu0 0
        %2997 = vmatprep.subr.bf16.mxu0 0
        %2998 = vmatpush1.bf16.msra.mxu0 0
        %2999 = vmatprep.subr.bf16.mxu0 0
        %3000 = vmatpush1.bf16.msra.mxu0 0
        %3001 = vmatprep.subr.bf16.mxu0 0
        %3002 = vmatpush1.bf16.msra.mxu0 0
        %3003 = vmatprep.subr.bf16.mxu0 0
        %3004 = vmatpush1.bf16.msra.mxu0 0
        %3005 = vmatprep.subr.bf16.mxu0 0
        %3006 = vmatpush1.bf16.msra.mxu0 0
        %3007 = vmatprep.subr.bf16.mxu0 0
        %3008 = vmatpush1.bf16.msra.mxu0 0
        %3009 = vmatprep.subr.bf16.mxu0 0
        %3010 = vmatpush1.bf16.msra.mxu0 0
        %3011 = vmatprep.subr.bf16.mxu0 0
        %3012 = vmatpush1.bf16.msra.mxu0 0
        %3013 = vmatprep.subr.bf16.mxu0 0
        %3014 = vmatpush1.bf16.msra.mxu0 0
        %3015 = vmatprep.subr.bf16.mxu0 0
        %3016 = vmatpush1.bf16.msra.mxu0 0
        %3017 = vmatprep.subr.bf16.mxu0 0
        %3018 = vmatpush1.bf16.msra.mxu0 0
        %3019 = vmatprep.subr.bf16.mxu0 0
        %3020 = vmatpush1.bf16.msra.mxu0 0
        %3021 = vmatprep.subr.bf16.mxu0 0
        %3022 = vmatpush1.bf16.msra.mxu0 0
        %3023 = vmatprep.mubr.bf16.mxu0 0
        %3024 = vmatmul.mubr.bf16.gmra.mrb[0].mxu0 %v2986
        %v3025 = vpop.f32.mrb[0].mxu0
        %v3026 = vadd.f32 0.0, %v3025
        %v3027 = vpop.f32.mrb[0].mxu0
        %v3028 = vpop.f32.mrb[0].mxu0
        %v3029 = vpop.f32.mrb[0].mxu0
        %3030 = vdwg.mxu0
        %v3032 = vsel %vm1224, %v2979, 0
        %v3035 = vsel %vm1228, %v2978, 0
        %3037 = vmatprep.subr.bf16.mxu0 0
        %3038 = vmatpush1.bf16.msra.mxu0 %v3035
        %3039 = vmatprep.subr.bf16.mxu0 0
        %3040 = vmatpush1.bf16.msra.mxu0 0
        %3041 = vmatprep.subr.bf16.mxu0 0
        %3042 = vmatpush1.bf16.msra.mxu0 0
        %3043 = vmatprep.subr.bf16.mxu0 0
        %3044 = vmatpush1.bf16.msra.mxu0 0
        %3045 = vmatprep.subr.bf16.mxu0 0
        %3046 = vmatpush1.bf16.msra.mxu0 0
        %3047 = vmatprep.subr.bf16.mxu0 0
        %3048 = vmatpush1.bf16.msra.mxu0 0
        %3049 = vmatprep.subr.bf16.mxu0 0
        %3050 = vmatpush1.bf16.msra.mxu0 0
        %3051 = vmatprep.subr.bf16.mxu0 0
        %3052 = vmatpush1.bf16.msra.mxu0 0
        %3053 = vmatprep.subr.bf16.mxu0 0
        %3054 = vmatpush1.bf16.msra.mxu0 0
        %3055 = vmatprep.subr.bf16.mxu0 0
        %3056 = vmatpush1.bf16.msra.mxu0 0
        %3057 = vmatprep.subr.bf16.mxu0 0
        %3058 = vmatpush1.bf16.msra.mxu0 0
        %3059 = vmatprep.subr.bf16.mxu0 0
        %3060 = vmatpush1.bf16.msra.mxu0 0
        %3061 = vmatprep.subr.bf16.mxu0 0
        %3062 = vmatpush1.bf16.msra.mxu0 0
        %3063 = vmatprep.subr.bf16.mxu0 0
        %3064 = vmatpush1.bf16.msra.mxu0 0
        %3065 = vmatprep.subr.bf16.mxu0 0
        %3066 = vmatpush1.bf16.msra.mxu0 0
        %3067 = vmatprep.subr.bf16.mxu0 0
        %3068 = vmatpush1.bf16.msra.mxu0 0
        %3069 = vmatprep.mubr.bf16.mxu0 0
        %3070 = vmatmul.mubr.bf16.gmra.mrb[0].mxu0 %v3032
        %v3071 = vpop.f32.mrb[0].mxu0
        %v3072 = vadd.f32 %v3026, %v3071
        %v3073 = vpop.f32.mrb[0].mxu0
        %v3074 = vpop.f32.mrb[0].mxu0
        %v3075 = vpop.f32.mrb[0].mxu0
        %3076 = vdwg.mxu0
        %s3077 = scalar_lea.vmem %s47, 8
        %v3078 = vld [vmem:[%s3077] sm:$0xf]
        %3079 = vrot.lane.b32.xlu0 %v2978, 104
        %v3080 = vpop.permute.xlu0 %3079
        %v3082 = vsel %vm1224, %v3078, 0
        %v3085 = vsel %vm1228, %v3080, 0
        %3087 = vmatprep.subr.bf16.mxu0 0
        %3088 = vmatpush1.bf16.msra.mxu0 %v3085
        %3089 = vmatprep.subr.bf16.mxu0 0
        %3090 = vmatpush1.bf16.msra.mxu0 0
        %3091 = vmatprep.subr.bf16.mxu0 0
        %3092 = vmatpush1.bf16.msra.mxu0 0
        %3093 = vmatprep.subr.bf16.mxu0 0
        %3094 = vmatpush1.bf16.msra.mxu0 0
        %3095 = vmatprep.subr.bf16.mxu0 0
        %3096 = vmatpush1.bf16.msra.mxu0 0
        %3097 = vmatprep.subr.bf16.mxu0 0
        %3098 = vmatpush1.bf16.msra.mxu0 0
        %3099 = vmatprep.subr.bf16.mxu0 0
        %3100 = vmatpush1.bf16.msra.mxu0 0
        %3101 = vmatprep.subr.bf16.mxu0 0
        %3102 = vmatpush1.bf16.msra.mxu0 0
        %3103 = vmatprep.subr.bf16.mxu0 0
        %3104 = vmatpush1.bf16.msra.mxu0 0
        %3105 = vmatprep.subr.bf16.mxu0 0
        %3106 = vmatpush1.bf16.msra.mxu0 0
        %3107 = vmatprep.subr.bf16.mxu0 0
        %3108 = vmatpush1.bf16.msra.mxu0 0
        %3109 = vmatprep.subr.bf16.mxu0 0
        %3110 = vmatpush1.bf16.msra.mxu0 0
        %3111 = vmatprep.subr.bf16.mxu0 0
        %3112 = vmatpush1.bf16.msra.mxu0 0
        %3113 = vmatprep.subr.bf16.mxu0 0
        %3114 = vmatpush1.bf16.msra.mxu0 0
        %3115 = vmatprep.subr.bf16.mxu0 0
        %3116 = vmatpush1.bf16.msra.mxu0 0
        %3117 = vmatprep.subr.bf16.mxu0 0
        %3118 = vmatpush1.bf16.msra.mxu0 0
        %3119 = vmatprep.mubr.bf16.mxu0 0
        %3120 = vmatmul.mubr.bf16.gmra.mrb[0].mxu0 %v3082
        %v3121 = vpop.f32.mrb[0].mxu0
        %v3122 = vadd.f32 0.0, %v3121
        %v3123 = vpop.f32.mrb[0].mxu0
        %v3124 = vpop.f32.mrb[0].mxu0
        %v3125 = vpop.f32.mrb[0].mxu0
        %3126 = vdwg.mxu0
        %v3127 = vadd.f32 %v3072, %v3122
        %vm3128 = vcmp.ge.f32.partialorder %v3127, 0.0
        %v3129 = vmul.f32 %v3127, 0.01
        %v3130 = vsel %vm3128, %v3127, %v3129
        %v3131 = vpack.c.bf16 %v3130, %v3130
        %v3132 = vld [vmem:[%s43] sm:$0xf]
        %v3133 = vld [vmem:[%s43 + $0x4] sm:$0x3]
        %v3136 = vunpack.c.l.b16 %v3132
        %v3137 = vunpack.c.l.b16 %v3133
        %v3138 = vpack.c.b16 %v3137, %v3136
        %vm3139 = vcmask 97280
        %v3141 = vsel %vm3139, %v3131, 0
        %vm3143 = vcmask 1045504
        %v3145 = vsel %vm3143, %v3138, 0
        %3147 = vmatprep.subr.bf16.mxu0 0
        %3148 = vmatpush1.bf16.msra.mxu0 %v3145
        %3149 = vmatprep.subr.bf16.mxu0 0
        %3150 = vmatpush1.bf16.msra.mxu0 0
        %3151 = vmatprep.subr.bf16.mxu0 0
        %3152 = vmatpush1.bf16.msra.mxu0 0
        %3153 = vmatprep.subr.bf16.mxu0 0
        %3154 = vmatpush1.bf16.msra.mxu0 0
        %3155 = vmatprep.subr.bf16.mxu0 0
        %3156 = vmatpush1.bf16.msra.mxu0 0
        %3157 = vmatprep.subr.bf16.mxu0 0
        %3158 = vmatpush1.bf16.msra.mxu0 0
        %3159 = vmatprep.subr.bf16.mxu0 0
        %3160 = vmatpush1.bf16.msra.mxu0 0
        %3161 = vmatprep.subr.bf16.mxu0 0
        %3162 = vmatpush1.bf16.msra.mxu0 0
        %3163 = vmatprep.subr.bf16.mxu0 0
        %3164 = vmatpush1.bf16.msra.mxu0 0
        %3165 = vmatprep.subr.bf16.mxu0 0
        %3166 = vmatpush1.bf16.msra.mxu0 0
        %3167 = vmatprep.subr.bf16.mxu0 0
        %3168 = vmatpush1.bf16.msra.mxu0 0
        %3169 = vmatprep.subr.bf16.mxu0 0
        %3170 = vmatpush1.bf16.msra.mxu0 0
        %3171 = vmatprep.subr.bf16.mxu0 0
        %3172 = vmatpush1.bf16.msra.mxu0 0
        %3173 = vmatprep.subr.bf16.mxu0 0
        %3174 = vmatpush1.bf16.msra.mxu0 0
        %3175 = vmatprep.subr.bf16.mxu0 0
        %3176 = vmatpush1.bf16.msra.mxu0 0
        %3177 = vmatprep.subr.bf16.mxu0 0
        %3178 = vmatpush1.bf16.msra.mxu0 0
        %3179 = vmatprep.mubr.bf16.mxu0 0
        %3180 = vmatmul.mubr.bf16.gmra.mrb[0].mxu0 %v3141
        %v3181 = vpop.f32.mrb[0].mxu0
        %v3182 = vadd.f32 0.0, %v3181
        %v3183 = vpop.f32.mrb[0].mxu0
        %v3184 = vpop.f32.mrb[0].mxu0
        %v3185 = vpop.f32.mrb[0].mxu0
        %3186 = vdwg.mxu0
        %v3187 = vpack.c.bf16 %v3182, %v3182
        %v3188 = vld [vmem:[%s49] sm:$0x3]
        %s3189 = scalar_lea.vmem %s49, 2
        %v3190 = vld [vmem:[%s3189] sm:$0x3]
        %3192 = vrot.lane.b32.xlu0 %v3187, 120
        %v3193 = vpop.permute.xlu0 %3192
        %v3195 = vsel %vm1435, %v3190, 0
        %v3198 = vsel %vm1439, %v3193, 0
        %3200 = vmatprep.subr.bf16.mxu0 0
        %3201 = vmatpush1.bf16.msra.mxu0 %v3198
        %3202 = vmatprep.subr.bf16.mxu0 0
        %3203 = vmatpush1.bf16.msra.mxu0 0
        %3204 = vmatprep.subr.bf16.mxu0 0
        %3205 = vmatpush1.bf16.msra.mxu0 0
        %3206 = vmatprep.subr.bf16.mxu0 0
        %3207 = vmatpush1.bf16.msra.mxu0 0
        %3208 = vmatprep.subr.bf16.mxu0 0
        %3209 = vmatpush1.bf16.msra.mxu0 0
        %3210 = vmatprep.subr.bf16.mxu0 0
        %3211 = vmatpush1.bf16.msra.mxu0 0
        %3212 = vmatprep.subr.bf16.mxu0 0
        %3213 = vmatpush1.bf16.msra.mxu0 0
        %3214 = vmatprep.subr.bf16.mxu0 0
        %3215 = vmatpush1.bf16.msra.mxu0 0
        %3216 = vmatprep.subr.bf16.mxu0 0
        %3217 = vmatpush1.bf16.msra.mxu0 0
        %3218 = vmatprep.subr.bf16.mxu0 0
        %3219 = vmatpush1.bf16.msra.mxu0 0
        %3220 = vmatprep.subr.bf16.mxu0 0
        %3221 = vmatpush1.bf16.msra.mxu0 0
        %3222 = vmatprep.subr.bf16.mxu0 0
        %3223 = vmatpush1.bf16.msra.mxu0 0
        %3224 = vmatprep.subr.bf16.mxu0 0
        %3225 = vmatpush1.bf16.msra.mxu0 0
        %3226 = vmatprep.subr.bf16.mxu0 0
        %3227 = vmatpush1.bf16.msra.mxu0 0
        %3228 = vmatprep.subr.bf16.mxu0 0
        %3229 = vmatpush1.bf16.msra.mxu0 0
        %3230 = vmatprep.subr.bf16.mxu0 0
        %3231 = vmatpush1.bf16.msra.mxu0 0
        %3232 = vmatprep.mubr.bf16.mxu0 0
        %3233 = vmatmul.mubr.bf16.gmra.mrb[0].mxu0 %v3195
        %v3234 = vpop.f32.mrb[0].mxu0
        %v3235 = vadd.f32 0.0, %v3234
        %v3236 = vpop.f32.mrb[0].mxu0
        %v3237 = vpop.f32.mrb[0].mxu0
        %v3238 = vpop.f32.mrb[0].mxu0
        %3239 = vdwg.mxu0
        %v3241 = vsel %vm1435, %v3188, 0
        %v3244 = vsel %vm1439, %v3187, 0
        %3246 = vmatprep.subr.bf16.mxu0 0
        %3247 = vmatpush1.bf16.msra.mxu0 %v3244
        %3248 = vmatprep.subr.bf16.mxu0 0
        %3249 = vmatpush1.bf16.msra.mxu0 0
        %3250 = vmatprep.subr.bf16.mxu0 0
        %3251 = vmatpush1.bf16.msra.mxu0 0
        %3252 = vmatprep.subr.bf16.mxu0 0
        %3253 = vmatpush1.bf16.msra.mxu0 0
        %3254 = vmatprep.subr.bf16.mxu0 0
        %3255 = vmatpush1.bf16.msra.mxu0 0
        %3256 = vmatprep.subr.bf16.mxu0 0
        %3257 = vmatpush1.bf16.msra.mxu0 0
        %3258 = vmatprep.subr.bf16.mxu0 0
        %3259 = vmatpush1.bf16.msra.mxu0 0
        %3260 = vmatprep.subr.bf16.mxu0 0
        %3261 = vmatpush1.bf16.msra.mxu0 0
        %3262 = vmatprep.subr.bf16.mxu0 0
        %3263 = vmatpush1.bf16.msra.mxu0 0
        %3264 = vmatprep.subr.bf16.mxu0 0
        %3265 = vmatpush1.bf16.msra.mxu0 0
        %3266 = vmatprep.subr.bf16.mxu0 0
        %3267 = vmatpush1.bf16.msra.mxu0 0
        %3268 = vmatprep.subr.bf16.mxu0 0
        %3269 = vmatpush1.bf16.msra.mxu0 0
        %3270 = vmatprep.subr.bf16.mxu0 0
        %3271 = vmatpush1.bf16.msra.mxu0 0
        %3272 = vmatprep.subr.bf16.mxu0 0
        %3273 = vmatpush1.bf16.msra.mxu0 0
        %3274 = vmatprep.subr.bf16.mxu0 0
        %3275 = vmatpush1.bf16.msra.mxu0 0
        %3276 = vmatprep.subr.bf16.mxu0 0
        %3277 = vmatpush1.bf16.msra.mxu0 0
        %3278 = vmatprep.mubr.bf16.mxu0 0
        %3279 = vmatmul.mubr.bf16.gmra.mrb[0].mxu0 %v3241
        %v3280 = vpop.f32.mrb[0].mxu0
        %v3281 = vadd.f32 %v3235, %v3280
        %v3282 = vpop.f32.mrb[0].mxu0
        %v3283 = vpop.f32.mrb[0].mxu0
        %v3284 = vpop.f32.mrb[0].mxu0
        %3285 = vdwg.mxu0
        %s3286 = scalar_lea.vmem %s49, 4
        %v3287 = vld [vmem:[%s3286] sm:$0x3]
        %3288 = vrot.lane.b32.xlu0 %v3187, 112
        %v3289 = vpop.permute.xlu0 %3288
        %v3291 = vsel %vm1435, %v3287, 0
        %v3294 = vsel %vm1439, %v3289, 0
        %3296 = vmatprep.subr.bf16.mxu0 0
        %3297 = vmatpush1.bf16.msra.mxu0 %v3294
        %3298 = vmatprep.subr.bf16.mxu0 0
        %3299 = vmatpush1.bf16.msra.mxu0 0
        %3300 = vmatprep.subr.bf16.mxu0 0
        %3301 = vmatpush1.bf16.msra.mxu0 0
        %3302 = vmatprep.subr.bf16.mxu0 0
        %3303 = vmatpush1.bf16.msra.mxu0 0
        %3304 = vmatprep.subr.bf16.mxu0 0
        %3305 = vmatpush1.bf16.msra.mxu0 0
        %3306 = vmatprep.subr.bf16.mxu0 0
        %3307 = vmatpush1.bf16.msra.mxu0 0
        %3308 = vmatprep.subr.bf16.mxu0 0
        %3309 = vmatpush1.bf16.msra.mxu0 0
        %3310 = vmatprep.subr.bf16.mxu0 0
        %3311 = vmatpush1.bf16.msra.mxu0 0
        %3312 = vmatprep.subr.bf16.mxu0 0
        %3313 = vmatpush1.bf16.msra.mxu0 0
        %3314 = vmatprep.subr.bf16.mxu0 0
        %3315 = vmatpush1.bf16.msra.mxu0 0
        %3316 = vmatprep.subr.bf16.mxu0 0
        %3317 = vmatpush1.bf16.msra.mxu0 0
        %3318 = vmatprep.subr.bf16.mxu0 0
        %3319 = vmatpush1.bf16.msra.mxu0 0
        %3320 = vmatprep.subr.bf16.mxu0 0
        %3321 = vmatpush1.bf16.msra.mxu0 0
        %3322 = vmatprep.subr.bf16.mxu0 0
        %3323 = vmatpush1.bf16.msra.mxu0 0
        %3324 = vmatprep.subr.bf16.mxu0 0
        %3325 = vmatpush1.bf16.msra.mxu0 0
        %3326 = vmatprep.subr.bf16.mxu0 0
        %3327 = vmatpush1.bf16.msra.mxu0 0
        %3328 = vmatprep.mubr.bf16.mxu0 0
        %3329 = vmatmul.mubr.bf16.gmra.mrb[0].mxu0 %v3291
        %v3330 = vpop.f32.mrb[0].mxu0
        %v3331 = vadd.f32 0.0, %v3330
        %v3332 = vpop.f32.mrb[0].mxu0
        %v3333 = vpop.f32.mrb[0].mxu0
        %v3334 = vpop.f32.mrb[0].mxu0
        %3335 = vdwg.mxu0
        %v3336 = vadd.f32 %v3281, %v3331
        %v3337 = vtanh.pop %v3336
        %v3338 = vmul.f32 %v3337, 1.442695
        %v3339 = vpow.pop %v3338
        %v3340 = vmul.f32 %v2925, %v3339
        %v3341 = vld [vmem:[%s39] sm:$0xf]
        %v3342 = vld [vmem:[%s39 + $0x4] sm:$0xf]
        %v3345 = vunpack.c.l.b16 %v3341
        %v3346 = vunpack.c.l.b16 %v3342
        %v3347 = vpack.c.b16 %v3346, %v3345
        %3349 = vmatprep.subr.bf16.mxu0 0
        %3350 = vmatpush1.bf16.msra.mxu0 %v3347
        %3351 = vmatprep.subr.bf16.mxu0 0
        %3352 = vmatpush1.bf16.msra.mxu0 0
        %3353 = vmatprep.subr.bf16.mxu0 0
        %3354 = vmatpush1.bf16.msra.mxu0 0
        %3355 = vmatprep.subr.bf16.mxu0 0
        %3356 = vmatpush1.bf16.msra.mxu0 0
        %3357 = vmatprep.subr.bf16.mxu0 0
        %3358 = vmatpush1.bf16.msra.mxu0 0
        %3359 = vmatprep.subr.bf16.mxu0 0
        %3360 = vmatpush1.bf16.msra.mxu0 0
        %3361 = vmatprep.subr.bf16.mxu0 0
        %3362 = vmatpush1.bf16.msra.mxu0 0
        %3363 = vmatprep.subr.bf16.mxu0 0
        %3364 = vmatpush1.bf16.msra.mxu0 0
        %3365 = vmatprep.subr.bf16.mxu0 0
        %3366 = vmatpush1.bf16.msra.mxu0 0
        %3367 = vmatprep.subr.bf16.mxu0 0
        %3368 = vmatpush1.bf16.msra.mxu0 0
        %3369 = vmatprep.subr.bf16.mxu0 0
        %3370 = vmatpush1.bf16.msra.mxu0 0
        %3371 = vmatprep.subr.bf16.mxu0 0
        %3372 = vmatpush1.bf16.msra.mxu0 0
        %3373 = vmatprep.subr.bf16.mxu0 0
        %3374 = vmatpush1.bf16.msra.mxu0 0
        %3375 = vmatprep.subr.bf16.mxu0 0
        %3376 = vmatpush1.bf16.msra.mxu0 0
        %3377 = vmatprep.subr.bf16.mxu0 0
        %3378 = vmatpush1.bf16.msra.mxu0 0
        %3379 = vmatprep.subr.bf16.mxu0 0
        %3380 = vmatpush1.bf16.msra.mxu0 0
        %3381 = vmatprep.mubr.bf16.mxu0 0
        %3382 = vmatmul.mubr.bf16.gmra.mrb[0].mxu0 %v2840
        %v3383 = vpop.f32.mrb[0].mxu0
        %v3384 = vadd.f32 0.0, %v3383
        %v3385 = vpop.f32.mrb[0].mxu0
        %v3386 = vpop.f32.mrb[0].mxu0
        %v3387 = vpop.f32.mrb[0].mxu0
        %3388 = vdwg.mxu0
        %v3389 = vpack.c.bf16 %v3384, %v3384
        %v3390 = vld [vmem:[%s51] sm:$0xf]
        %s3391 = scalar_lea.vmem %s51, 4
        %v3392 = vld [vmem:[%s3391] sm:$0xf]
        %3394 = vrot.lane.b32.xlu0 %v3389, 116
        %v3395 = vpop.permute.xlu0 %3394
        %v3397 = vsel %vm1224, %v3392, 0
        %v3400 = vsel %vm1228, %v3395, 0
        %3402 = vmatprep.subr.bf16.mxu0 0
        %3403 = vmatpush1.bf16.msra.mxu0 %v3400
        %3404 = vmatprep.subr.bf16.mxu0 0
        %3405 = vmatpush1.bf16.msra.mxu0 0
        %3406 = vmatprep.subr.bf16.mxu0 0
        %3407 = vmatpush1.bf16.msra.mxu0 0
        %3408 = vmatprep.subr.bf16.mxu0 0
        %3409 = vmatpush1.bf16.msra.mxu0 0
        %3410 = vmatprep.subr.bf16.mxu0 0
        %3411 = vmatpush1.bf16.msra.mxu0 0
        %3412 = vmatprep.subr.bf16.mxu0 0
        %3413 = vmatpush1.bf16.msra.mxu0 0
        %3414 = vmatprep.subr.bf16.mxu0 0
        %3415 = vmatpush1.bf16.msra.mxu0 0
        %3416 = vmatprep.subr.bf16.mxu0 0
        %3417 = vmatpush1.bf16.msra.mxu0 0
        %3418 = vmatprep.subr.bf16.mxu0 0
        %3419 = vmatpush1.bf16.msra.mxu0 0
        %3420 = vmatprep.subr.bf16.mxu0 0
        %3421 = vmatpush1.bf16.msra.mxu0 0
        %3422 = vmatprep.subr.bf16.mxu0 0
        %3423 = vmatpush1.bf16.msra.mxu0 0
        %3424 = vmatprep.subr.bf16.mxu0 0
        %3425 = vmatpush1.bf16.msra.mxu0 0
        %3426 = vmatprep.subr.bf16.mxu0 0
        %3427 = vmatpush1.bf16.msra.mxu0 0
        %3428 = vmatprep.subr.bf16.mxu0 0
        %3429 = vmatpush1.bf16.msra.mxu0 0
        %3430 = vmatprep.subr.bf16.mxu0 0
        %3431 = vmatpush1.bf16.msra.mxu0 0
        %3432 = vmatprep.subr.bf16.mxu0 0
        %3433 = vmatpush1.bf16.msra.mxu0 0
        %3434 = vmatprep.mubr.bf16.mxu0 0
        %3435 = vmatmul.mubr.bf16.gmra.mrb[0].mxu0 %v3397
        %v3436 = vpop.f32.mrb[0].mxu0
        %v3437 = vadd.f32 0.0, %v3436
        %v3438 = vpop.f32.mrb[0].mxu0
        %v3439 = vpop.f32.mrb[0].mxu0
        %v3440 = vpop.f32.mrb[0].mxu0
        %3441 = vdwg.mxu0
        %v3443 = vsel %vm1224, %v3390, 0
        %v3446 = vsel %vm1228, %v3389, 0
        %3448 = vmatprep.subr.bf16.mxu0 0
        %3449 = vmatpush1.bf16.msra.mxu0 %v3446
        %3450 = vmatprep.subr.bf16.mxu0 0
        %3451 = vmatpush1.bf16.msra.mxu0 0
        %3452 = vmatprep.subr.bf16.mxu0 0
        %3453 = vmatpush1.bf16.msra.mxu0 0
        %3454 = vmatprep.subr.bf16.mxu0 0
        %3455 = vmatpush1.bf16.msra.mxu0 0
        %3456 = vmatprep.subr.bf16.mxu0 0
        %3457 = vmatpush1.bf16.msra.mxu0 0
        %3458 = vmatprep.subr.bf16.mxu0 0
        %3459 = vmatpush1.bf16.msra.mxu0 0
        %3460 = vmatprep.subr.bf16.mxu0 0
        %3461 = vmatpush1.bf16.msra.mxu0 0
        %3462 = vmatprep.subr.bf16.mxu0 0
        %3463 = vmatpush1.bf16.msra.mxu0 0
        %3464 = vmatprep.subr.bf16.mxu0 0
        %3465 = vmatpush1.bf16.msra.mxu0 0
        %3466 = vmatprep.subr.bf16.mxu0 0
        %3467 = vmatpush1.bf16.msra.mxu0 0
        %3468 = vmatprep.subr.bf16.mxu0 0
        %3469 = vmatpush1.bf16.msra.mxu0 0
        %3470 = vmatprep.subr.bf16.mxu0 0
        %3471 = vmatpush1.bf16.msra.mxu0 0
        %3472 = vmatprep.subr.bf16.mxu0 0
        %3473 = vmatpush1.bf16.msra.mxu0 0
        %3474 = vmatprep.subr.bf16.mxu0 0
        %3475 = vmatpush1.bf16.msra.mxu0 0
        %3476 = vmatprep.subr.bf16.mxu0 0
        %3477 = vmatpush1.bf16.msra.mxu0 0
        %3478 = vmatprep.subr.bf16.mxu0 0
        %3479 = vmatpush1.bf16.msra.mxu0 0
        %3480 = vmatprep.mubr.bf16.mxu0 0
        %3481 = vmatmul.mubr.bf16.gmra.mrb[0].mxu0 %v3443
        %v3482 = vpop.f32.mrb[0].mxu0
        %v3483 = vadd.f32 %v3437, %v3482
        %v3484 = vpop.f32.mrb[0].mxu0
        %v3485 = vpop.f32.mrb[0].mxu0
        %v3486 = vpop.f32.mrb[0].mxu0
        %3487 = vdwg.mxu0
        %s3488 = scalar_lea.vmem %s51, 8
        %v3489 = vld [vmem:[%s3488] sm:$0xf]
        %3490 = vrot.lane.b32.xlu0 %v3389, 104
        %v3491 = vpop.permute.xlu0 %3490
        %v3493 = vsel %vm1224, %v3489, 0
        %v3496 = vsel %vm1228, %v3491, 0
        %3498 = vmatprep.subr.bf16.mxu0 0
        %3499 = vmatpush1.bf16.msra.mxu0 %v3496
        %3500 = vmatprep.subr.bf16.mxu0 0
        %3501 = vmatpush1.bf16.msra.mxu0 0
        %3502 = vmatprep.subr.bf16.mxu0 0
        %3503 = vmatpush1.bf16.msra.mxu0 0
        %3504 = vmatprep.subr.bf16.mxu0 0
        %3505 = vmatpush1.bf16.msra.mxu0 0
        %3506 = vmatprep.subr.bf16.mxu0 0
        %3507 = vmatpush1.bf16.msra.mxu0 0
        %3508 = vmatprep.subr.bf16.mxu0 0
        %3509 = vmatpush1.bf16.msra.mxu0 0
        %3510 = vmatprep.subr.bf16.mxu0 0
        %3511 = vmatpush1.bf16.msra.mxu0 0
        %3512 = vmatprep.subr.bf16.mxu0 0
        %3513 = vmatpush1.bf16.msra.mxu0 0
        %3514 = vmatprep.subr.bf16.mxu0 0
        %3515 = vmatpush1.bf16.msra.mxu0 0
        %3516 = vmatprep.subr.bf16.mxu0 0
        %3517 = vmatpush1.bf16.msra.mxu0 0
        %3518 = vmatprep.subr.bf16.mxu0 0
        %3519 = vmatpush1.bf16.msra.mxu0 0
        %3520 = vmatprep.subr.bf16.mxu0 0
        %3521 = vmatpush1.bf16.msra.mxu0 0
        %3522 = vmatprep.subr.bf16.mxu0 0
        %3523 = vmatpush1.bf16.msra.mxu0 0
        %3524 = vmatprep.subr.bf16.mxu0 0
        %3525 = vmatpush1.bf16.msra.mxu0 0
        %3526 = vmatprep.subr.bf16.mxu0 0
        %3527 = vmatpush1.bf16.msra.mxu0 0
        %3528 = vmatprep.subr.bf16.mxu0 0
        %3529 = vmatpush1.bf16.msra.mxu0 0
        %3530 = vmatprep.mubr.bf16.mxu0 0
        %3531 = vmatmul.mubr.bf16.gmra.mrb[0].mxu0 %v3493
        %v3532 = vpop.f32.mrb[0].mxu0
        %v3533 = vadd.f32 0.0, %v3532
        %v3534 = vpop.f32.mrb[0].mxu0
        %v3535 = vpop.f32.mrb[0].mxu0
        %v3536 = vpop.f32.mrb[0].mxu0
        %3537 = vdwg.mxu0
        %v3538 = vadd.f32 %v3483, %v3533
        %vm3539 = vcmp.ge.f32.partialorder %v3538, 0.0
        %v3540 = vmul.f32 %v3538, 0.01
        %v3541 = vsel %vm3539, %v3538, %v3540
        %v3542 = vpack.c.bf16 %v3541, %v3541
        %v3544 = vsel %vm3139, %v3542, 0
        %3546 = vmatprep.subr.bf16.mxu0 0
        %3547 = vmatpush1.bf16.msra.mxu0 %v3145
        %3548 = vmatprep.subr.bf16.mxu0 0
        %3549 = vmatpush1.bf16.msra.mxu0 0
        %3550 = vmatprep.subr.bf16.mxu0 0
        %3551 = vmatpush1.bf16.msra.mxu0 0
        %3552 = vmatprep.subr.bf16.mxu0 0
        %3553 = vmatpush1.bf16.msra.mxu0 0
        %3554 = vmatprep.subr.bf16.mxu0 0
        %3555 = vmatpush1.bf16.msra.mxu0 0
        %3556 = vmatprep.subr.bf16.mxu0 0
        %3557 = vmatpush1.bf16.msra.mxu0 0
        %3558 = vmatprep.subr.bf16.mxu0 0
        %3559 = vmatpush1.bf16.msra.mxu0 0
        %3560 = vmatprep.subr.bf16.mxu0 0
        %3561 = vmatpush1.bf16.msra.mxu0 0
        %3562 = vmatprep.subr.bf16.mxu0 0
        %3563 = vmatpush1.bf16.msra.mxu0 0
        %3564 = vmatprep.subr.bf16.mxu0 0
        %3565 = vmatpush1.bf16.msra.mxu0 0
        %3566 = vmatprep.subr.bf16.mxu0 0
        %3567 = vmatpush1.bf16.msra.mxu0 0
        %3568 = vmatprep.subr.bf16.mxu0 0
        %3569 = vmatpush1.bf16.msra.mxu0 0
        %3570 = vmatprep.subr.bf16.mxu0 0
        %3571 = vmatpush1.bf16.msra.mxu0 0
        %3572 = vmatprep.subr.bf16.mxu0 0
        %3573 = vmatpush1.bf16.msra.mxu0 0
        %3574 = vmatprep.subr.bf16.mxu0 0
        %3575 = vmatpush1.bf16.msra.mxu0 0
        %3576 = vmatprep.subr.bf16.mxu0 0
        %3577 = vmatpush1.bf16.msra.mxu0 0
        %3578 = vmatprep.mubr.bf16.mxu0 0
        %3579 = vmatmul.mubr.bf16.gmra.mrb[0].mxu0 %v3544
        %v3580 = vpop.f32.mrb[0].mxu0
        %v3581 = vadd.f32 0.0, %v3580
        %v3582 = vpop.f32.mrb[0].mxu0
        %v3583 = vpop.f32.mrb[0].mxu0
        %v3584 = vpop.f32.mrb[0].mxu0
        %3585 = vdwg.mxu0
        %v3586 = vpack.c.bf16 %v3581, %v3581
        %v3587 = vld [vmem:[%s53] sm:$0x3]
        %s3588 = scalar_lea.vmem %s53, 2
        %v3589 = vld [vmem:[%s3588] sm:$0x3]
        %3591 = vrot.lane.b32.xlu0 %v3586, 120
        %v3592 = vpop.permute.xlu0 %3591
        %v3594 = vsel %vm1435, %v3589, 0
        %v3597 = vsel %vm1439, %v3592, 0
        %3599 = vmatprep.subr.bf16.mxu0 0
        %3600 = vmatpush1.bf16.msra.mxu0 %v3597
        %3601 = vmatprep.subr.bf16.mxu0 0
        %3602 = vmatpush1.bf16.msra.mxu0 0
        %3603 = vmatprep.subr.bf16.mxu0 0
        %3604 = vmatpush1.bf16.msra.mxu0 0
        %3605 = vmatprep.subr.bf16.mxu0 0
        %3606 = vmatpush1.bf16.msra.mxu0 0
        %3607 = vmatprep.subr.bf16.mxu0 0
        %3608 = vmatpush1.bf16.msra.mxu0 0
        %3609 = vmatprep.subr.bf16.mxu0 0
        %3610 = vmatpush1.bf16.msra.mxu0 0
        %3611 = vmatprep.subr.bf16.mxu0 0
        %3612 = vmatpush1.bf16.msra.mxu0 0
        %3613 = vmatprep.subr.bf16.mxu0 0
        %3614 = vmatpush1.bf16.msra.mxu0 0
        %3615 = vmatprep.subr.bf16.mxu0 0
        %3616 = vmatpush1.bf16.msra.mxu0 0
        %3617 = vmatprep.subr.bf16.mxu0 0
        %3618 = vmatpush1.bf16.msra.mxu0 0
        %3619 = vmatprep.subr.bf16.mxu0 0
        %3620 = vmatpush1.bf16.msra.mxu0 0
        %3621 = vmatprep.subr.bf16.mxu0 0
        %3622 = vmatpush1.bf16.msra.mxu0 0
        %3623 = vmatprep.subr.bf16.mxu0 0
        %3624 = vmatpush1.bf16.msra.mxu0 0
        %3625 = vmatprep.subr.bf16.mxu0 0
        %3626 = vmatpush1.bf16.msra.mxu0 0
        %3627 = vmatprep.subr.bf16.mxu0 0
        %3628 = vmatpush1.bf16.msra.mxu0 0
        %3629 = vmatprep.subr.bf16.mxu0 0
        %3630 = vmatpush1.bf16.msra.mxu0 0
        %3631 = vmatprep.mubr.bf16.mxu0 0
        %3632 = vmatmul.mubr.bf16.gmra.mrb[0].mxu0 %v3594
        %v3633 = vpop.f32.mrb[0].mxu0
        %v3634 = vadd.f32 0.0, %v3633
        %v3635 = vpop.f32.mrb[0].mxu0
        %v3636 = vpop.f32.mrb[0].mxu0
        %v3637 = vpop.f32.mrb[0].mxu0
        %3638 = vdwg.mxu0
        %v3640 = vsel %vm1435, %v3587, 0
        %v3643 = vsel %vm1439, %v3586, 0
        %3645 = vmatprep.subr.bf16.mxu0 0
        %3646 = vmatpush1.bf16.msra.mxu0 %v3643
        %3647 = vmatprep.subr.bf16.mxu0 0
        %3648 = vmatpush1.bf16.msra.mxu0 0
        %3649 = vmatprep.subr.bf16.mxu0 0
        %3650 = vmatpush1.bf16.msra.mxu0 0
        %3651 = vmatprep.subr.bf16.mxu0 0
        %3652 = vmatpush1.bf16.msra.mxu0 0
        %3653 = vmatprep.subr.bf16.mxu0 0
        %3654 = vmatpush1.bf16.msra.mxu0 0
        %3655 = vmatprep.subr.bf16.mxu0 0
        %3656 = vmatpush1.bf16.msra.mxu0 0
        %3657 = vmatprep.subr.bf16.mxu0 0
        %3658 = vmatpush1.bf16.msra.mxu0 0
        %3659 = vmatprep.subr.bf16.mxu0 0
        %3660 = vmatpush1.bf16.msra.mxu0 0
        %3661 = vmatprep.subr.bf16.mxu0 0
        %3662 = vmatpush1.bf16.msra.mxu0 0
        %3663 = vmatprep.subr.bf16.mxu0 0
        %3664 = vmatpush1.bf16.msra.mxu0 0
        %3665 = vmatprep.subr.bf16.mxu0 0
        %3666 = vmatpush1.bf16.msra.mxu0 0
        %3667 = vmatprep.subr.bf16.mxu0 0
        %3668 = vmatpush1.bf16.msra.mxu0 0
        %3669 = vmatprep.subr.bf16.mxu0 0
        %3670 = vmatpush1.bf16.msra.mxu0 0
        %3671 = vmatprep.subr.bf16.mxu0 0
        %3672 = vmatpush1.bf16.msra.mxu0 0
        %3673 = vmatprep.subr.bf16.mxu0 0
        %3674 = vmatpush1.bf16.msra.mxu0 0
        %3675 = vmatprep.subr.bf16.mxu0 0
        %3676 = vmatpush1.bf16.msra.mxu0 0
        %3677 = vmatprep.mubr.bf16.mxu0 0
        %3678 = vmatmul.mubr.bf16.gmra.mrb[0].mxu0 %v3640
        %v3679 = vpop.f32.mrb[0].mxu0
        %v3680 = vadd.f32 %v3634, %v3679
        %v3681 = vpop.f32.mrb[0].mxu0
        %v3682 = vpop.f32.mrb[0].mxu0
        %v3683 = vpop.f32.mrb[0].mxu0
        %3684 = vdwg.mxu0
        %s3685 = scalar_lea.vmem %s53, 4
        %v3686 = vld [vmem:[%s3685] sm:$0x3]
        %3687 = vrot.lane.b32.xlu0 %v3586, 112
        %v3688 = vpop.permute.xlu0 %3687
        %v3690 = vsel %vm1435, %v3686, 0
        %v3693 = vsel %vm1439, %v3688, 0
        %3695 = vmatprep.subr.bf16.mxu0 0
        %3696 = vmatpush1.bf16.msra.mxu0 %v3693
        %3697 = vmatprep.subr.bf16.mxu0 0
        %3698 = vmatpush1.bf16.msra.mxu0 0
        %3699 = vmatprep.subr.bf16.mxu0 0
        %3700 = vmatpush1.bf16.msra.mxu0 0
        %3701 = vmatprep.subr.bf16.mxu0 0
        %3702 = vmatpush1.bf16.msra.mxu0 0
        %3703 = vmatprep.subr.bf16.mxu0 0
        %3704 = vmatpush1.bf16.msra.mxu0 0
        %3705 = vmatprep.subr.bf16.mxu0 0
        %3706 = vmatpush1.bf16.msra.mxu0 0
        %3707 = vmatprep.subr.bf16.mxu0 0
        %3708 = vmatpush1.bf16.msra.mxu0 0
        %3709 = vmatprep.subr.bf16.mxu0 0
        %3710 = vmatpush1.bf16.msra.mxu0 0
        %3711 = vmatprep.subr.bf16.mxu0 0
        %3712 = vmatpush1.bf16.msra.mxu0 0
        %3713 = vmatprep.subr.bf16.mxu0 0
        %3714 = vmatpush1.bf16.msra.mxu0 0
        %3715 = vmatprep.subr.bf16.mxu0 0
        %3716 = vmatpush1.bf16.msra.mxu0 0
        %3717 = vmatprep.subr.bf16.mxu0 0
        %3718 = vmatpush1.bf16.msra.mxu0 0
        %3719 = vmatprep.subr.bf16.mxu0 0
        %3720 = vmatpush1.bf16.msra.mxu0 0
        %3721 = vmatprep.subr.bf16.mxu0 0
        %3722 = vmatpush1.bf16.msra.mxu0 0
        %3723 = vmatprep.subr.bf16.mxu0 0
        %3724 = vmatpush1.bf16.msra.mxu0 0
        %3725 = vmatprep.subr.bf16.mxu0 0
        %3726 = vmatpush1.bf16.msra.mxu0 0
        %3727 = vmatprep.mubr.bf16.mxu0 0
        %3728 = vmatmul.mubr.bf16.gmra.mrb[0].mxu0 %v3690
        %v3729 = vpop.f32.mrb[0].mxu0
        %v3730 = vadd.f32 0.0, %v3729
        %v3731 = vpop.f32.mrb[0].mxu0
        %v3732 = vpop.f32.mrb[0].mxu0
        %v3733 = vpop.f32.mrb[0].mxu0
        %3734 = vdwg.mxu0
        %v3735 = vadd.f32 %v3680, %v3730
        %v3736 = vtanh.pop %v3735
        %v3737 = vmul.f32 %v3736, 1.442695
        %v3738 = vpow.pop %v3737
        %v3739 = vmul.f32 %v2877, %v3738
        %v3740 = vpack.c.bf16 %v3739, %v3739
        %v3741 = vld [vmem:[%s41] sm:$0xf]
        %v3743 = vsel %vm1435, %v3740, 0
        %v3746 = vsel %vm1439, %v3741, 0
        %3748 = vmatprep.subr.bf16.mxu0 0
        %3749 = vmatpush1.bf16.msra.mxu0 %v3746
        %3750 = vmatprep.subr.bf16.mxu0 0
        %3751 = vmatpush1.bf16.msra.mxu0 0
        %3752 = vmatprep.subr.bf16.mxu0 0
        %3753 = vmatpush1.bf16.msra.mxu0 0
        %3754 = vmatprep.subr.bf16.mxu0 0
        %3755 = vmatpush1.bf16.msra.mxu0 0
        %3756 = vmatprep.subr.bf16.mxu0 0
        %3757 = vmatpush1.bf16.msra.mxu0 0
        %3758 = vmatprep.subr.bf16.mxu0 0
        %3759 = vmatpush1.bf16.msra.mxu0 0
        %3760 = vmatprep.subr.bf16.mxu0 0
        %3761 = vmatpush1.bf16.msra.mxu0 0
        %3762 = vmatprep.subr.bf16.mxu0 0
        %3763 = vmatpush1.bf16.msra.mxu0 0
        %3764 = vmatprep.subr.bf16.mxu0 0
        %3765 = vmatpush1.bf16.msra.mxu0 0
        %3766 = vmatprep.subr.bf16.mxu0 0
        %3767 = vmatpush1.bf16.msra.mxu0 0
        %3768 = vmatprep.subr.bf16.mxu0 0
        %3769 = vmatpush1.bf16.msra.mxu0 0
        %3770 = vmatprep.subr.bf16.mxu0 0
        %3771 = vmatpush1.bf16.msra.mxu0 0
        %3772 = vmatprep.subr.bf16.mxu0 0
        %3773 = vmatpush1.bf16.msra.mxu0 0
        %3774 = vmatprep.subr.bf16.mxu0 0
        %3775 = vmatpush1.bf16.msra.mxu0 0
        %3776 = vmatprep.subr.bf16.mxu0 0
        %3777 = vmatpush1.bf16.msra.mxu0 0
        %3778 = vmatprep.subr.bf16.mxu0 0
        %3779 = vmatpush1.bf16.msra.mxu0 0
        %3780 = vmatprep.mubr.bf16.mxu0 0
        %3781 = vmatmul.mubr.bf16.gmra.mrb[0].mxu0 %v3743
        %v3782 = vpop.f32.mrb[0].mxu0
        %v3783 = vadd.f32 0.0, %v3782
        %v3784 = vpop.f32.mrb[0].mxu0
        %v3785 = vpop.f32.mrb[0].mxu0
        %v3786 = vpop.f32.mrb[0].mxu0
        %3787 = vdwg.mxu0
        %v3788 = vpack.c.bf16 %v3783, %v3783
        %v3789 = vld [vmem:[%s55] sm:$0xf]
        %s3790 = scalar_lea.vmem %s55, 4
        %v3791 = vld [vmem:[%s3790] sm:$0xf]
        %3793 = vrot.lane.b32.xlu0 %v3788, 116
        %v3794 = vpop.permute.xlu0 %3793
        %v3796 = vsel %vm1224, %v3791, 0
        %v3799 = vsel %vm1228, %v3794, 0
        %3801 = vmatprep.subr.bf16.mxu0 0
        %3802 = vmatpush1.bf16.msra.mxu0 %v3799
        %3803 = vmatprep.subr.bf16.mxu0 0
        %3804 = vmatpush1.bf16.msra.mxu0 0
        %3805 = vmatprep.subr.bf16.mxu0 0
        %3806 = vmatpush1.bf16.msra.mxu0 0
        %3807 = vmatprep.subr.bf16.mxu0 0
        %3808 = vmatpush1.bf16.msra.mxu0 0
        %3809 = vmatprep.subr.bf16.mxu0 0
        %3810 = vmatpush1.bf16.msra.mxu0 0
        %3811 = vmatprep.subr.bf16.mxu0 0
        %3812 = vmatpush1.bf16.msra.mxu0 0
        %3813 = vmatprep.subr.bf16.mxu0 0
        %3814 = vmatpush1.bf16.msra.mxu0 0
        %3815 = vmatprep.subr.bf16.mxu0 0
        %3816 = vmatpush1.bf16.msra.mxu0 0
        %3817 = vmatprep.subr.bf16.mxu0 0
        %3818 = vmatpush1.bf16.msra.mxu0 0
        %3819 = vmatprep.subr.bf16.mxu0 0
        %3820 = vmatpush1.bf16.msra.mxu0 0
        %3821 = vmatprep.subr.bf16.mxu0 0
        %3822 = vmatpush1.bf16.msra.mxu0 0
        %3823 = vmatprep.subr.bf16.mxu0 0
        %3824 = vmatpush1.bf16.msra.mxu0 0
        %3825 = vmatprep.subr.bf16.mxu0 0
        %3826 = vmatpush1.bf16.msra.mxu0 0
        %3827 = vmatprep.subr.bf16.mxu0 0
        %3828 = vmatpush1.bf16.msra.mxu0 0
        %3829 = vmatprep.subr.bf16.mxu0 0
        %3830 = vmatpush1.bf16.msra.mxu0 0
        %3831 = vmatprep.subr.bf16.mxu0 0
        %3832 = vmatpush1.bf16.msra.mxu0 0
        %3833 = vmatprep.mubr.bf16.mxu0 0
        %3834 = vmatmul.mubr.bf16.gmra.mrb[0].mxu0 %v3796
        %v3835 = vpop.f32.mrb[0].mxu0
        %v3836 = vadd.f32 0.0, %v3835
        %v3837 = vpop.f32.mrb[0].mxu0
        %v3838 = vpop.f32.mrb[0].mxu0
        %v3839 = vpop.f32.mrb[0].mxu0
        %3840 = vdwg.mxu0
        %v3842 = vsel %vm1224, %v3789, 0
        %v3845 = vsel %vm1228, %v3788, 0
        %3847 = vmatprep.subr.bf16.mxu0 0
        %3848 = vmatpush1.bf16.msra.mxu0 %v3845
        %3849 = vmatprep.subr.bf16.mxu0 0
        %3850 = vmatpush1.bf16.msra.mxu0 0
        %3851 = vmatprep.subr.bf16.mxu0 0
        %3852 = vmatpush1.bf16.msra.mxu0 0
        %3853 = vmatprep.subr.bf16.mxu0 0
        %3854 = vmatpush1.bf16.msra.mxu0 0
        %3855 = vmatprep.subr.bf16.mxu0 0
        %3856 = vmatpush1.bf16.msra.mxu0 0
        %3857 = vmatprep.subr.bf16.mxu0 0
        %3858 = vmatpush1.bf16.msra.mxu0 0
        %3859 = vmatprep.subr.bf16.mxu0 0
        %3860 = vmatpush1.bf16.msra.mxu0 0
        %3861 = vmatprep.subr.bf16.mxu0 0
        %3862 = vmatpush1.bf16.msra.mxu0 0
        %3863 = vmatprep.subr.bf16.mxu0 0
        %3864 = vmatpush1.bf16.msra.mxu0 0
        %3865 = vmatprep.subr.bf16.mxu0 0
        %3866 = vmatpush1.bf16.msra.mxu0 0
        %3867 = vmatprep.subr.bf16.mxu0 0
        %3868 = vmatpush1.bf16.msra.mxu0 0
        %3869 = vmatprep.subr.bf16.mxu0 0
        %3870 = vmatpush1.bf16.msra.mxu0 0
        %3871 = vmatprep.subr.bf16.mxu0 0
        %3872 = vmatpush1.bf16.msra.mxu0 0
        %3873 = vmatprep.subr.bf16.mxu0 0
        %3874 = vmatpush1.bf16.msra.mxu0 0
        %3875 = vmatprep.subr.bf16.mxu0 0
        %3876 = vmatpush1.bf16.msra.mxu0 0
        %3877 = vmatprep.subr.bf16.mxu0 0
        %3878 = vmatpush1.bf16.msra.mxu0 0
        %3879 = vmatprep.mubr.bf16.mxu0 0
        %3880 = vmatmul.mubr.bf16.gmra.mrb[0].mxu0 %v3842
        %v3881 = vpop.f32.mrb[0].mxu0
        %v3882 = vadd.f32 %v3836, %v3881
        %v3883 = vpop.f32.mrb[0].mxu0
        %v3884 = vpop.f32.mrb[0].mxu0
        %v3885 = vpop.f32.mrb[0].mxu0
        %3886 = vdwg.mxu0
        %s3887 = scalar_lea.vmem %s55, 8
        %v3888 = vld [vmem:[%s3887] sm:$0xf]
        %3889 = vrot.lane.b32.xlu0 %v3788, 104
        %v3890 = vpop.permute.xlu0 %3889
        %v3892 = vsel %vm1224, %v3888, 0
        %v3895 = vsel %vm1228, %v3890, 0
        %3897 = vmatprep.subr.bf16.mxu0 0
        %3898 = vmatpush1.bf16.msra.mxu0 %v3895
        %3899 = vmatprep.subr.bf16.mxu0 0
        %3900 = vmatpush1.bf16.msra.mxu0 0
        %3901 = vmatprep.subr.bf16.mxu0 0
        %3902 = vmatpush1.bf16.msra.mxu0 0
        %3903 = vmatprep.subr.bf16.mxu0 0
        %3904 = vmatpush1.bf16.msra.mxu0 0
        %3905 = vmatprep.subr.bf16.mxu0 0
        %3906 = vmatpush1.bf16.msra.mxu0 0
        %3907 = vmatprep.subr.bf16.mxu0 0
        %3908 = vmatpush1.bf16.msra.mxu0 0
        %3909 = vmatprep.subr.bf16.mxu0 0
        %3910 = vmatpush1.bf16.msra.mxu0 0
        %3911 = vmatprep.subr.bf16.mxu0 0
        %3912 = vmatpush1.bf16.msra.mxu0 0
        %3913 = vmatprep.subr.bf16.mxu0 0
        %3914 = vmatpush1.bf16.msra.mxu0 0
        %3915 = vmatprep.subr.bf16.mxu0 0
        %3916 = vmatpush1.bf16.msra.mxu0 0
        %3917 = vmatprep.subr.bf16.mxu0 0
        %3918 = vmatpush1.bf16.msra.mxu0 0
        %3919 = vmatprep.subr.bf16.mxu0 0
        %3920 = vmatpush1.bf16.msra.mxu0 0
        %3921 = vmatprep.subr.bf16.mxu0 0
        %3922 = vmatpush1.bf16.msra.mxu0 0
        %3923 = vmatprep.subr.bf16.mxu0 0
        %3924 = vmatpush1.bf16.msra.mxu0 0
        %3925 = vmatprep.subr.bf16.mxu0 0
        %3926 = vmatpush1.bf16.msra.mxu0 0
        %3927 = vmatprep.subr.bf16.mxu0 0
        %3928 = vmatpush1.bf16.msra.mxu0 0
        %3929 = vmatprep.mubr.bf16.mxu0 0
        %3930 = vmatmul.mubr.bf16.gmra.mrb[0].mxu0 %v3892
        %v3931 = vpop.f32.mrb[0].mxu0
        %v3932 = vadd.f32 0.0, %v3931
        %v3933 = vpop.f32.mrb[0].mxu0
        %v3934 = vpop.f32.mrb[0].mxu0
        %v3935 = vpop.f32.mrb[0].mxu0
        %3936 = vdwg.mxu0
        %v3937 = vadd.f32 %v3882, %v3932
        %vm3938 = vcmp.ge.f32.partialorder %v3937, 0.0
        %v3939 = vmul.f32 %v3937, 0.01
        %v3940 = vsel %vm3938, %v3937, %v3939
        %v3941 = vpack.c.bf16 %v3940, %v3940
        %v3943 = vsel %vm3139, %v3941, 0
        %3945 = vmatprep.subr.bf16.mxu0 0
        %3946 = vmatpush1.bf16.msra.mxu0 %v3145
        %3947 = vmatprep.subr.bf16.mxu0 0
        %3948 = vmatpush1.bf16.msra.mxu0 0
        %3949 = vmatprep.subr.bf16.mxu0 0
        %3950 = vmatpush1.bf16.msra.mxu0 0
        %3951 = vmatprep.subr.bf16.mxu0 0
        %3952 = vmatpush1.bf16.msra.mxu0 0
        %3953 = vmatprep.subr.bf16.mxu0 0
        %3954 = vmatpush1.bf16.msra.mxu0 0
        %3955 = vmatprep.subr.bf16.mxu0 0
        %3956 = vmatpush1.bf16.msra.mxu0 0
        %3957 = vmatprep.subr.bf16.mxu0 0
        %3958 = vmatpush1.bf16.msra.mxu0 0
        %3959 = vmatprep.subr.bf16.mxu0 0
        %3960 = vmatpush1.bf16.msra.mxu0 0
        %3961 = vmatprep.subr.bf16.mxu0 0
        %3962 = vmatpush1.bf16.msra.mxu0 0
        %3963 = vmatprep.subr.bf16.mxu0 0
        %3964 = vmatpush1.bf16.msra.mxu0 0
        %3965 = vmatprep.subr.bf16.mxu0 0
        %3966 = vmatpush1.bf16.msra.mxu0 0
        %3967 = vmatprep.subr.bf16.mxu0 0
        %3968 = vmatpush1.bf16.msra.mxu0 0
        %3969 = vmatprep.subr.bf16.mxu0 0
        %3970 = vmatpush1.bf16.msra.mxu0 0
        %3971 = vmatprep.subr.bf16.mxu0 0
        %3972 = vmatpush1.bf16.msra.mxu0 0
        %3973 = vmatprep.subr.bf16.mxu0 0
        %3974 = vmatpush1.bf16.msra.mxu0 0
        %3975 = vmatprep.subr.bf16.mxu0 0
        %3976 = vmatpush1.bf16.msra.mxu0 0
        %3977 = vmatprep.mubr.bf16.mxu0 0
        %3978 = vmatmul.mubr.bf16.gmra.mrb[0].mxu0 %v3943
        %v3979 = vpop.f32.mrb[0].mxu0
        %v3980 = vadd.f32 0.0, %v3979
        %v3981 = vpop.f32.mrb[0].mxu0
        %v3982 = vpop.f32.mrb[0].mxu0
        %v3983 = vpop.f32.mrb[0].mxu0
        %3984 = vdwg.mxu0
        %v3985 = vpack.c.bf16 %v3980, %v3980
        %v3986 = vld [vmem:[%s57] sm:$0x3]
        %s3987 = scalar_lea.vmem %s57, 2
        %v3988 = vld [vmem:[%s3987] sm:$0x3]
        %3990 = vrot.lane.b32.xlu0 %v3985, 120
        %v3991 = vpop.permute.xlu0 %3990
        %v3993 = vsel %vm1435, %v3988, 0
        %v3996 = vsel %vm1439, %v3991, 0
        %3998 = vmatprep.subr.bf16.mxu0 0
        %3999 = vmatpush1.bf16.msra.mxu0 %v3996
        %4000 = vmatprep.subr.bf16.mxu0 0
        %4001 = vmatpush1.bf16.msra.mxu0 0
        %4002 = vmatprep.subr.bf16.mxu0 0
        %4003 = vmatpush1.bf16.msra.mxu0 0
        %4004 = vmatprep.subr.bf16.mxu0 0
        %4005 = vmatpush1.bf16.msra.mxu0 0
        %4006 = vmatprep.subr.bf16.mxu0 0
        %4007 = vmatpush1.bf16.msra.mxu0 0
        %4008 = vmatprep.subr.bf16.mxu0 0
        %4009 = vmatpush1.bf16.msra.mxu0 0
        %4010 = vmatprep.subr.bf16.mxu0 0
        %4011 = vmatpush1.bf16.msra.mxu0 0
        %4012 = vmatprep.subr.bf16.mxu0 0
        %4013 = vmatpush1.bf16.msra.mxu0 0
        %4014 = vmatprep.subr.bf16.mxu0 0
        %4015 = vmatpush1.bf16.msra.mxu0 0
        %4016 = vmatprep.subr.bf16.mxu0 0
        %4017 = vmatpush1.bf16.msra.mxu0 0
        %4018 = vmatprep.subr.bf16.mxu0 0
        %4019 = vmatpush1.bf16.msra.mxu0 0
        %4020 = vmatprep.subr.bf16.mxu0 0
        %4021 = vmatpush1.bf16.msra.mxu0 0
        %4022 = vmatprep.subr.bf16.mxu0 0
        %4023 = vmatpush1.bf16.msra.mxu0 0
        %4024 = vmatprep.subr.bf16.mxu0 0
        %4025 = vmatpush1.bf16.msra.mxu0 0
        %4026 = vmatprep.subr.bf16.mxu0 0
        %4027 = vmatpush1.bf16.msra.mxu0 0
        %4028 = vmatprep.subr.bf16.mxu0 0
        %4029 = vmatpush1.bf16.msra.mxu0 0
        %4030 = vmatprep.mubr.bf16.mxu0 0
        %4031 = vmatmul.mubr.bf16.gmra.mrb[0].mxu0 %v3993
        %v4032 = vpop.f32.mrb[0].mxu0
        %v4033 = vadd.f32 0.0, %v4032
        %v4034 = vpop.f32.mrb[0].mxu0
        %v4035 = vpop.f32.mrb[0].mxu0
        %v4036 = vpop.f32.mrb[0].mxu0
        %4037 = vdwg.mxu0
        %v4039 = vsel %vm1435, %v3986, 0
        %v4042 = vsel %vm1439, %v3985, 0
        %4044 = vmatprep.subr.bf16.mxu0 0
        %4045 = vmatpush1.bf16.msra.mxu0 %v4042
        %4046 = vmatprep.subr.bf16.mxu0 0
        %4047 = vmatpush1.bf16.msra.mxu0 0
        %4048 = vmatprep.subr.bf16.mxu0 0
        %4049 = vmatpush1.bf16.msra.mxu0 0
        %4050 = vmatprep.subr.bf16.mxu0 0
        %4051 = vmatpush1.bf16.msra.mxu0 0
        %4052 = vmatprep.subr.bf16.mxu0 0
        %4053 = vmatpush1.bf16.msra.mxu0 0
        %4054 = vmatprep.subr.bf16.mxu0 0
        %4055 = vmatpush1.bf16.msra.mxu0 0
        %4056 = vmatprep.subr.bf16.mxu0 0
        %4057 = vmatpush1.bf16.msra.mxu0 0
        %4058 = vmatprep.subr.bf16.mxu0 0
        %4059 = vmatpush1.bf16.msra.mxu0 0
        %4060 = vmatprep.subr.bf16.mxu0 0
        %4061 = vmatpush1.bf16.msra.mxu0 0
        %4062 = vmatprep.subr.bf16.mxu0 0
        %4063 = vmatpush1.bf16.msra.mxu0 0
        %4064 = vmatprep.subr.bf16.mxu0 0
        %4065 = vmatpush1.bf16.msra.mxu0 0
        %4066 = vmatprep.subr.bf16.mxu0 0
        %4067 = vmatpush1.bf16.msra.mxu0 0
        %4068 = vmatprep.subr.bf16.mxu0 0
        %4069 = vmatpush1.bf16.msra.mxu0 0
        %4070 = vmatprep.subr.bf16.mxu0 0
        %4071 = vmatpush1.bf16.msra.mxu0 0
        %4072 = vmatprep.subr.bf16.mxu0 0
        %4073 = vmatpush1.bf16.msra.mxu0 0
        %4074 = vmatprep.subr.bf16.mxu0 0
        %4075 = vmatpush1.bf16.msra.mxu0 0
        %4076 = vmatprep.mubr.bf16.mxu0 0
        %4077 = vmatmul.mubr.bf16.gmra.mrb[0].mxu0 %v4039
        %v4078 = vpop.f32.mrb[0].mxu0
        %v4079 = vadd.f32 %v4033, %v4078
        %v4080 = vpop.f32.mrb[0].mxu0
        %v4081 = vpop.f32.mrb[0].mxu0
        %v4082 = vpop.f32.mrb[0].mxu0
        %4083 = vdwg.mxu0
        %s4084 = scalar_lea.vmem %s57, 4
        %v4085 = vld [vmem:[%s4084] sm:$0x3]
        %4086 = vrot.lane.b32.xlu0 %v3985, 112
        %v4087 = vpop.permute.xlu0 %4086
        %v4089 = vsel %vm1435, %v4085, 0
        %v4092 = vsel %vm1439, %v4087, 0
        %4094 = vmatprep.subr.bf16.mxu0 0
        %4095 = vmatpush1.bf16.msra.mxu0 %v4092
        %4096 = vmatprep.subr.bf16.mxu0 0
        %4097 = vmatpush1.bf16.msra.mxu0 0
        %4098 = vmatprep.subr.bf16.mxu0 0
        %4099 = vmatpush1.bf16.msra.mxu0 0
        %4100 = vmatprep.subr.bf16.mxu0 0
        %4101 = vmatpush1.bf16.msra.mxu0 0
        %4102 = vmatprep.subr.bf16.mxu0 0
        %4103 = vmatpush1.bf16.msra.mxu0 0
        %4104 = vmatprep.subr.bf16.mxu0 0
        %4105 = vmatpush1.bf16.msra.mxu0 0
        %4106 = vmatprep.subr.bf16.mxu0 0
        %4107 = vmatpush1.bf16.msra.mxu0 0
        %4108 = vmatprep.subr.bf16.mxu0 0
        %4109 = vmatpush1.bf16.msra.mxu0 0
        %4110 = vmatprep.subr.bf16.mxu0 0
        %4111 = vmatpush1.bf16.msra.mxu0 0
        %4112 = vmatprep.subr.bf16.mxu0 0
        %4113 = vmatpush1.bf16.msra.mxu0 0
        %4114 = vmatprep.subr.bf16.mxu0 0
        %4115 = vmatpush1.bf16.msra.mxu0 0
        %4116 = vmatprep.subr.bf16.mxu0 0
        %4117 = vmatpush1.bf16.msra.mxu0 0
        %4118 = vmatprep.subr.bf16.mxu0 0
        %4119 = vmatpush1.bf16.msra.mxu0 0
        %4120 = vmatprep.subr.bf16.mxu0 0
        %4121 = vmatpush1.bf16.msra.mxu0 0
        %4122 = vmatprep.subr.bf16.mxu0 0
        %4123 = vmatpush1.bf16.msra.mxu0 0
        %4124 = vmatprep.subr.bf16.mxu0 0
        %4125 = vmatpush1.bf16.msra.mxu0 0
        %4126 = vmatprep.mubr.bf16.mxu0 0
        %4127 = vmatmul.mubr.bf16.gmra.mrb[0].mxu0 %v4089
        %v4128 = vpop.f32.mrb[0].mxu0
        %v4129 = vadd.f32 0.0, %v4128
        %v4130 = vpop.f32.mrb[0].mxu0
        %v4131 = vpop.f32.mrb[0].mxu0
        %v4132 = vpop.f32.mrb[0].mxu0
        %4133 = vdwg.mxu0
        %v4134 = vadd.f32 %v4079, %v4129
        %v4135 = vtanh.pop %v4134
        %v4136 = vsub.f32 %v3739, %v4135
        %v4137 = vpack.c.bf16 %v3340, %v3340
        %v4139 = vsel %vm1435, %v4137, 0
        %4141 = vmatprep.subr.bf16.mxu0 0
        %4142 = vmatpush1.bf16.msra.mxu0 %v3746
        %4143 = vmatprep.subr.bf16.mxu0 0
        %4144 = vmatpush1.bf16.msra.mxu0 0
        %4145 = vmatprep.subr.bf16.mxu0 0
        %4146 = vmatpush1.bf16.msra.mxu0 0
        %4147 = vmatprep.subr.bf16.mxu0 0
        %4148 = vmatpush1.bf16.msra.mxu0 0
        %4149 = vmatprep.subr.bf16.mxu0 0
        %4150 = vmatpush1.bf16.msra.mxu0 0
        %4151 = vmatprep.subr.bf16.mxu0 0
        %4152 = vmatpush1.bf16.msra.mxu0 0
        %4153 = vmatprep.subr.bf16.mxu0 0
        %4154 = vmatpush1.bf16.msra.mxu0 0
        %4155 = vmatprep.subr.bf16.mxu0 0
        %4156 = vmatpush1.bf16.msra.mxu0 0
        %4157 = vmatprep.subr.bf16.mxu0 0
        %4158 = vmatpush1.bf16.msra.mxu0 0
        %4159 = vmatprep.subr.bf16.mxu0 0
        %4160 = vmatpush1.bf16.msra.mxu0 0
        %4161 = vmatprep.subr.bf16.mxu0 0
        %4162 = vmatpush1.bf16.msra.mxu0 0
        %4163 = vmatprep.subr.bf16.mxu0 0
        %4164 = vmatpush1.bf16.msra.mxu0 0
        %4165 = vmatprep.subr.bf16.mxu0 0
        %4166 = vmatpush1.bf16.msra.mxu0 0
        %4167 = vmatprep.subr.bf16.mxu0 0
        %4168 = vmatpush1.bf16.msra.mxu0 0
        %4169 = vmatprep.subr.bf16.mxu0 0
        %4170 = vmatpush1.bf16.msra.mxu0 0
        %4171 = vmatprep.subr.bf16.mxu0 0
        %4172 = vmatpush1.bf16.msra.mxu0 0
        %4173 = vmatprep.mubr.bf16.mxu0 0
        %4174 = vmatmul.mubr.bf16.gmra.mrb[0].mxu0 %v4139
        %v4175 = vpop.f32.mrb[0].mxu0
        %v4176 = vadd.f32 0.0, %v4175
        %v4177 = vpop.f32.mrb[0].mxu0
        %v4178 = vpop.f32.mrb[0].mxu0
        %v4179 = vpop.f32.mrb[0].mxu0
        %4180 = vdwg.mxu0
        %v4181 = vpack.c.bf16 %v4176, %v4176
        %v4182 = vld [vmem:[%s59] sm:$0xf]
        %s4183 = scalar_lea.vmem %s59, 4
        %v4184 = vld [vmem:[%s4183] sm:$0xf]
        %4186 = vrot.lane.b32.xlu0 %v4181, 116
        %v4187 = vpop.permute.xlu0 %4186
        %v4189 = vsel %vm1224, %v4184, 0
        %v4192 = vsel %vm1228, %v4187, 0
        %4194 = vmatprep.subr.bf16.mxu0 0
        %4195 = vmatpush1.bf16.msra.mxu0 %v4192
        %4196 = vmatprep.subr.bf16.mxu0 0
        %4197 = vmatpush1.bf16.msra.mxu0 0
        %4198 = vmatprep.subr.bf16.mxu0 0
        %4199 = vmatpush1.bf16.msra.mxu0 0
        %4200 = vmatprep.subr.bf16.mxu0 0
        %4201 = vmatpush1.bf16.msra.mxu0 0
        %4202 = vmatprep.subr.bf16.mxu0 0
        %4203 = vmatpush1.bf16.msra.mxu0 0
        %4204 = vmatprep.subr.bf16.mxu0 0
        %4205 = vmatpush1.bf16.msra.mxu0 0
        %4206 = vmatprep.subr.bf16.mxu0 0
        %4207 = vmatpush1.bf16.msra.mxu0 0
        %4208 = vmatprep.subr.bf16.mxu0 0
        %4209 = vmatpush1.bf16.msra.mxu0 0
        %4210 = vmatprep.subr.bf16.mxu0 0
        %4211 = vmatpush1.bf16.msra.mxu0 0
        %4212 = vmatprep.subr.bf16.mxu0 0
        %4213 = vmatpush1.bf16.msra.mxu0 0
        %4214 = vmatprep.subr.bf16.mxu0 0
        %4215 = vmatpush1.bf16.msra.mxu0 0
        %4216 = vmatprep.subr.bf16.mxu0 0
        %4217 = vmatpush1.bf16.msra.mxu0 0
        %4218 = vmatprep.subr.bf16.mxu0 0
        %4219 = vmatpush1.bf16.msra.mxu0 0
        %4220 = vmatprep.subr.bf16.mxu0 0
        %4221 = vmatpush1.bf16.msra.mxu0 0
        %4222 = vmatprep.subr.bf16.mxu0 0
        %4223 = vmatpush1.bf16.msra.mxu0 0
        %4224 = vmatprep.subr.bf16.mxu0 0
        %4225 = vmatpush1.bf16.msra.mxu0 0
        %4226 = vmatprep.mubr.bf16.mxu0 0
        %4227 = vmatmul.mubr.bf16.gmra.mrb[0].mxu0 %v4189
        %v4228 = vpop.f32.mrb[0].mxu0
        %v4229 = vadd.f32 0.0, %v4228
        %v4230 = vpop.f32.mrb[0].mxu0
        %v4231 = vpop.f32.mrb[0].mxu0
        %v4232 = vpop.f32.mrb[0].mxu0
        %4233 = vdwg.mxu0
        %v4235 = vsel %vm1224, %v4182, 0
        %v4238 = vsel %vm1228, %v4181, 0
        %4240 = vmatprep.subr.bf16.mxu0 0
        %4241 = vmatpush1.bf16.msra.mxu0 %v4238
        %4242 = vmatprep.subr.bf16.mxu0 0
        %4243 = vmatpush1.bf16.msra.mxu0 0
        %4244 = vmatprep.subr.bf16.mxu0 0
        %4245 = vmatpush1.bf16.msra.mxu0 0
        %4246 = vmatprep.subr.bf16.mxu0 0
        %4247 = vmatpush1.bf16.msra.mxu0 0
        %4248 = vmatprep.subr.bf16.mxu0 0
        %4249 = vmatpush1.bf16.msra.mxu0 0
        %4250 = vmatprep.subr.bf16.mxu0 0
        %4251 = vmatpush1.bf16.msra.mxu0 0
        %4252 = vmatprep.subr.bf16.mxu0 0
        %4253 = vmatpush1.bf16.msra.mxu0 0
        %4254 = vmatprep.subr.bf16.mxu0 0
        %4255 = vmatpush1.bf16.msra.mxu0 0
        %4256 = vmatprep.subr.bf16.mxu0 0
        %4257 = vmatpush1.bf16.msra.mxu0 0
        %4258 = vmatprep.subr.bf16.mxu0 0
        %4259 = vmatpush1.bf16.msra.mxu0 0
        %4260 = vmatprep.subr.bf16.mxu0 0
        %4261 = vmatpush1.bf16.msra.mxu0 0
        %4262 = vmatprep.subr.bf16.mxu0 0
        %4263 = vmatpush1.bf16.msra.mxu0 0
        %4264 = vmatprep.subr.bf16.mxu0 0
        %4265 = vmatpush1.bf16.msra.mxu0 0
        %4266 = vmatprep.subr.bf16.mxu0 0
        %4267 = vmatpush1.bf16.msra.mxu0 0
        %4268 = vmatprep.subr.bf16.mxu0 0
        %4269 = vmatpush1.bf16.msra.mxu0 0
        %4270 = vmatprep.subr.bf16.mxu0 0
        %4271 = vmatpush1.bf16.msra.mxu0 0
        %4272 = vmatprep.mubr.bf16.mxu0 0
        %4273 = vmatmul.mubr.bf16.gmra.mrb[0].mxu0 %v4235
        %v4274 = vpop.f32.mrb[0].mxu0
        %v4275 = vadd.f32 %v4229, %v4274
        %v4276 = vpop.f32.mrb[0].mxu0
        %v4277 = vpop.f32.mrb[0].mxu0
        %v4278 = vpop.f32.mrb[0].mxu0
        %4279 = vdwg.mxu0
        %s4280 = scalar_lea.vmem %s59, 8
        %v4281 = vld [vmem:[%s4280] sm:$0xf]
        %4282 = vrot.lane.b32.xlu0 %v4181, 104
        %v4283 = vpop.permute.xlu0 %4282
        %v4285 = vsel %vm1224, %v4281, 0
        %v4288 = vsel %vm1228, %v4283, 0
        %4290 = vmatprep.subr.bf16.mxu0 0
        %4291 = vmatpush1.bf16.msra.mxu0 %v4288
        %4292 = vmatprep.subr.bf16.mxu0 0
        %4293 = vmatpush1.bf16.msra.mxu0 0
        %4294 = vmatprep.subr.bf16.mxu0 0
        %4295 = vmatpush1.bf16.msra.mxu0 0
        %4296 = vmatprep.subr.bf16.mxu0 0
        %4297 = vmatpush1.bf16.msra.mxu0 0
        %4298 = vmatprep.subr.bf16.mxu0 0
        %4299 = vmatpush1.bf16.msra.mxu0 0
        %4300 = vmatprep.subr.bf16.mxu0 0
        %4301 = vmatpush1.bf16.msra.mxu0 0
        %4302 = vmatprep.subr.bf16.mxu0 0
        %4303 = vmatpush1.bf16.msra.mxu0 0
        %4304 = vmatprep.subr.bf16.mxu0 0
        %4305 = vmatpush1.bf16.msra.mxu0 0
        %4306 = vmatprep.subr.bf16.mxu0 0
        %4307 = vmatpush1.bf16.msra.mxu0 0
        %4308 = vmatprep.subr.bf16.mxu0 0
        %4309 = vmatpush1.bf16.msra.mxu0 0
        %4310 = vmatprep.subr.bf16.mxu0 0
        %4311 = vmatpush1.bf16.msra.mxu0 0
        %4312 = vmatprep.subr.bf16.mxu0 0
        %4313 = vmatpush1.bf16.msra.mxu0 0
        %4314 = vmatprep.subr.bf16.mxu0 0
        %4315 = vmatpush1.bf16.msra.mxu0 0
        %4316 = vmatprep.subr.bf16.mxu0 0
        %4317 = vmatpush1.bf16.msra.mxu0 0
        %4318 = vmatprep.subr.bf16.mxu0 0
        %4319 = vmatpush1.bf16.msra.mxu0 0
        %4320 = vmatprep.subr.bf16.mxu0 0
        %4321 = vmatpush1.bf16.msra.mxu0 0
        %4322 = vmatprep.mubr.bf16.mxu0 0
        %4323 = vmatmul.mubr.bf16.gmra.mrb[0].mxu0 %v4285
        %v4324 = vpop.f32.mrb[0].mxu0
        %v4325 = vadd.f32 0.0, %v4324
        %v4326 = vpop.f32.mrb[0].mxu0
        %v4327 = vpop.f32.mrb[0].mxu0
        %v4328 = vpop.f32.mrb[0].mxu0
        %4329 = vdwg.mxu0
        %v4330 = vadd.f32 %v4275, %v4325
        %vm4331 = vcmp.ge.f32.partialorder %v4330, 0.0
        %v4332 = vmul.f32 %v4330, 0.01
        %v4333 = vsel %vm4331, %v4330, %v4332
        %v4334 = vpack.c.bf16 %v4333, %v4333
        %v4336 = vsel %vm3139, %v4334, 0
        %4338 = vmatprep.subr.bf16.mxu0 0
        %4339 = vmatpush1.bf16.msra.mxu0 %v3145
        %4340 = vmatprep.subr.bf16.mxu0 0
        %4341 = vmatpush1.bf16.msra.mxu0 0
        %4342 = vmatprep.subr.bf16.mxu0 0
        %4343 = vmatpush1.bf16.msra.mxu0 0
        %4344 = vmatprep.subr.bf16.mxu0 0
        %4345 = vmatpush1.bf16.msra.mxu0 0
        %4346 = vmatprep.subr.bf16.mxu0 0
        %4347 = vmatpush1.bf16.msra.mxu0 0
        %4348 = vmatprep.subr.bf16.mxu0 0
        %4349 = vmatpush1.bf16.msra.mxu0 0
        %4350 = vmatprep.subr.bf16.mxu0 0
        %4351 = vmatpush1.bf16.msra.mxu0 0
        %4352 = vmatprep.subr.bf16.mxu0 0
        %4353 = vmatpush1.bf16.msra.mxu0 0
        %4354 = vmatprep.subr.bf16.mxu0 0
        %4355 = vmatpush1.bf16.msra.mxu0 0
        %4356 = vmatprep.subr.bf16.mxu0 0
        %4357 = vmatpush1.bf16.msra.mxu0 0
        %4358 = vmatprep.subr.bf16.mxu0 0
        %4359 = vmatpush1.bf16.msra.mxu0 0
        %4360 = vmatprep.subr.bf16.mxu0 0
        %4361 = vmatpush1.bf16.msra.mxu0 0
        %4362 = vmatprep.subr.bf16.mxu0 0
        %4363 = vmatpush1.bf16.msra.mxu0 0
        %4364 = vmatprep.subr.bf16.mxu0 0
        %4365 = vmatpush1.bf16.msra.mxu0 0
        %4366 = vmatprep.subr.bf16.mxu0 0
        %4367 = vmatpush1.bf16.msra.mxu0 0
        %4368 = vmatprep.subr.bf16.mxu0 0
        %4369 = vmatpush1.bf16.msra.mxu0 0
        %4370 = vmatprep.mubr.bf16.mxu0 0
        %4371 = vmatmul.mubr.bf16.gmra.mrb[0].mxu0 %v4336
        %v4372 = vpop.f32.mrb[0].mxu0
        %v4373 = vadd.f32 0.0, %v4372
        %v4374 = vpop.f32.mrb[0].mxu0
        %v4375 = vpop.f32.mrb[0].mxu0
        %v4376 = vpop.f32.mrb[0].mxu0
        %4377 = vdwg.mxu0
        %v4378 = vpack.c.bf16 %v4373, %v4373
        %v4379 = vld [vmem:[%s61] sm:$0x3]
        %s4380 = scalar_lea.vmem %s61, 2
        %v4381 = vld [vmem:[%s4380] sm:$0x3]
        %4383 = vrot.lane.b32.xlu0 %v4378, 120
        %v4384 = vpop.permute.xlu0 %4383
        %v4386 = vsel %vm1435, %v4381, 0
        %v4389 = vsel %vm1439, %v4384, 0
        %4391 = vmatprep.subr.bf16.mxu0 0
        %4392 = vmatpush1.bf16.msra.mxu0 %v4389
        %4393 = vmatprep.subr.bf16.mxu0 0
        %4394 = vmatpush1.bf16.msra.mxu0 0
        %4395 = vmatprep.subr.bf16.mxu0 0
        %4396 = vmatpush1.bf16.msra.mxu0 0
        %4397 = vmatprep.subr.bf16.mxu0 0
        %4398 = vmatpush1.bf16.msra.mxu0 0
        %4399 = vmatprep.subr.bf16.mxu0 0
        %4400 = vmatpush1.bf16.msra.mxu0 0
        %4401 = vmatprep.subr.bf16.mxu0 0
        %4402 = vmatpush1.bf16.msra.mxu0 0
        %4403 = vmatprep.subr.bf16.mxu0 0
        %4404 = vmatpush1.bf16.msra.mxu0 0
        %4405 = vmatprep.subr.bf16.mxu0 0
        %4406 = vmatpush1.bf16.msra.mxu0 0
        %4407 = vmatprep.subr.bf16.mxu0 0
        %4408 = vmatpush1.bf16.msra.mxu0 0
        %4409 = vmatprep.subr.bf16.mxu0 0
        %4410 = vmatpush1.bf16.msra.mxu0 0
        %4411 = vmatprep.subr.bf16.mxu0 0
        %4412 = vmatpush1.bf16.msra.mxu0 0
        %4413 = vmatprep.subr.bf16.mxu0 0
        %4414 = vmatpush1.bf16.msra.mxu0 0
        %4415 = vmatprep.subr.bf16.mxu0 0
        %4416 = vmatpush1.bf16.msra.mxu0 0
        %4417 = vmatprep.subr.bf16.mxu0 0
        %4418 = vmatpush1.bf16.msra.mxu0 0
        %4419 = vmatprep.subr.bf16.mxu0 0
        %4420 = vmatpush1.bf16.msra.mxu0 0
        %4421 = vmatprep.subr.bf16.mxu0 0
        %4422 = vmatpush1.bf16.msra.mxu0 0
        %4423 = vmatprep.mubr.bf16.mxu0 0
        %4424 = vmatmul.mubr.bf16.gmra.mrb[0].mxu0 %v4386
        %v4425 = vpop.f32.mrb[0].mxu0
        %v4426 = vadd.f32 0.0, %v4425
        %v4427 = vpop.f32.mrb[0].mxu0
        %v4428 = vpop.f32.mrb[0].mxu0
        %v4429 = vpop.f32.mrb[0].mxu0
        %4430 = vdwg.mxu0
        %v4432 = vsel %vm1435, %v4379, 0
        %v4435 = vsel %vm1439, %v4378, 0
        %4437 = vmatprep.subr.bf16.mxu0 0
        %4438 = vmatpush1.bf16.msra.mxu0 %v4435
        %4439 = vmatprep.subr.bf16.mxu0 0
        %4440 = vmatpush1.bf16.msra.mxu0 0
        %4441 = vmatprep.subr.bf16.mxu0 0
        %4442 = vmatpush1.bf16.msra.mxu0 0
        %4443 = vmatprep.subr.bf16.mxu0 0
        %4444 = vmatpush1.bf16.msra.mxu0 0
        %4445 = vmatprep.subr.bf16.mxu0 0
        %4446 = vmatpush1.bf16.msra.mxu0 0
        %4447 = vmatprep.subr.bf16.mxu0 0
        %4448 = vmatpush1.bf16.msra.mxu0 0
        %4449 = vmatprep.subr.bf16.mxu0 0
        %4450 = vmatpush1.bf16.msra.mxu0 0
        %4451 = vmatprep.subr.bf16.mxu0 0
        %4452 = vmatpush1.bf16.msra.mxu0 0
        %4453 = vmatprep.subr.bf16.mxu0 0
        %4454 = vmatpush1.bf16.msra.mxu0 0
        %4455 = vmatprep.subr.bf16.mxu0 0
        %4456 = vmatpush1.bf16.msra.mxu0 0
        %4457 = vmatprep.subr.bf16.mxu0 0
        %4458 = vmatpush1.bf16.msra.mxu0 0
        %4459 = vmatprep.subr.bf16.mxu0 0
        %4460 = vmatpush1.bf16.msra.mxu0 0
        %4461 = vmatprep.subr.bf16.mxu0 0
        %4462 = vmatpush1.bf16.msra.mxu0 0
        %4463 = vmatprep.subr.bf16.mxu0 0
        %4464 = vmatpush1.bf16.msra.mxu0 0
        %4465 = vmatprep.subr.bf16.mxu0 0
        %4466 = vmatpush1.bf16.msra.mxu0 0
        %4467 = vmatprep.subr.bf16.mxu0 0
        %4468 = vmatpush1.bf16.msra.mxu0 0
        %4469 = vmatprep.mubr.bf16.mxu0 0
        %4470 = vmatmul.mubr.bf16.gmra.mrb[0].mxu0 %v4432
        %v4471 = vpop.f32.mrb[0].mxu0
        %v4472 = vadd.f32 %v4426, %v4471
        %v4473 = vpop.f32.mrb[0].mxu0
        %v4474 = vpop.f32.mrb[0].mxu0
        %v4475 = vpop.f32.mrb[0].mxu0
        %4476 = vdwg.mxu0
        %s4477 = scalar_lea.vmem %s61, 4
        %v4478 = vld [vmem:[%s4477] sm:$0x3]
        %4479 = vrot.lane.b32.xlu0 %v4378, 112
        %v4480 = vpop.permute.xlu0 %4479
        %v4482 = vsel %vm1435, %v4478, 0
        %v4485 = vsel %vm1439, %v4480, 0
        %4487 = vmatprep.subr.bf16.mxu0 0
        %4488 = vmatpush1.bf16.msra.mxu0 %v4485
        %4489 = vmatprep.subr.bf16.mxu0 0
        %4490 = vmatpush1.bf16.msra.mxu0 0
        %4491 = vmatprep.subr.bf16.mxu0 0
        %4492 = vmatpush1.bf16.msra.mxu0 0
        %4493 = vmatprep.subr.bf16.mxu0 0
        %4494 = vmatpush1.bf16.msra.mxu0 0
        %4495 = vmatprep.subr.bf16.mxu0 0
        %4496 = vmatpush1.bf16.msra.mxu0 0
        %4497 = vmatprep.subr.bf16.mxu0 0
        %4498 = vmatpush1.bf16.msra.mxu0 0
        %4499 = vmatprep.subr.bf16.mxu0 0
        %4500 = vmatpush1.bf16.msra.mxu0 0
        %4501 = vmatprep.subr.bf16.mxu0 0
        %4502 = vmatpush1.bf16.msra.mxu0 0
        %4503 = vmatprep.subr.bf16.mxu0 0
        %4504 = vmatpush1.bf16.msra.mxu0 0
        %4505 = vmatprep.subr.bf16.mxu0 0
        %4506 = vmatpush1.bf16.msra.mxu0 0
        %4507 = vmatprep.subr.bf16.mxu0 0
        %4508 = vmatpush1.bf16.msra.mxu0 0
        %4509 = vmatprep.subr.bf16.mxu0 0
        %4510 = vmatpush1.bf16.msra.mxu0 0
        %4511 = vmatprep.subr.bf16.mxu0 0
        %4512 = vmatpush1.bf16.msra.mxu0 0
        %4513 = vmatprep.subr.bf16.mxu0 0
        %4514 = vmatpush1.bf16.msra.mxu0 0
        %4515 = vmatprep.subr.bf16.mxu0 0
        %4516 = vmatpush1.bf16.msra.mxu0 0
        %4517 = vmatprep.subr.bf16.mxu0 0
        %4518 = vmatpush1.bf16.msra.mxu0 0
        %4519 = vmatprep.mubr.bf16.mxu0 0
        %4520 = vmatmul.mubr.bf16.gmra.mrb[0].mxu0 %v4482
        %v4521 = vpop.f32.mrb[0].mxu0
        %v4522 = vadd.f32 0.0, %v4521
        %v4523 = vpop.f32.mrb[0].mxu0
        %v4524 = vpop.f32.mrb[0].mxu0
        %v4525 = vpop.f32.mrb[0].mxu0
        %4526 = vdwg.mxu0
        %v4527 = vadd.f32 %v4472, %v4522
        %v4528 = vtanh.pop %v4527
        %v4529 = vadd.f32 %v3340, %v4528
        %4531 = vrot.lane.b32.xlu0 %v4529, 8
        %v4532 = vpop.permute.xlu0 %4531
        %v4534 = vsel %vm1435, %v4136, %v4532
        %v4535 = vpack.c.bf16 %v4534, %v4534
        %v4536 = vld [vmem:[%s45] sm:$0xf]
        %v4537 = vld [vmem:[%s45 + $0x4] sm:$0xf]
        %v4540 = vunpack.c.l.b16 %v4536
        %v4541 = vunpack.c.l.b16 %v4537
        %v4542 = vpack.c.b16 %v4541, %v4540
        %v4545 = vsel %vm1077, %v4535, 0
        %4547 = vmatprep.subr.bf16.mxu0 0
        %4548 = vmatpush1.bf16.msra.mxu0 %v4542
        %4549 = vmatprep.subr.bf16.mxu0 0
        %4550 = vmatpush1.bf16.msra.mxu0 0
        %4551 = vmatprep.subr.bf16.mxu0 0
        %4552 = vmatpush1.bf16.msra.mxu0 0
        %4553 = vmatprep.subr.bf16.mxu0 0
        %4554 = vmatpush1.bf16.msra.mxu0 0
        %4555 = vmatprep.subr.bf16.mxu0 0
        %4556 = vmatpush1.bf16.msra.mxu0 0
        %4557 = vmatprep.subr.bf16.mxu0 0
        %4558 = vmatpush1.bf16.msra.mxu0 0
        %4559 = vmatprep.subr.bf16.mxu0 0
        %4560 = vmatpush1.bf16.msra.mxu0 0
        %4561 = vmatprep.subr.bf16.mxu0 0
        %4562 = vmatpush1.bf16.msra.mxu0 0
        %4563 = vmatprep.subr.bf16.mxu0 0
        %4564 = vmatpush1.bf16.msra.mxu0 0
        %4565 = vmatprep.subr.bf16.mxu0 0
        %4566 = vmatpush1.bf16.msra.mxu0 0
        %4567 = vmatprep.subr.bf16.mxu0 0
        %4568 = vmatpush1.bf16.msra.mxu0 0
        %4569 = vmatprep.subr.bf16.mxu0 0
        %4570 = vmatpush1.bf16.msra.mxu0 0
        %4571 = vmatprep.subr.bf16.mxu0 0
        %4572 = vmatpush1.bf16.msra.mxu0 0
        %4573 = vmatprep.subr.bf16.mxu0 0
        %4574 = vmatpush1.bf16.msra.mxu0 0
        %4575 = vmatprep.subr.bf16.mxu0 0
        %4576 = vmatpush1.bf16.msra.mxu0 0
        %4577 = vmatprep.subr.bf16.mxu0 0
        %4578 = vmatpush1.bf16.msra.mxu0 0
        %4579 = vmatprep.mubr.bf16.mxu0 0
        %4580 = vmatmul.mubr.bf16.gmra.mrb[0].mxu0 %v4545
        %v4581 = vpop.f32.mrb[0].mxu0
        %v4582 = vadd.f32 %v1067, %v4581
        %v4583 = vpop.f32.mrb[0].mxu0
        %v4584 = vpop.f32.mrb[0].mxu0
        %v4585 = vpop.f32.mrb[0].mxu0
        %4586 = vdwg.mxu0
        %v4587 = vld [vmem:[%s63] sm:$0xf]
        %v4588 = vld [vmem:[%s63 + $0x4] sm:$0xf]
        %v4589 = vld [vmem:[%s65] sm:$0x1]
        %v4590 = vld [vmem:[%s67] sm:$0xf]
        %v4591 = vld [vmem:[%s67 + $0x4] sm:$0xf]
        %v4592 = vld [vmem:[%s67 + $0x8] sm:$0xf]
        %v4593 = vld [vmem:[%s67 + $0xc] sm:$0xf]
        %v4594 = vld [vmem:[%s67 + $0x10] sm:$0xf]
        %v4595 = vld [vmem:[%s67 + $0x14] sm:$0xf]
        %v4596 = vld [vmem:[%s67 + $0x18] sm:$0x1]
        %v4597 = vld [vmem:[%s69] sm:$0x1]
        %v4598 = vpack.c.bf16 %v4582, %v4582
        %v4600 = vlaneseq
        %v4601 = vshrl.u32 %v4600, 7
        %v4602 = vsub.s32 0, %v4601
        %v4603 = vrot.slane %v4589, %v4602
        %v4607 = vunpack.c.l.b16 %v4587
        %v4608 = vunpack.c.l.b16 %v4588
        %v4609 = vpack.c.b16 %v4608, %v4607
        %v4612 = vsel %vm1077, %v4598, 0
        %4614 = vmatprep.subr.bf16.mxu0 0
        %4615 = vmatpush1.bf16.msra.mxu0 %v4609
        %4616 = vmatprep.subr.bf16.mxu0 0
        %4617 = vmatpush1.bf16.msra.mxu0 0
        %4618 = vmatprep.subr.bf16.mxu0 0
        %4619 = vmatpush1.bf16.msra.mxu0 0
        %4620 = vmatprep.subr.bf16.mxu0 0
        %4621 = vmatpush1.bf16.msra.mxu0 0
        %4622 = vmatprep.subr.bf16.mxu0 0
        %4623 = vmatpush1.bf16.msra.mxu0 0
        %4624 = vmatprep.subr.bf16.mxu0 0
        %4625 = vmatpush1.bf16.msra.mxu0 0
        %4626 = vmatprep.subr.bf16.mxu0 0
        %4627 = vmatpush1.bf16.msra.mxu0 0
        %4628 = vmatprep.subr.bf16.mxu0 0
        %4629 = vmatpush1.bf16.msra.mxu0 0
        %4630 = vmatprep.subr.bf16.mxu0 0
        %4631 = vmatpush1.bf16.msra.mxu0 0
        %4632 = vmatprep.subr.bf16.mxu0 0
        %4633 = vmatpush1.bf16.msra.mxu0 0
        %4634 = vmatprep.subr.bf16.mxu0 0
        %4635 = vmatpush1.bf16.msra.mxu0 0
        %4636 = vmatprep.subr.bf16.mxu0 0
        %4637 = vmatpush1.bf16.msra.mxu0 0
        %4638 = vmatprep.subr.bf16.mxu0 0
        %4639 = vmatpush1.bf16.msra.mxu0 0
        %4640 = vmatprep.subr.bf16.mxu0 0
        %4641 = vmatpush1.bf16.msra.mxu0 0
        %4642 = vmatprep.subr.bf16.mxu0 0
        %4643 = vmatpush1.bf16.msra.mxu0 0
        %4644 = vmatprep.subr.bf16.mxu0 0
        %4645 = vmatpush1.bf16.msra.mxu0 0
        %4646 = vmatprep.mubr.bf16.mxu0 0
        %4647 = vmatmul.mubr.bf16.gmra.mrb[0].mxu0 %v4612
        %v4648 = vpop.f32.mrb[0].mxu0
        %v4649 = vadd.f32 %v4603, %v4648
        %v4650 = vpop.f32.mrb[0].mxu0
        %v4651 = vpop.f32.mrb[0].mxu0
        %v4652 = vpop.f32.mrb[0].mxu0
        %4653 = vdwg.mxu0
        %v4654 = vmax.f32 %v4649, 0.0
        %v4655 = vpack.c.bf16 %v4654, %v4654
        %v4657 = vlaneseq
        %v4658 = vshrl.u32 %v4657, 7
        %v4659 = vsub.s32 0, %v4658
        %v4660 = vrot.slane %v4597, %v4659
        %v4669 = vunpack.c.l.b16 %v4590
        %v4670 = vunpack.c.l.b16 %v4591
        %v4671 = vunpack.c.l.b16 %v4592
        %v4672 = vunpack.c.l.b16 %v4593
        %v4673 = vunpack.c.l.b16 %v4594
        %v4674 = vunpack.c.l.b16 %v4595
        %v4675 = vunpack.c.l.b16 %v4596
        %v4676 = vpack.c.b16 %v4670, %v4669
        %v4677 = vpack.c.b16 %v4672, %v4671
        %v4678 = vpack.c.b16 %v4674, %v4673
        %v4679 = vpack.c.b16 %v4675, %v4675
        %vm4683 = vcmask 408576
        %v4685 = vsel %vm4683, %v4655, 0
        %vm4687 = vcmask 1040384
        %v4689 = vsel %vm4687, %v4679, 0
        %4691 = vmatprep.subr.bf16.mxu0 0
        %4692 = vmatpush1.bf16.msra.mxu0 %v4676
        %4693 = vmatprep.subr.bf16.mxu0 0
        %4694 = vmatpush1.bf16.msra.mxu0 %v4677
        %4695 = vmatprep.subr.bf16.mxu0 0
        %4696 = vmatpush1.bf16.msra.mxu0 %v4678
        %4697 = vmatprep.subr.bf16.mxu0 0
        %4698 = vmatpush1.bf16.msra.mxu0 %v4689
        %4699 = vmatprep.subr.bf16.mxu0 0
        %4700 = vmatpush1.bf16.msra.mxu0 0
        %4701 = vmatprep.subr.bf16.mxu0 0
        %4702 = vmatpush1.bf16.msra.mxu0 0
        %4703 = vmatprep.subr.bf16.mxu0 0
        %4704 = vmatpush1.bf16.msra.mxu0 0
        %4705 = vmatprep.subr.bf16.mxu0 0
        %4706 = vmatpush1.bf16.msra.mxu0 0
        %4707 = vmatprep.subr.bf16.mxu0 0
        %4708 = vmatpush1.bf16.msra.mxu0 0
        %4709 = vmatprep.subr.bf16.mxu0 0
        %4710 = vmatpush1.bf16.msra.mxu0 0
        %4711 = vmatprep.subr.bf16.mxu0 0
        %4712 = vmatpush1.bf16.msra.mxu0 0
        %4713 = vmatprep.subr.bf16.mxu0 0
        %4714 = vmatpush1.bf16.msra.mxu0 0
        %4715 = vmatprep.subr.bf16.mxu0 0
        %4716 = vmatpush1.bf16.msra.mxu0 0
        %4717 = vmatprep.subr.bf16.mxu0 0
        %4718 = vmatpush1.bf16.msra.mxu0 0
        %4719 = vmatprep.subr.bf16.mxu0 0
        %4720 = vmatpush1.bf16.msra.mxu0 0
        %4721 = vmatprep.subr.bf16.mxu0 0
        %4722 = vmatpush1.bf16.msra.mxu0 0
        %4723 = vmatprep.mubr.bf16.mxu0 0
        %4724 = vmatmul.mubr.bf16.gmra.mrb[0].mxu0 %v4685
        %v4725 = vpop.f32.mrb[0].mxu0
        %v4726 = vadd.f32 %v4660, %v4725
        %v4727 = vpop.f32.mrb[0].mxu0
        %v4728 = vpop.f32.mrb[0].mxu0
        %v4729 = vpop.f32.mrb[0].mxu0
        %4730 = vdwg.mxu0
        %vm4731 = vcmask 60416
        %4732 = vst.msk [vmem:[%s1061] sm:$0xf] %vm4731, %v4726
        %s4733 = sand.u32 %s833, 1
        %s4734 = scalar_lea.sflag [#allocation3], %s4733
        %s4735 = sand.u32 %s833, 1
        %s4736 = smul.addr %s4735, 4
        %s4737 = scalar_lea.vmem [#allocation2], %s4736
        // Predicated region
        $region161: #{sci_net_forward.1} parent=159 // pred_check
          %p4738 = pneg %p843
        $region162: #{sci_net_forward.1} parent=159 // pred_check_branch
          %4740 = sbr.rel (%p4738) target = $region164
        $region163: #{sci_net_forward.1} parent=159 // pred_region
          %s4742 = ssub.s32 64, 64
          %4743 = vsyncadd %s4734, %s4742
          %s4744 = smul.addr %s85, 64
          %s4745 = scalar_lea.hbm %s71, %s4744
          %s4747 = sshll.u32 %s4737, 4
          %s4748 = int_to_ptr.vmem [resolvable:$true] %s4747
          %4750 = dma.vmem_to_hbm [thread:$0]  %s4748, 64, %s4745, %s4734
        $region164: #{sci_net_forward.1} parent=159 // pred_fallthru
          _
      $region160: #{sci_net_forward.1} parent=5 // pred_fallthru
        _
      %p4751 = scmp.le.s32.totalorder 2, %s80
      // Predicated region
      $region165: #{sci_net_forward.1} parent=5 // pred_check
        %p4752 = pneg %p4751
      $region166: #{sci_net_forward.1} parent=5 // pred_check_branch
        %4754 = sbr.rel (%p4752) target = $region168
      $region167: #{sci_net_forward.1} parent=5 // pred_region
        %s4755 = ssub.s32 %s80, 2
        // Predicated region
        $region169: #{sci_net_forward.1} parent=167 // pred_check
          %p4756 = pneg %p849
        $region170: #{sci_net_forward.1} parent=167 // pred_check_branch
          %4758 = sbr.rel (%p4756) target = $region172
        $region171: #{sci_net_forward.1} parent=167 // pred_region
          %s4759 = sand.u32 %s834, 1
          %s4760 = scalar_lea.sflag [#allocation3], %s4759
          %s4761 = sand.u32 %s834, 1
          %s4762 = smul.addr %s4761, 4
          %s4763 = scalar_lea.vmem [#allocation2], %s4762
          %4764 = dma.done %s4760, 64
        $region172: #{sci_net_forward.1} parent=167 // pred_fallthru
          _
      $region168: #{sci_net_forward.1} parent=5 // pred_fallthru
        _
    $region6: #{sci_net_forward.1} parent=1 // loop_footer
      %s84 = sadd.s32 1, %s80
    $region7: #{sci_net_forward.1} parent=1 // loop_footer_branch
      %79 = sbr.rel target = $region3
    $region8: #{sci_net_forward.1} parent=1 // loop_exit
      _
    %4765 = vsyncpa [#allocation3], 1
    %s4766 = scalar_lea.sflag [#allocation3], 1
    %4767 = vsyncpa %s4766, 1

</llo_original>
